<compile_context>
chip_gen: v7x
topology: tpu7x:2x2x1
jax: 0.10.0
libtpu: 0.0.40
codegen_flags: <defaults>
</compile_context>

<pallas_src>
import functools
import math

import jax
import jax.numpy as jnp
from jax.experimental import pallas as pl
from jax.experimental.pallas import tpu as pltpu


# --------------------------------------------------------------------------
# Small tiling helpers
# --------------------------------------------------------------------------
def _pick(dim, pref):
    """Use the preferred tile if it divides the dim, otherwise the full dim."""
    return pref if (dim % pref == 0) else dim


# --------------------------------------------------------------------------
# Tiled linear kernel: y = x @ W + b (optional ReLU)
# --------------------------------------------------------------------------
def _linear_kernel(x_ref, w_ref, b_ref, o_ref, acc_ref, *, activation):
    @pl.when(pl.program_id(2) == 0)
    def _():
        acc_ref[...] = jnp.zeros_like(acc_ref)

    acc_ref[...] += jnp.dot(
        x_ref[...].astype(jnp.bfloat16),
        w_ref[...].astype(jnp.bfloat16),
        preferred_element_type=jnp.float32,
    )

    @pl.when(pl.program_id(2) == pl.num_programs(2) - 1)
    def _():
        y = acc_ref[...] + b_ref[...]
        if activation == "relu":
            y = jnp.maximum(y, 0.0)
        o_ref[...] = y.astype(o_ref.dtype)


def linear(x, w, b, activation=None, tm=256, tn=256, tk=512):
    """x: (M, K) f32, w: (K, N) bf16/f32, b: (N,) f32 -> (M, N) f32."""
    M, K = x.shape
    N = w.shape[1]
    tm = _pick(M, tm)
    tn = _pick(N, tn)
    tk = _pick(K, tk)
    grid = (M // tm, N // tn, K // tk)
    return pl.pallas_call(
        functools.partial(_linear_kernel, activation=activation),
        out_shape=jax.ShapeDtypeStruct((M, N), jnp.float32),
        grid=grid,
        in_specs=[
            pl.BlockSpec((tm, tk), lambda i, j, k: (i, k)),
            pl.BlockSpec((tk, tn), lambda i, j, k: (k, j)),
            pl.BlockSpec((1, tn), lambda i, j, k: (0, j)),
        ],
        out_specs=pl.BlockSpec((tm, tn), lambda i, j, k: (i, j)),
        scratch_shapes=[pltpu.VMEM((tm, tn), jnp.float32)],
        compiler_params=pltpu.CompilerParams(
            dimension_semantics=("parallel", "parallel", "arbitrary")),
    )(x, w, b.reshape(1, N))


# --------------------------------------------------------------------------
# Fused feed-forward: relu(x @ W1 + b1) @ W2 + b2 (d_ff intermediate stays in VMEM)
# --------------------------------------------------------------------------
def _ffn_kernel(x_ref, w1_ref, b1_ref, w2_ref, b2_ref, o_ref):
    h = jnp.dot(x_ref[...].astype(jnp.bfloat16),
                w1_ref[...].astype(jnp.bfloat16),
                preferred_element_type=jnp.float32)
    h = jnp.maximum(h + b1_ref[...], 0.0)
    o = jnp.dot(h.astype(jnp.bfloat16),
                w2_ref[...].astype(jnp.bfloat16),
                preferred_element_type=jnp.float32)
    o_ref[...] = (o + b2_ref[...]).astype(o_ref.dtype)


def ffn(x2, w1, b1, w2, b2, tm=256):
    M, D = x2.shape
    Dff = w1.shape[1]
    tm = _pick(M, tm)
    return pl.pallas_call(
        _ffn_kernel,
        out_shape=jax.ShapeDtypeStruct((M, D), jnp.float32),
        grid=(M // tm,),
        in_specs=[
            pl.BlockSpec((tm, D), lambda i: (i, 0)),
            pl.BlockSpec((D, Dff), lambda i: (0, 0)),
            pl.BlockSpec((1, Dff), lambda i: (0, 0)),
            pl.BlockSpec((Dff, D), lambda i: (0, 0)),
            pl.BlockSpec((1, D), lambda i: (0, 0)),
        ],
        out_specs=pl.BlockSpec((tm, D), lambda i: (i, 0)),
        compiler_params=pltpu.CompilerParams(dimension_semantics=("parallel",)),
    )(x2, w1, b1.reshape(1, Dff), w2, b2.reshape(1, D))


# --------------------------------------------------------------------------
# LayerNorm kernels (plain and fused residual-add)
# --------------------------------------------------------------------------
def _ln_kernel(x_ref, g_ref, b_ref, o_ref, *, eps):
    x = x_ref[...]
    mean = jnp.mean(x, axis=-1, keepdims=True)
    var = jnp.mean((x - mean) ** 2, axis=-1, keepdims=True)
    o_ref[...] = (x - mean) * jax.lax.rsqrt(var + eps) * g_ref[...] + b_ref[...]


def _add_ln_kernel(x_ref, y_ref, g_ref, b_ref, o_ref, *, eps):
    z = x_ref[...] + y_ref[...]
    mean = jnp.mean(z, axis=-1, keepdims=True)
    var = jnp.mean((z - mean) ** 2, axis=-1, keepdims=True)
    o_ref[...] = (z - mean) * jax.lax.rsqrt(var + eps) * g_ref[...] + b_ref[...]


def layer_norm(x, gamma, beta, eps=1e-5, tm=256):
    shp = x.shape
    D = shp[-1]
    x2 = x.reshape(-1, D)
    M = x2.shape[0]
    tm = _pick(M, tm)
    out = pl.pallas_call(
        functools.partial(_ln_kernel, eps=eps),
        out_shape=jax.ShapeDtypeStruct((M, D), jnp.float32),
        grid=(M // tm,),
        in_specs=[
            pl.BlockSpec((tm, D), lambda i: (i, 0)),
            pl.BlockSpec((1, D), lambda i: (0, 0)),
            pl.BlockSpec((1, D), lambda i: (0, 0)),
        ],
        out_specs=pl.BlockSpec((tm, D), lambda i: (i, 0)),
        compiler_params=pltpu.CompilerParams(dimension_semantics=("parallel",)),
    )(x2, gamma.reshape(1, D), beta.reshape(1, D))
    return out.reshape(shp)


def add_layer_norm(x, y, gamma, beta, eps=1e-5, tm=256):
    shp = x.shape
    D = shp[-1]
    x2 = x.reshape(-1, D)
    y2 = y.reshape(-1, D)
    M = x2.shape[0]
    tm = _pick(M, tm)
    out = pl.pallas_call(
        functools.partial(_add_ln_kernel, eps=eps),
        out_shape=jax.ShapeDtypeStruct((M, D), jnp.float32),
        grid=(M // tm,),
        in_specs=[
            pl.BlockSpec((tm, D), lambda i: (i, 0)),
            pl.BlockSpec((tm, D), lambda i: (i, 0)),
            pl.BlockSpec((1, D), lambda i: (0, 0)),
            pl.BlockSpec((1, D), lambda i: (0, 0)),
        ],
        out_specs=pl.BlockSpec((tm, D), lambda i: (i, 0)),
        compiler_params=pltpu.CompilerParams(dimension_semantics=("parallel",)),
    )(x2, y2, gamma.reshape(1, D), beta.reshape(1, D))
    return out.reshape(shp)


# --------------------------------------------------------------------------
# Attention: all heads of one batch element per grid step
# --------------------------------------------------------------------------
_NEG = -1e30  # finite "masked" value (avoids inf - inf = NaN in softmax)


def _attention_kernel(q_ref, k_ref, v_ref, *rest, scale, causal, has_pad):
    if has_pad:
        pad_ref, o_ref = rest
    else:
        (o_ref,) = rest

    q = (q_ref[0] * scale).astype(jnp.bfloat16)    # (H, Tq, Dh), scale folded here
    k = k_ref[0].astype(jnp.bfloat16)              # (H, Tk, Dh)
    v = v_ref[0].astype(jnp.bfloat16)              # (H, Tk, Dh)

    s = jnp.einsum("hqd,hkd->hqk", q, k, preferred_element_type=jnp.float32)

    if causal:
        Tq, Tk = s.shape[1], s.shape[2]
        row = jax.lax.broadcasted_iota(jnp.int32, (Tq, Tk), 0)
        col = jax.lax.broadcasted_iota(jnp.int32, (Tq, Tk), 1)
        s = jnp.where((col > row)[None], _NEG, s)
    if has_pad:
        s = s + pad_ref[0][None]                   # (1,1,Tk) broadcast over (H,Tq,Tk)

    m = jnp.max(s, axis=-1, keepdims=True)
    p = jnp.exp(s - m)
    p = p * pl.reciprocal(jnp.sum(p, axis=-1, keepdims=True), approx=True)

    o = jnp.einsum("hqk,hkd->hqd", p.astype(jnp.bfloat16), v,
                   preferred_element_type=jnp.float32)
    o_ref[0] = o.astype(o_ref.dtype)


def attention(q, k, v, kv_add_pad, causal, scale):
    """q: (B, H, Tq, Dh), k/v: (B, H, Tk, Dh), kv_add_pad: None or (B, 1, Tk)."""
    B, H, Tq, Dh = q.shape
    Tk = k.shape[2]
    has_pad = kv_add_pad is not None

    in_specs = [
        pl.BlockSpec((1, H, Tq, Dh), lambda b: (b, 0, 0, 0)),
        pl.BlockSpec((1, H, Tk, Dh), lambda b: (b, 0, 0, 0)),
        pl.BlockSpec((1, H, Tk, Dh), lambda b: (b, 0, 0, 0)),
    ]
    args = [q, k, v]
    if has_pad:
        in_specs.append(pl.BlockSpec((1, 1, Tk), lambda b: (b, 0, 0)))
        args.append(kv_add_pad)

    return pl.pallas_call(
        functools.partial(_attention_kernel, scale=scale, causal=causal,
                          has_pad=has_pad),
        out_shape=jax.ShapeDtypeStruct((B, H, Tq, Dh), jnp.float32),
        grid=(B,),
        in_specs=in_specs,
        out_specs=pl.BlockSpec((1, H, Tq, Dh), lambda b: (b, 0, 0, 0)),
        compiler_params=pltpu.CompilerParams(dimension_semantics=("parallel",)),
    )(*args)


# --------------------------------------------------------------------------
# Multi-head attention glue (fused QKV / KV projections)
# --------------------------------------------------------------------------
def self_attention(x, p, num_heads, kv_add_pad=None, causal=False):
    """x: (B, T, D) -> (B, T, D)."""
    B, T, D = x.shape
    Dh = D // num_heads
    qkv = linear(x.reshape(B * T, D), p["wqkv"], p["bqkv"])          # (B*T, 3D)
    qkv = qkv.reshape(B, T, 3, num_heads, Dh).transpose(2, 0, 3, 1, 4)
    o = attention(qkv[0], qkv[1], qkv[2], kv_add_pad, causal, 1.0 / math.sqrt(Dh))
    o = o.transpose(0, 2, 1, 3).reshape(B * T, D)
    return linear(o, p["wo"], p["bo"]).reshape(B, T, D)


def cross_attention(x, memory, p, num_heads):
    """x: (B, Tq, D), memory: (B, Tk, D) -> (B, Tq, D). No mask (matches ref)."""
    B, Tq, D = x.shape
    Tk = memory.shape[1]
    Dh = D // num_heads
    q = linear(x.reshape(B * Tq, D), p["wq"], p["bq"])
    q = q.reshape(B, Tq, num_heads, Dh).transpose(0, 2, 1, 3)
    kv = linear(memory.reshape(B * Tk, D), p["wkv"], p["bkv"])        # (B*Tk, 2D)
    kv = kv.reshape(B, Tk, 2, num_heads, Dh).transpose(2, 0, 3, 1, 4)
    o = attention(q, kv[0], kv[1], None, False, 1.0 / math.sqrt(Dh))
    o = o.transpose(0, 2, 1, 3).reshape(B * Tq, D)
    return linear(o, p["wo"], p["bo"]).reshape(B, Tq, D)


# --------------------------------------------------------------------------
# Encoder / decoder layers (post-norm, like nn.Transformer defaults)
# --------------------------------------------------------------------------
def encoder_layer(x, p, src_pad_add, num_heads):
    B, T, D = x.shape
    sa = self_attention(x, p["self_attn"], num_heads, kv_add_pad=src_pad_add)
    x = add_layer_norm(x, sa, p["norm1_g"], p["norm1_b"])
    ff = ffn(x.reshape(B * T, D), p["lin1_w"], p["lin1_b"],
             p["lin2_w"], p["lin2_b"]).reshape(B, T, D)
    x = add_layer_norm(x, ff, p["norm2_g"], p["norm2_b"])
    return x


def decoder_layer(x, memory, p, num_heads):
    B, T, D = x.shape
    sa = self_attention(x, p["self_attn"], num_heads, causal=True)
    x = add_layer_norm(x, sa, p["norm1_g"], p["norm1_b"])
    ca = cross_attention(x, memory, p["cross_attn"], num_heads)
    x = add_layer_norm(x, ca, p["norm2_g"], p["norm2_b"])
    ff = ffn(x.reshape(B * T, D), p["lin1_w"], p["lin1_b"],
             p["lin2_w"], p["lin2_b"]).reshape(B, T, D)
    x = add_layer_norm(x, ff, p["norm3_g"], p["norm3_b"])
    return x


# --------------------------------------------------------------------------
# Full forward pass
# --------------------------------------------------------------------------
def transformer_forward(params, src, trg, *, src_pad_idx, num_heads):
    """src: (Ts, B) int32, trg: (Tt, B) int32 -> logits (Tt, B, trg_vocab)."""
    Ts, B = src.shape
    Tt, _ = trg.shape
    D = params["src_word_emb"].shape[1]

    src_bt = src.T                                           # (B, Ts)
    trg_bt = trg.T                                           # (B, Tt)

    # embeddings + positional embeddings (dropout == identity in eval mode)
    embed_src = (jnp.take(params["src_word_emb"], src_bt, axis=0)
                 + params["src_pos_emb"][None, :Ts, :])      # (B, Ts, D)
    embed_trg = (jnp.take(params["trg_word_emb"], trg_bt, axis=0)
                 + params["trg_pos_emb"][None, :Tt, :])      # (B, Tt, D)

    # key-padding additive mask for encoder self-attention only: (B, 1, Ts)
    src_pad_add = jnp.where(src_bt == src_pad_idx, _NEG, 0.0
                            ).astype(jnp.float32)[:, None, :]

    # encoder
    memory = embed_src
    for lp in params["encoder_layers"]:
        memory = encoder_layer(memory, lp, src_pad_add, num_heads)
    memory = layer_norm(memory, params["enc_norm_g"], params["enc_norm_b"])

    # decoder (causal self-attn; cross-attn with no mask, matching the reference)
    out = embed_trg
    for lp in params["decoder_layers"]:
        out = decoder_layer(out, memory, lp, num_heads)
    out = layer_norm(out, params["dec_norm_g"], params["dec_norm_b"])

    # fc_out
    logits = linear(out.reshape(B * Tt, D), params["fc_out_w"], params["fc_out_b"])
    logits = logits.reshape(B, Tt, -1).transpose(1, 0, 2)    # back to (Tt, B, V)
    return logits


# --------------------------------------------------------------------------
# Deterministic parameter initialization (matmul weights stored in bf16)
# --------------------------------------------------------------------------
def _dense_w(key, d_in, d_out, scale=0.02):
    return (scale * jax.random.normal(key, (d_in, d_out), jnp.float32)
            ).astype(jnp.bfloat16)


def _self_attn_params(key, d_model):
    ks = jax.random.split(key, 2)
    return dict(
        wqkv=_dense_w(ks[0], d_model, 3 * d_model),
        bqkv=jnp.zeros((3 * d_model,), jnp.float32),
        wo=_dense_w(ks[1], d_model, d_model),
        bo=jnp.zeros((d_model,), jnp.float32),
    )


def _cross_attn_params(key, d_model):
    ks = jax.random.split(key, 3)
    return dict(
        wq=_dense_w(ks[0], d_model, d_model),
        bq=jnp.zeros((d_model,), jnp.float32),
        wkv=_dense_w(ks[1], d_model, 2 * d_model),
        bkv=jnp.zeros((2 * d_model,), jnp.float32),
        wo=_dense_w(ks[2], d_model, d_model),
        bo=jnp.zeros((d_model,), jnp.float32),
    )


def _enc_layer_params(key, d_model, d_ff):
    ks = jax.random.split(key, 3)
    return dict(
        self_attn=_self_attn_params(ks[0], d_model),
        lin1_w=_dense_w(ks[1], d_model, d_ff), lin1_b=jnp.zeros((d_ff,), jnp.float32),
        lin2_w=_dense_w(ks[2], d_ff, d_model), lin2_b=jnp.zeros((d_model,), jnp.float32),
        norm1_g=jnp.ones((d_model,)), norm1_b=jnp.zeros((d_model,)),
        norm2_g=jnp.ones((d_model,)), norm2_b=jnp.zeros((d_model,)),
    )


def _dec_layer_params(key, d_model, d_ff):
    ks = jax.random.split(key, 4)
    return dict(
        self_attn=_self_attn_params(ks[0], d_model),
        cross_attn=_cross_attn_params(ks[1], d_model),
        lin1_w=_dense_w(ks[2], d_model, d_ff), lin1_b=jnp.zeros((d_ff,), jnp.float32),
        lin2_w=_dense_w(ks[3], d_ff, d_model), lin2_b=jnp.zeros((d_model,), jnp.float32),
        norm1_g=jnp.ones((d_model,)), norm1_b=jnp.zeros((d_model,)),
        norm2_g=jnp.ones((d_model,)), norm2_b=jnp.zeros((d_model,)),
        norm3_g=jnp.ones((d_model,)), norm3_b=jnp.zeros((d_model,)),
    )


def init_params(key, *, d_model, d_ff, src_vocab, trg_vocab, max_len,
                num_enc_layers, num_dec_layers):
    ks = jax.random.split(key, 8 + num_enc_layers + num_dec_layers)
    params = dict(
        src_word_emb=0.02 * jax.random.normal(ks[0], (src_vocab, d_model), jnp.float32),
        src_pos_emb=0.02 * jax.random.normal(ks[1], (max_len, d_model), jnp.float32),
        trg_word_emb=0.02 * jax.random.normal(ks[2], (trg_vocab, d_model), jnp.float32),
        trg_pos_emb=0.02 * jax.random.normal(ks[3], (max_len, d_model), jnp.float32),
        fc_out_w=_dense_w(ks[4], d_model, trg_vocab),
        fc_out_b=jnp.zeros((trg_vocab,), jnp.float32),
        enc_norm_g=jnp.ones((d_model,)), enc_norm_b=jnp.zeros((d_model,)),
        dec_norm_g=jnp.ones((d_model,)), dec_norm_b=jnp.zeros((d_model,)),
        encoder_layers=[_enc_layer_params(ks[8 + i], d_model, d_ff)
                        for i in range(num_enc_layers)],
        decoder_layers=[_dec_layer_params(ks[8 + num_enc_layers + i], d_model, d_ff)
                        for i in range(num_dec_layers)],
    )
    return params


# --------------------------------------------------------------------------
# Main
# --------------------------------------------------------------------------
if __name__ == "__main__":
    # Small configuration consistent with the module (scaled down from 512/8/6/6).
    D_MODEL = 32
    NUM_HEADS = 4
    D_FF = D_MODEL * 4
    NUM_ENC = 2
    NUM_DEC = 2
    MAX_LEN = 16
    SRC_VOCAB = 37
    TRG_VOCAB = 41
    SRC_PAD_IDX = 1
    SRC_LEN, TRG_LEN, BATCH = 8, 8, 2

    root = jax.random.PRNGKey(0)
    k_par, k_src, k_trg = jax.random.split(root, 3)

    params = init_params(
        k_par, d_model=D_MODEL, d_ff=D_FF, src_vocab=SRC_VOCAB, trg_vocab=TRG_VOCAB,
        max_len=MAX_LEN, num_enc_layers=NUM_ENC, num_dec_layers=NUM_DEC)

    # token ids, seq-first layout (seq_len, batch); pad a tail of one src sequence
    src = jax.random.randint(k_src, (SRC_LEN, BATCH), 2, SRC_VOCAB, dtype=jnp.int32)
    src = src.at[-2:, 1].set(SRC_PAD_IDX)            # padding tokens in batch column 1
    trg = jax.random.randint(k_trg, (TRG_LEN, BATCH), 2, TRG_VOCAB, dtype=jnp.int32)

    fwd = jax.jit(functools.partial(
        transformer_forward, src_pad_idx=SRC_PAD_IDX, num_heads=NUM_HEADS))
    logits = fwd(params, src, trg)
    jax.block_until_ready(logits)

    assert logits.shape == (TRG_LEN, BATCH, TRG_VOCAB)
    assert bool(jnp.all(jnp.isfinite(logits)))
    print("KERNEL_OK")
</pallas_src>

<mosaic_0001>
module attributes {stable_mosaic.version = 11 : i64} {
  func.func @_linear_kernel(%arg0: i32, %arg1: i32, %arg2: i32, %arg3: memref<16x32xf32, #tpu.memory_space<vmem>>, %arg4: memref<32x96xbf16, #tpu.memory_space<vmem>>, %arg5: memref<1x96xf32, #tpu.memory_space<vmem>>, %arg6: memref<16x96xf32, #tpu.memory_space<vmem>>, %arg7: memref<16x96xf32, #tpu.memory_space<vmem>>) attributes {dimension_semantics = [#tpu.dimension_semantics<parallel>, #tpu.dimension_semantics<parallel>, #tpu.dimension_semantics<arbitrary>], iteration_bounds = array<i64: 1, 1, 1>, scalar_prefetch = 0 : i64, scratch_operands = 1 : i64, tpu.core_type = #tpu.core_type<tc>, window_params = [{transform_indices = @transform_0, window_bounds = array<i64: 16, 32>}, {transform_indices = @transform_1, window_bounds = array<i64: 32, 96>}, {transform_indices = @transform_2, window_bounds = array<i64: 1, 96>}, {transform_indices = @transform_3, window_bounds = array<i64: 16, 96>}]} {
    %c0_i32 = arith.constant 0 : i32
    %0 = arith.cmpi eq, %arg2, %c0_i32 : i32
    %1 = arith.extui %0 : i1 to i32
    %c0_i32_0 = arith.constant 0 : i32
    %2 = arith.cmpi ne, %1, %c0_i32_0 : i32
    scf.if %2 {
      %cst_10 = arith.constant 0.000000e+00 : f32
      %13 = vector.broadcast %cst_10 : f32 to vector<16x96xf32>
      %c0_11 = arith.constant 0 : index
      %c0_12 = arith.constant 0 : index
      %14 = vector.load %arg7[%c0_11, %c0_12] : memref<16x96xf32, #tpu.memory_space<vmem>>, vector<16x96xf32>
      tpu.vector_store %arg7[%c0_11, %c0_12], %13 {strides = array<i32>} : memref<16x96xf32, #tpu.memory_space<vmem>>, vector<16x96xf32>,
    } else {
    }
    %c0 = arith.constant 0 : index
    %c0_1 = arith.constant 0 : index
    %3 = vector.load %arg7[%c0, %c0_1] : memref<16x96xf32, #tpu.memory_space<vmem>>, vector<16x96xf32>
    %c0_2 = arith.constant 0 : index
    %c0_3 = arith.constant 0 : index
    %4 = vector.load %arg3[%c0_2, %c0_3] : memref<16x32xf32, #tpu.memory_space<vmem>>, vector<16x32xf32>
    %5 = arith.truncf %4 : vector<16x32xf32> to vector<16x32xbf16>
    %c0_4 = arith.constant 0 : index
    %c0_5 = arith.constant 0 : index
    %6 = vector.load %arg4[%c0_4, %c0_5] : memref<32x96xbf16, #tpu.memory_space<vmem>>, vector<32x96xbf16>
    %cst = arith.constant dense<0.000000e+00> : vector<16x96xf32>
    %7 = tpu.matmul %5, %6, %cst {dimension_numbers = #tpu.dot_dimension_numbers<[1], [0], [0], [1], [0, 0, 1, 1], [], []>} : vector<16x32xbf16>, vector<32x96xbf16>, vector<16x96xf32> -> vector<16x96xf32>
    %8 = arith.addf %3, %7 : vector<16x96xf32>
    %c0_6 = arith.constant 0 : index
    %c0_7 = arith.constant 0 : index
    %9 = vector.load %arg7[%c0_6, %c0_7] : memref<16x96xf32, #tpu.memory_space<vmem>>, vector<16x96xf32>
    tpu.vector_store %arg7[%c0_6, %c0_7], %8 {strides = array<i32>} : memref<16x96xf32, #tpu.memory_space<vmem>>, vector<16x96xf32>,
    %c0_i32_8 = arith.constant 0 : i32
    %10 = arith.cmpi eq, %arg2, %c0_i32_8 : i32
    %11 = arith.extui %10 : i1 to i32
    %c0_i32_9 = arith.constant 0 : i32
    %12 = arith.cmpi ne, %11, %c0_i32_9 : i32
    scf.if %12 {
      %c0_10 = arith.constant 0 : index
      %c0_11 = arith.constant 0 : index
      %13 = vector.load %arg7[%c0_10, %c0_11] : memref<16x96xf32, #tpu.memory_space<vmem>>, vector<16x96xf32>
      %c0_12 = arith.constant 0 : index
      %c0_13 = arith.constant 0 : index
      %14 = vector.load %arg5[%c0_12, %c0_13] : memref<1x96xf32, #tpu.memory_space<vmem>>, vector<1x96xf32>
      %15 = vector.broadcast %14 : vector<1x96xf32> to vector<16x96xf32>
      %16 = arith.addf %13, %15 : vector<16x96xf32>
      %c0_14 = arith.constant 0 : index
      %c0_15 = arith.constant 0 : index
      %17 = vector.load %arg6[%c0_14, %c0_15] : memref<16x96xf32, #tpu.memory_space<vmem>>, vector<16x96xf32>
      tpu.vector_store %arg6[%c0_14, %c0_15], %16 {strides = array<i32>} : memref<16x96xf32, #tpu.memory_space<vmem>>, vector<16x96xf32>,
    } else {
    }
    return
  }
  func.func @transform_0(%arg0: i32, %arg1: i32, %arg2: i32) -> (i32, i32) {
    %c0_i32 = arith.constant 0 : i32
    return %arg0, %arg2 : i32, i32
  }
  func.func @transform_1(%arg0: i32, %arg1: i32, %arg2: i32) -> (i32, i32) {
    %c0_i32 = arith.constant 0 : i32
    return %arg2, %arg1 : i32, i32
  }
  func.func @transform_2(%arg0: i32, %arg1: i32, %arg2: i32) -> (i32, i32) {
    %c0_i32 = arith.constant 0 : i32
    %c0_i32_0 = arith.constant 0 : i32
    return %c0_i32, %arg1 : i32, i32
  }
  func.func @transform_3(%arg0: i32, %arg1: i32, %arg2: i32) -> (i32, i32) {
    %c0_i32 = arith.constant 0 : i32
    return %arg0, %arg1 : i32, i32
  }
}

module attributes {stable_mosaic.version = 11 : i64} {
  func.func @_attention_kernel(%arg0: i32, %arg1: memref<1x4x8x8xf32, #tpu.memory_space<vmem>>, %arg2: memref<1x4x8x8xf32, #tpu.memory_space<vmem>>, %arg3: memref<1x4x8x8xf32, #tpu.memory_space<vmem>>, %arg4: memref<1x4x8x8xf32, #tpu.memory_space<vmem>>) attributes {dimension_semantics = [#tpu.dimension_semantics<parallel>], iteration_bounds = array<i64: 2>, scalar_prefetch = 0 : i64, scratch_operands = 0 : i64, tpu.core_type = #tpu.core_type<tc>, window_params = [{transform_indices = @transform_0, window_bounds = array<i64: 1, 4, 8, 8>}, {transform_indices = @transform_1, window_bounds = array<i64: 1, 4, 8, 8>}, {transform_indices = @transform_2, window_bounds = array<i64: 1, 4, 8, 8>}, {transform_indices = @transform_3, window_bounds = array<i64: 1, 4, 8, 8>}]} {
    %c0 = arith.constant 0 : index
    %c0_0 = arith.constant 0 : index
    %c0_1 = arith.constant 0 : index
    %c0_2 = arith.constant 0 : index
    %0 = vector.load %arg1[%c0, %c0_0, %c0_1, %c0_2] : memref<1x4x8x8xf32, #tpu.memory_space<vmem>>, vector<1x4x8x8xf32>
    %1 = vector.shape_cast %0 : vector<1x4x8x8xf32> to vector<4x8x8xf32>
    %cst = arith.constant 0.353553385 : f32
    %2 = vector.broadcast %cst : f32 to vector<4x8x8xf32>
    %3 = arith.mulf %1, %2 : vector<4x8x8xf32>
    %4 = arith.truncf %3 : vector<4x8x8xf32> to vector<4x8x8xbf16>
    %c0_3 = arith.constant 0 : index
    %c0_4 = arith.constant 0 : index
    %c0_5 = arith.constant 0 : index
    %c0_6 = arith.constant 0 : index
    %5 = vector.load %arg2[%c0_3, %c0_4, %c0_5, %c0_6] : memref<1x4x8x8xf32, #tpu.memory_space<vmem>>, vector<1x4x8x8xf32>
    %6 = vector.shape_cast %5 : vector<1x4x8x8xf32> to vector<4x8x8xf32>
    %7 = arith.truncf %6 : vector<4x8x8xf32> to vector<4x8x8xbf16>
    %c0_7 = arith.constant 0 : index
    %c0_8 = arith.constant 0 : index
    %c0_9 = arith.constant 0 : index
    %c0_10 = arith.constant 0 : index
    %8 = vector.load %arg3[%c0_7, %c0_8, %c0_9, %c0_10] : memref<1x4x8x8xf32, #tpu.memory_space<vmem>>, vector<1x4x8x8xf32>
    %9 = vector.shape_cast %8 : vector<1x4x8x8xf32> to vector<4x8x8xf32>
    %10 = arith.truncf %9 : vector<4x8x8xf32> to vector<4x8x8xbf16>
    "tpu.trace_start"() <{level = 10 : i32, message = "hqd,hkd->hqk"}> : () -> ()
    %cst_11 = arith.constant dense<0.000000e+00> : vector<4x8x8xf32>
    %11 = tpu.matmul %4, %7, %cst_11 {dimension_numbers = #tpu.dot_dimension_numbers<[2], [2], [1], [1], [0, 0, 0, 1, 1, 1], [0], [0]>} : vector<4x8x8xbf16>, vector<4x8x8xbf16>, vector<4x8x8xf32> -> vector<4x8x8xf32>
    "tpu.trace_stop"() : () -> ()
    %12 = tpu.iota {dimensions = array<i32: 0>} : vector<8x8xi32>
    %13 = tpu.iota {dimensions = array<i32: 1>} : vector<8x8xi32>
    %14 = arith.cmpi sgt, %13, %12 : vector<8x8xi32>
    %15 = vector.shape_cast %14 : vector<8x8xi1> to vector<1x8x8xi1>
    %cst_12 = arith.constant -1.000000e+30 : f32
    %16 = vector.shape_cast %15 : vector<1x8x8xi1> to vector<1x8x8xi1>
    %17 = vector.broadcast %16 : vector<1x8x8xi1> to vector<4x8x8xi1>
    %18 = vector.broadcast %cst_12 : f32 to vector<4x8x8xf32>
    %19 = arith.select %17, %18, %11 : vector<4x8x8xi1>, vector<4x8x8xf32>
    %cst_13 = arith.constant dense<0xFF800000> : vector<4x8xf32>
    %20 = vector.multi_reduction <maximumf>, %19, %cst_13 [2] : vector<4x8x8xf32> to vector<4x8xf32>
    %21 = vector.shape_cast %20 : vector<4x8xf32> to vector<4x8x1xf32>
    %22 = vector.broadcast %21 : vector<4x8x1xf32> to vector<4x8x8xf32>
    %23 = arith.subf %19, %22 : vector<4x8x8xf32>
    %24 = math.exp %23 : vector<4x8x8xf32>
    %cst_14 = arith.constant dense<0.000000e+00> : vector<4x8xf32>
    %25 = vector.multi_reduction <add>, %24, %cst_14 [2] : vector<4x8x8xf32> to vector<4x8xf32>
    %26 = vector.shape_cast %25 : vector<4x8xf32> to vector<4x8x1xf32>
    %27 = tpu.reciprocal %26 {approx = true} : vector<4x8x1xf32> -> vector<4x8x1xf32>
    %28 = vector.broadcast %27 : vector<4x8x1xf32> to vector<4x8x8xf32>
    %29 = arith.mulf %24, %28 : vector<4x8x8xf32>
    %30 = arith.truncf %29 : vector<4x8x8xf32> to vector<4x8x8xbf16>
    "tpu.trace_start"() <{level = 10 : i32, message = "hqk,hkd->hqd"}> : () -> ()
    %cst_15 = arith.constant dense<0.000000e+00> : vector<4x8x8xf32>
    %31 = tpu.matmul %30, %10, %cst_15 {dimension_numbers = #tpu.dot_dimension_numbers<[2], [1], [1], [2], [0, 0, 0, 1, 1, 2], [0], [0]>} : vector<4x8x8xbf16>, vector<4x8x8xbf16>, vector<4x8x8xf32> -> vector<4x8x8xf32>
    "tpu.trace_stop"() : () -> ()
    %c0_16 = arith.constant 0 : index
    %c0_17 = arith.constant 0 : index
    %c0_18 = arith.constant 0 : index
    %c0_19 = arith.constant 0 : index
    %32 = vector.load %arg4[%c0_16, %c0_17, %c0_18, %c0_19] : memref<1x4x8x8xf32, #tpu.memory_space<vmem>>, vector<1x4x8x8xf32>
    %33 = vector.shape_cast %32 : vector<1x4x8x8xf32> to vector<4x8x8xf32>
    %34 = vector.shape_cast %31 : vector<4x8x8xf32> to vector<1x4x8x8xf32>
    tpu.vector_store %arg4[%c0_16, %c0_17, %c0_18, %c0_19], %34 {strides = array<i32>} : memref<1x4x8x8xf32, #tpu.memory_space<vmem>>, vector<1x4x8x8xf32>,
    return
  }
  func.func @transform_0(%arg0: i32) -> (i32, i32, i32, i32) {
    %c0_i32 = arith.constant 0 : i32
    %c0_i32_0 = arith.constant 0 : i32
    %c0_i32_1 = arith.constant 0 : i32
    %c0_i32_2 = arith.constant 0 : i32
    return %arg0, %c0_i32, %c0_i32_0, %c0_i32_1 : i32, i32, i32, i32
  }
  func.func @transform_1(%arg0: i32) -> (i32, i32, i32, i32) {
    %c0_i32 = arith.constant 0 : i32
    %c0_i32_0 = arith.constant 0 : i32
    %c0_i32_1 = arith.constant 0 : i32
    %c0_i32_2 = arith.constant 0 : i32
    return %arg0, %c0_i32, %c0_i32_0, %c0_i32_1 : i32, i32, i32, i32
  }
  func.func @transform_2(%arg0: i32) -> (i32, i32, i32, i32) {
    %c0_i32 = arith.constant 0 : i32
    %c0_i32_0 = arith.constant 0 : i32
    %c0_i32_1 = arith.constant 0 : i32
    %c0_i32_2 = arith.constant 0 : i32
    return %arg0, %c0_i32, %c0_i32_0, %c0_i32_1 : i32, i32, i32, i32
  }
  func.func @transform_3(%arg0: i32) -> (i32, i32, i32, i32) {
    %c0_i32 = arith.constant 0 : i32
    %c0_i32_0 = arith.constant 0 : i32
    %c0_i32_1 = arith.constant 0 : i32
    %c0_i32_2 = arith.constant 0 : i32
    return %arg0, %c0_i32, %c0_i32_0, %c0_i32_1 : i32, i32, i32, i32
  }
}

module attributes {stable_mosaic.version = 11 : i64} {
  func.func @_linear_kernel(%arg0: i32, %arg1: i32, %arg2: i32, %arg3: memref<16x32xf32, #tpu.memory_space<vmem>>, %arg4: memref<32x32xbf16, #tpu.memory_space<vmem>>, %arg5: memref<1x32xf32, #tpu.memory_space<vmem>>, %arg6: memref<16x32xf32, #tpu.memory_space<vmem>>, %arg7: memref<16x32xf32, #tpu.memory_space<vmem>>) attributes {dimension_semantics = [#tpu.dimension_semantics<parallel>, #tpu.dimension_semantics<parallel>, #tpu.dimension_semantics<arbitrary>], iteration_bounds = array<i64: 1, 1, 1>, scalar_prefetch = 0 : i64, scratch_operands = 1 : i64, tpu.core_type = #tpu.core_type<tc>, window_params = [{transform_indices = @transform_0, window_bounds = array<i64: 16, 32>}, {transform_indices = @transform_1, window_bounds = array<i64: 32, 32>}, {transform_indices = @transform_2, window_bounds = array<i64: 1, 32>}, {transform_indices = @transform_3, window_bounds = array<i64: 16, 32>}]} {
    %c0_i32 = arith.constant 0 : i32
    %0 = arith.cmpi eq, %arg2, %c0_i32 : i32
    %1 = arith.extui %0 : i1 to i32
    %c0_i32_0 = arith.constant 0 : i32
    %2 = arith.cmpi ne, %1, %c0_i32_0 : i32
    scf.if %2 {
      %cst_10 = arith.constant 0.000000e+00 : f32
      %13 = vector.broadcast %cst_10 : f32 to vector<16x32xf32>
      %c0_11 = arith.constant 0 : index
      %c0_12 = arith.constant 0 : index
      %14 = vector.load %arg7[%c0_11, %c0_12] : memref<16x32xf32, #tpu.memory_space<vmem>>, vector<16x32xf32>
      tpu.vector_store %arg7[%c0_11, %c0_12], %13 {strides = array<i32>} : memref<16x32xf32, #tpu.memory_space<vmem>>, vector<16x32xf32>,
    } else {
    }
    %c0 = arith.constant 0 : index
    %c0_1 = arith.constant 0 : index
    %3 = vector.load %arg7[%c0, %c0_1] : memref<16x32xf32, #tpu.memory_space<vmem>>, vector<16x32xf32>
    %c0_2 = arith.constant 0 : index
    %c0_3 = arith.constant 0 : index
    %4 = vector.load %arg3[%c0_2, %c0_3] : memref<16x32xf32, #tpu.memory_space<vmem>>, vector<16x32xf32>
    %5 = arith.truncf %4 : vector<16x32xf32> to vector<16x32xbf16>
    %c0_4 = arith.constant 0 : index
    %c0_5 = arith.constant 0 : index
    %6 = vector.load %arg4[%c0_4, %c0_5] : memref<32x32xbf16, #tpu.memory_space<vmem>>, vector<32x32xbf16>
    %cst = arith.constant dense<0.000000e+00> : vector<16x32xf32>
    %7 = tpu.matmul %5, %6, %cst {dimension_numbers = #tpu.dot_dimension_numbers<[1], [0], [0], [1], [0, 0, 1, 1], [], []>} : vector<16x32xbf16>, vector<32x32xbf16>, vector<16x32xf32> -> vector<16x32xf32>
    %8 = arith.addf %3, %7 : vector<16x32xf32>
    %c0_6 = arith.constant 0 : index
    %c0_7 = arith.constant 0 : index
    %9 = vector.load %arg7[%c0_6, %c0_7] : memref<16x32xf32, #tpu.memory_space<vmem>>, vector<16x32xf32>
    tpu.vector_store %arg7[%c0_6, %c0_7], %8 {strides = array<i32>} : memref<16x32xf32, #tpu.memory_space<vmem>>, vector<16x32xf32>,
    %c0_i32_8 = arith.constant 0 : i32
    %10 = arith.cmpi eq, %arg2, %c0_i32_8 : i32
    %11 = arith.extui %10 : i1 to i32
    %c0_i32_9 = arith.constant 0 : i32
    %12 = arith.cmpi ne, %11, %c0_i32_9 : i32
    scf.if %12 {
      %c0_10 = arith.constant 0 : index
      %c0_11 = arith.constant 0 : index
      %13 = vector.load %arg7[%c0_10, %c0_11] : memref<16x32xf32, #tpu.memory_space<vmem>>, vector<16x32xf32>
      %c0_12 = arith.constant 0 : index
      %c0_13 = arith.constant 0 : index
      %14 = vector.load %arg5[%c0_12, %c0_13] : memref<1x32xf32, #tpu.memory_space<vmem>>, vector<1x32xf32>
      %15 = vector.broadcast %14 : vector<1x32xf32> to vector<16x32xf32>
      %16 = arith.addf %13, %15 : vector<16x32xf32>
      %c0_14 = arith.constant 0 : index
      %c0_15 = arith.constant 0 : index
      %17 = vector.load %arg6[%c0_14, %c0_15] : memref<16x32xf32, #tpu.memory_space<vmem>>, vector<16x32xf32>
      tpu.vector_store %arg6[%c0_14, %c0_15], %16 {strides = array<i32>} : memref<16x32xf32, #tpu.memory_space<vmem>>, vector<16x32xf32>,
    } else {
    }
    return
  }
  func.func @transform_0(%arg0: i32, %arg1: i32, %arg2: i32) -> (i32, i32) {
    %c0_i32 = arith.constant 0 : i32
    return %arg0, %arg2 : i32, i32
  }
  func.func @transform_1(%arg0: i32, %arg1: i32, %arg2: i32) -> (i32, i32) {
    %c0_i32 = arith.constant 0 : i32
    return %arg2, %arg1 : i32, i32
  }
  func.func @transform_2(%arg0: i32, %arg1: i32, %arg2: i32) -> (i32, i32) {
    %c0_i32 = arith.constant 0 : i32
    %c0_i32_0 = arith.constant 0 : i32
    return %c0_i32, %arg1 : i32, i32
  }
  func.func @transform_3(%arg0: i32, %arg1: i32, %arg2: i32) -> (i32, i32) {
    %c0_i32 = arith.constant 0 : i32
    return %arg0, %arg1 : i32, i32
  }
}

module attributes {stable_mosaic.version = 11 : i64} {
  func.func @_add_ln_kernel(%arg0: i32, %arg1: memref<16x32xf32, #tpu.memory_space<vmem>>, %arg2: memref<16x32xf32, #tpu.memory_space<vmem>>, %arg3: memref<1x32xf32, #tpu.memory_space<vmem>>, %arg4: memref<1x32xf32, #tpu.memory_space<vmem>>, %arg5: memref<16x32xf32, #tpu.memory_space<vmem>>) attributes {dimension_semantics = [#tpu.dimension_semantics<parallel>], iteration_bounds = array<i64: 1>, scalar_prefetch = 0 : i64, scratch_operands = 0 : i64, tpu.core_type = #tpu.core_type<tc>, window_params = [{transform_indices = @transform_0, window_bounds = array<i64: 16, 32>}, {transform_indices = @transform_1, window_bounds = array<i64: 16, 32>}, {pipeline_mode = #tpu.pipeline_mode<synchronous>, transform_indices = @transform_2, window_bounds = array<i64: 1, 32>}, {pipeline_mode = #tpu.pipeline_mode<synchronous>, transform_indices = @transform_3, window_bounds = array<i64: 1, 32>}, {transform_indices = @transform_4, window_bounds = array<i64: 16, 32>}]} {
    %c0 = arith.constant 0 : index
    %c0_0 = arith.constant 0 : index
    %0 = vector.load %arg1[%c0, %c0_0] : memref<16x32xf32, #tpu.memory_space<vmem>>, vector<16x32xf32>
    %c0_1 = arith.constant 0 : index
    %c0_2 = arith.constant 0 : index
    %1 = vector.load %arg2[%c0_1, %c0_2] : memref<16x32xf32, #tpu.memory_space<vmem>>, vector<16x32xf32>
    %2 = arith.addf %0, %1 : vector<16x32xf32>
    %cst = arith.constant dense<0.000000e+00> : vector<16xf32>
    %3 = vector.multi_reduction <add>, %2, %cst [1] : vector<16x32xf32> to vector<16xf32>
    %4 = vector.shape_cast %3 : vector<16xf32> to vector<16x1xf32>
    %cst_3 = arith.constant 3.200000e+01 : f32
    %5 = vector.broadcast %cst_3 : f32 to vector<16x1xf32>
    %6 = arith.divf %4, %5 : vector<16x1xf32>
    %7 = vector.broadcast %6 : vector<16x1xf32> to vector<16x32xf32>
    %8 = arith.subf %2, %7 : vector<16x32xf32>
    %9 = arith.mulf %8, %8 : vector<16x32xf32>
    %cst_4 = arith.constant dense<0.000000e+00> : vector<16xf32>
    %10 = vector.multi_reduction <add>, %9, %cst_4 [1] : vector<16x32xf32> to vector<16xf32>
    %11 = vector.shape_cast %10 : vector<16xf32> to vector<16x1xf32>
    %cst_5 = arith.constant 3.200000e+01 : f32
    %12 = vector.broadcast %cst_5 : f32 to vector<16x1xf32>
    %13 = arith.divf %11, %12 : vector<16x1xf32>
    %14 = vector.broadcast %6 : vector<16x1xf32> to vector<16x32xf32>
    %15 = arith.subf %2, %14 : vector<16x32xf32>
    %cst_6 = arith.constant 9.99999974E-6 : f32
    %16 = vector.broadcast %cst_6 : f32 to vector<16x1xf32>
    %17 = arith.addf %13, %16 : vector<16x1xf32>
    %18 = math.rsqrt %17 : vector<16x1xf32>
    %19 = vector.broadcast %18 : vector<16x1xf32> to vector<16x32xf32>
    %20 = arith.mulf %15, %19 : vector<16x32xf32>
    %c0_7 = arith.constant 0 : index
    %c0_8 = arith.constant 0 : index
    %21 = vector.load %arg3[%c0_7, %c0_8] : memref<1x32xf32, #tpu.memory_space<vmem>>, vector<1x32xf32>
    %22 = vector.broadcast %21 : vector<1x32xf32> to vector<16x32xf32>
    %23 = arith.mulf %20, %22 : vector<16x32xf32>
    %c0_9 = arith.constant 0 : index
    %c0_10 = arith.constant 0 : index
    %24 = vector.load %arg4[%c0_9, %c0_10] : memref<1x32xf32, #tpu.memory_space<vmem>>, vector<1x32xf32>
    %25 = vector.broadcast %24 : vector<1x32xf32> to vector<16x32xf32>
    %26 = arith.addf %23, %25 : vector<16x32xf32>
    %c0_11 = arith.constant 0 : index
    %c0_12 = arith.constant 0 : index
    %27 = vector.load %arg5[%c0_11, %c0_12] : memref<16x32xf32, #tpu.memory_space<vmem>>, vector<16x32xf32>
    tpu.vector_store %arg5[%c0_11, %c0_12], %26 {strides = array<i32>} : memref<16x32xf32, #tpu.memory_space<vmem>>, vector<16x32xf32>,
    return
  }
  func.func @transform_0(%arg0: i32) -> (i32, i32) {
    %c0_i32 = arith.constant 0 : i32
    %c0_i32_0 = arith.constant 0 : i32
    return %arg0, %c0_i32 : i32, i32
  }
  func.func @transform_1(%arg0: i32) -> (i32, i32) {
    %c0_i32 = arith.constant 0 : i32
    %c0_i32_0 = arith.constant 0 : i32
    return %arg0, %c0_i32 : i32, i32
  }
  func.func @transform_2(%arg0: i32) -> (i32, i32) {
    %c0_i32 = arith.constant 0 : i32
    %c0_i32_0 = arith.constant 0 : i32
    %c0_i32_1 = arith.constant 0 : i32
    return %c0_i32, %c0_i32_0 : i32, i32
  }
  func.func @transform_3(%arg0: i32) -> (i32, i32) {
    %c0_i32 = arith.constant 0 : i32
    %c0_i32_0 = arith.constant 0 : i32
    %c0_i32_1 = arith.constant 0 : i32
    return %c0_i32, %c0_i32_0 : i32, i32
  }
  func.func @transform_4(%arg0: i32) -> (i32, i32) {
    %c0_i32 = arith.constant 0 : i32
    %c0_i32_0 = arith.constant 0 : i32
    return %arg0, %c0_i32 : i32, i32
  }
}

module attributes {stable_mosaic.version = 11 : i64} {
  func.func @_attention_kernel(%arg0: i32, %arg1: memref<1x4x8x8xf32, #tpu.memory_space<vmem>>, %arg2: memref<1x4x8x8xf32, #tpu.memory_space<vmem>>, %arg3: memref<1x4x8x8xf32, #tpu.memory_space<vmem>>, %arg4: memref<1x1x8xf32, #tpu.memory_space<vmem>>, %arg5: memref<1x4x8x8xf32, #tpu.memory_space<vmem>>) attributes {dimension_semantics = [#tpu.dimension_semantics<parallel>], iteration_bounds = array<i64: 2>, scalar_prefetch = 0 : i64, scratch_operands = 0 : i64, tpu.core_type = #tpu.core_type<tc>, window_params = [{transform_indices = @transform_0, window_bounds = array<i64: 1, 4, 8, 8>}, {transform_indices = @transform_1, window_bounds = array<i64: 1, 4, 8, 8>}, {transform_indices = @transform_2, window_bounds = array<i64: 1, 4, 8, 8>}, {transform_indices = @transform_3, window_bounds = array<i64: 1, 1, 8>}, {transform_indices = @transform_4, window_bounds = array<i64: 1, 4, 8, 8>}]} {
    %c0 = arith.constant 0 : index
    %c0_0 = arith.constant 0 : index
    %c0_1 = arith.constant 0 : index
    %c0_2 = arith.constant 0 : index
    %0 = vector.load %arg1[%c0, %c0_0, %c0_1, %c0_2] : memref<1x4x8x8xf32, #tpu.memory_space<vmem>>, vector<1x4x8x8xf32>
    %1 = vector.shape_cast %0 : vector<1x4x8x8xf32> to vector<4x8x8xf32>
    %cst = arith.constant 0.353553385 : f32
    %2 = vector.broadcast %cst : f32 to vector<4x8x8xf32>
    %3 = arith.mulf %1, %2 : vector<4x8x8xf32>
    %4 = arith.truncf %3 : vector<4x8x8xf32> to vector<4x8x8xbf16>
    %c0_3 = arith.constant 0 : index
    %c0_4 = arith.constant 0 : index
    %c0_5 = arith.constant 0 : index
    %c0_6 = arith.constant 0 : index
    %5 = vector.load %arg2[%c0_3, %c0_4, %c0_5, %c0_6] : memref<1x4x8x8xf32, #tpu.memory_space<vmem>>, vector<1x4x8x8xf32>
    %6 = vector.shape_cast %5 : vector<1x4x8x8xf32> to vector<4x8x8xf32>
    %7 = arith.truncf %6 : vector<4x8x8xf32> to vector<4x8x8xbf16>
    %c0_7 = arith.constant 0 : index
    %c0_8 = arith.constant 0 : index
    %c0_9 = arith.constant 0 : index
    %c0_10 = arith.constant 0 : index
    %8 = vector.load %arg3[%c0_7, %c0_8, %c0_9, %c0_10] : memref<1x4x8x8xf32, #tpu.memory_space<vmem>>, vector<1x4x8x8xf32>
    %9 = vector.shape_cast %8 : vector<1x4x8x8xf32> to vector<4x8x8xf32>
    %10 = arith.truncf %9 : vector<4x8x8xf32> to vector<4x8x8xbf16>
    "tpu.trace_start"() <{level = 10 : i32, message = "hqd,hkd->hqk"}> : () -> ()
    %cst_11 = arith.constant dense<0.000000e+00> : vector<4x8x8xf32>
    %11 = tpu.matmul %4, %7, %cst_11 {dimension_numbers = #tpu.dot_dimension_numbers<[2], [2], [1], [1], [0, 0, 0, 1, 1, 1], [0], [0]>} : vector<4x8x8xbf16>, vector<4x8x8xbf16>, vector<4x8x8xf32> -> vector<4x8x8xf32>
    "tpu.trace_stop"() : () -> ()
    %c0_12 = arith.constant 0 : index
    %c0_13 = arith.constant 0 : index
    %c0_14 = arith.constant 0 : index
    %12 = vector.load %arg4[%c0_12, %c0_13, %c0_14] : memref<1x1x8xf32, #tpu.memory_space<vmem>>, vector<1x1x8xf32>
    %13 = vector.shape_cast %12 : vector<1x1x8xf32> to vector<1x8xf32>
    %14 = vector.shape_cast %13 : vector<1x8xf32> to vector<1x1x8xf32>
    %15 = vector.broadcast %14 : vector<1x1x8xf32> to vector<4x8x8xf32>
    %16 = arith.addf %11, %15 : vector<4x8x8xf32>
    %cst_15 = arith.constant dense<0xFF800000> : vector<4x8xf32>
    %17 = vector.multi_reduction <maximumf>, %16, %cst_15 [2] : vector<4x8x8xf32> to vector<4x8xf32>
    %18 = vector.shape_cast %17 : vector<4x8xf32> to vector<4x8x1xf32>
    %19 = vector.broadcast %18 : vector<4x8x1xf32> to vector<4x8x8xf32>
    %20 = arith.subf %16, %19 : vector<4x8x8xf32>
    %21 = math.exp %20 : vector<4x8x8xf32>
    %cst_16 = arith.constant dense<0.000000e+00> : vector<4x8xf32>
    %22 = vector.multi_reduction <add>, %21, %cst_16 [2] : vector<4x8x8xf32> to vector<4x8xf32>
    %23 = vector.shape_cast %22 : vector<4x8xf32> to vector<4x8x1xf32>
    %24 = tpu.reciprocal %23 {approx = true} : vector<4x8x1xf32> -> vector<4x8x1xf32>
    %25 = vector.broadcast %24 : vector<4x8x1xf32> to vector<4x8x8xf32>
    %26 = arith.mulf %21, %25 : vector<4x8x8xf32>
    %27 = arith.truncf %26 : vector<4x8x8xf32> to vector<4x8x8xbf16>
    "tpu.trace_start"() <{level = 10 : i32, message = "hqk,hkd->hqd"}> : () -> ()
    %cst_17 = arith.constant dense<0.000000e+00> : vector<4x8x8xf32>
    %28 = tpu.matmul %27, %10, %cst_17 {dimension_numbers = #tpu.dot_dimension_numbers<[2], [1], [1], [2], [0, 0, 0, 1, 1, 2], [0], [0]>} : vector<4x8x8xbf16>, vector<4x8x8xbf16>, vector<4x8x8xf32> -> vector<4x8x8xf32>
    "tpu.trace_stop"() : () -> ()
    %c0_18 = arith.constant 0 : index
    %c0_19 = arith.constant 0 : index
    %c0_20 = arith.constant 0 : index
    %c0_21 = arith.constant 0 : index
    %29 = vector.load %arg5[%c0_18, %c0_19, %c0_20, %c0_21] : memref<1x4x8x8xf32, #tpu.memory_space<vmem>>, vector<1x4x8x8xf32>
    %30 = vector.shape_cast %29 : vector<1x4x8x8xf32> to vector<4x8x8xf32>
    %31 = vector.shape_cast %28 : vector<4x8x8xf32> to vector<1x4x8x8xf32>
    tpu.vector_store %arg5[%c0_18, %c0_19, %c0_20, %c0_21], %31 {strides = array<i32>} : memref<1x4x8x8xf32, #tpu.memory_space<vmem>>, vector<1x4x8x8xf32>,
    return
  }
  func.func @transform_0(%arg0: i32) -> (i32, i32, i32, i32) {
    %c0_i32 = arith.constant 0 : i32
    %c0_i32_0 = arith.constant 0 : i32
    %c0_i32_1 = arith.constant 0 : i32
    %c0_i32_2 = arith.constant 0 : i32
    return %arg0, %c0_i32, %c0_i32_0, %c0_i32_1 : i32, i32, i32, i32
  }
  func.func @transform_1(%arg0: i32) -> (i32, i32, i32, i32) {
    %c0_i32 = arith.constant 0 : i32
    %c0_i32_0 = arith.constant 0 : i32
    %c0_i32_1 = arith.constant 0 : i32
    %c0_i32_2 = arith.constant 0 : i32
    return %arg0, %c0_i32, %c0_i32_0, %c0_i32_1 : i32, i32, i32, i32
  }
  func.func @transform_2(%arg0: i32) -> (i32, i32, i32, i32) {
    %c0_i32 = arith.constant 0 : i32
    %c0_i32_0 = arith.constant 0 : i32
    %c0_i32_1 = arith.constant 0 : i32
    %c0_i32_2 = arith.constant 0 : i32
    return %arg0, %c0_i32, %c0_i32_0, %c0_i32_1 : i32, i32, i32, i32
  }
  func.func @transform_3(%arg0: i32) -> (i32, i32, i32) {
    %c0_i32 = arith.constant 0 : i32
    %c0_i32_0 = arith.constant 0 : i32
    %c0_i32_1 = arith.constant 0 : i32
    return %arg0, %c0_i32, %c0_i32_0 : i32, i32, i32
  }
  func.func @transform_4(%arg0: i32) -> (i32, i32, i32, i32) {
    %c0_i32 = arith.constant 0 : i32
    %c0_i32_0 = arith.constant 0 : i32
    %c0_i32_1 = arith.constant 0 : i32
    %c0_i32_2 = arith.constant 0 : i32
    return %arg0, %c0_i32, %c0_i32_0, %c0_i32_1 : i32, i32, i32, i32
  }
}

module attributes {stable_mosaic.version = 11 : i64} {
  func.func @_ffn_kernel(%arg0: i32, %arg1: memref<16x32xf32, #tpu.memory_space<vmem>>, %arg2: memref<32x128xbf16, #tpu.memory_space<vmem>>, %arg3: memref<1x128xf32, #tpu.memory_space<vmem>>, %arg4: memref<128x32xbf16, #tpu.memory_space<vmem>>, %arg5: memref<1x32xf32, #tpu.memory_space<vmem>>, %arg6: memref<16x32xf32, #tpu.memory_space<vmem>>) attributes {dimension_semantics = [#tpu.dimension_semantics<parallel>], iteration_bounds = array<i64: 1>, scalar_prefetch = 0 : i64, scratch_operands = 0 : i64, tpu.core_type = #tpu.core_type<tc>, window_params = [{transform_indices = @transform_0, window_bounds = array<i64: 16, 32>}, {pipeline_mode = #tpu.pipeline_mode<synchronous>, transform_indices = @transform_1, window_bounds = array<i64: 32, 128>}, {pipeline_mode = #tpu.pipeline_mode<synchronous>, transform_indices = @transform_2, window_bounds = array<i64: 1, 128>}, {pipeline_mode = #tpu.pipeline_mode<synchronous>, transform_indices = @transform_3, window_bounds = array<i64: 128, 32>}, {pipeline_mode = #tpu.pipeline_mode<synchronous>, transform_indices = @transform_4, window_bounds = array<i64: 1, 32>}, {transform_indices = @transform_5, window_bounds = array<i64: 16, 32>}]} {
    %c0 = arith.constant 0 : index
    %c0_0 = arith.constant 0 : index
    %0 = vector.load %arg1[%c0, %c0_0] : memref<16x32xf32, #tpu.memory_space<vmem>>, vector<16x32xf32>
    %1 = arith.truncf %0 : vector<16x32xf32> to vector<16x32xbf16>
    %c0_1 = arith.constant 0 : index
    %c0_2 = arith.constant 0 : index
    %2 = vector.load %arg2[%c0_1, %c0_2] : memref<32x128xbf16, #tpu.memory_space<vmem>>, vector<32x128xbf16>
    %cst = arith.constant dense<0.000000e+00> : vector<16x128xf32>
    %3 = tpu.matmul %1, %2, %cst {dimension_numbers = #tpu.dot_dimension_numbers<[1], [0], [0], [1], [0, 0, 1, 1], [], []>} : vector<16x32xbf16>, vector<32x128xbf16>, vector<16x128xf32> -> vector<16x128xf32>
    %c0_3 = arith.constant 0 : index
    %c0_4 = arith.constant 0 : index
    %4 = vector.load %arg3[%c0_3, %c0_4] : memref<1x128xf32, #tpu.memory_space<vmem>>, vector<1x128xf32>
    %5 = vector.broadcast %4 : vector<1x128xf32> to vector<16x128xf32>
    %6 = arith.addf %3, %5 : vector<16x128xf32>
    %cst_5 = arith.constant 0.000000e+00 : f32
    %7 = vector.broadcast %cst_5 : f32 to vector<16x128xf32>
    %8 = arith.maximumf %6, %7 : vector<16x128xf32>
    %9 = arith.truncf %8 : vector<16x128xf32> to vector<16x128xbf16>
    %c0_6 = arith.constant 0 : index
    %c0_7 = arith.constant 0 : index
    %10 = vector.load %arg4[%c0_6, %c0_7] : memref<128x32xbf16, #tpu.memory_space<vmem>>, vector<128x32xbf16>
    %cst_8 = arith.constant dense<0.000000e+00> : vector<16x32xf32>
    %11 = tpu.matmul %9, %10, %cst_8 {dimension_numbers = #tpu.dot_dimension_numbers<[1], [0], [0], [1], [0, 0, 1, 1], [], []>} : vector<16x128xbf16>, vector<128x32xbf16>, vector<16x32xf32> -> vector<16x32xf32>
    %c0_9 = arith.constant 0 : index
    %c0_10 = arith.constant 0 : index
    %12 = vector.load %arg5[%c0_9, %c0_10] : memref<1x32xf32, #tpu.memory_space<vmem>>, vector<1x32xf32>
    %13 = vector.broadcast %12 : vector<1x32xf32> to vector<16x32xf32>
    %14 = arith.addf %11, %13 : vector<16x32xf32>
    %c0_11 = arith.constant 0 : index
    %c0_12 = arith.constant 0 : index
    %15 = vector.load %arg6[%c0_11, %c0_12] : memref<16x32xf32, #tpu.memory_space<vmem>>, vector<16x32xf32>
    tpu.vector_store %arg6[%c0_11, %c0_12], %14 {strides = array<i32>} : memref<16x32xf32, #tpu.memory_space<vmem>>, vector<16x32xf32>,
    return
  }
  func.func @transform_0(%arg0: i32) -> (i32, i32) {
    %c0_i32 = arith.constant 0 : i32
    %c0_i32_0 = arith.constant 0 : i32
    return %arg0, %c0_i32 : i32, i32
  }
  func.func @transform_1(%arg0: i32) -> (i32, i32) {
    %c0_i32 = arith.constant 0 : i32
    %c0_i32_0 = arith.constant 0 : i32
    %c0_i32_1 = arith.constant 0 : i32
    return %c0_i32, %c0_i32_0 : i32, i32
  }
  func.func @transform_2(%arg0: i32) -> (i32, i32) {
    %c0_i32 = arith.constant 0 : i32
    %c0_i32_0 = arith.constant 0 : i32
    %c0_i32_1 = arith.constant 0 : i32
    return %c0_i32, %c0_i32_0 : i32, i32
  }
  func.func @transform_3(%arg0: i32) -> (i32, i32) {
    %c0_i32 = arith.constant 0 : i32
    %c0_i32_0 = arith.constant 0 : i32
    %c0_i32_1 = arith.constant 0 : i32
    return %c0_i32, %c0_i32_0 : i32, i32
  }
  func.func @transform_4(%arg0: i32) -> (i32, i32) {
    %c0_i32 = arith.constant 0 : i32
    %c0_i32_0 = arith.constant 0 : i32
    %c0_i32_1 = arith.constant 0 : i32
    return %c0_i32, %c0_i32_0 : i32, i32
  }
  func.func @transform_5(%arg0: i32) -> (i32, i32) {
    %c0_i32 = arith.constant 0 : i32
    %c0_i32_0 = arith.constant 0 : i32
    return %arg0, %c0_i32 : i32, i32
  }
}

module attributes {stable_mosaic.version = 11 : i64} {
  func.func @_linear_kernel(%arg0: i32, %arg1: i32, %arg2: i32, %arg3: memref<16x32xf32, #tpu.memory_space<vmem>>, %arg4: memref<32x64xbf16, #tpu.memory_space<vmem>>, %arg5: memref<1x64xf32, #tpu.memory_space<vmem>>, %arg6: memref<16x64xf32, #tpu.memory_space<vmem>>, %arg7: memref<16x64xf32, #tpu.memory_space<vmem>>) attributes {dimension_semantics = [#tpu.dimension_semantics<parallel>, #tpu.dimension_semantics<parallel>, #tpu.dimension_semantics<arbitrary>], iteration_bounds = array<i64: 1, 1, 1>, scalar_prefetch = 0 : i64, scratch_operands = 1 : i64, tpu.core_type = #tpu.core_type<tc>, window_params = [{transform_indices = @transform_0, window_bounds = array<i64: 16, 32>}, {transform_indices = @transform_1, window_bounds = array<i64: 32, 64>}, {transform_indices = @transform_2, window_bounds = array<i64: 1, 64>}, {transform_indices = @transform_3, window_bounds = array<i64: 16, 64>}]} {
    %c0_i32 = arith.constant 0 : i32
    %0 = arith.cmpi eq, %arg2, %c0_i32 : i32
    %1 = arith.extui %0 : i1 to i32
    %c0_i32_0 = arith.constant 0 : i32
    %2 = arith.cmpi ne, %1, %c0_i32_0 : i32
    scf.if %2 {
      %cst_10 = arith.constant 0.000000e+00 : f32
      %13 = vector.broadcast %cst_10 : f32 to vector<16x64xf32>
      %c0_11 = arith.constant 0 : index
      %c0_12 = arith.constant 0 : index
      %14 = vector.load %arg7[%c0_11, %c0_12] : memref<16x64xf32, #tpu.memory_space<vmem>>, vector<16x64xf32>
      tpu.vector_store %arg7[%c0_11, %c0_12], %13 {strides = array<i32>} : memref<16x64xf32, #tpu.memory_space<vmem>>, vector<16x64xf32>,
    } else {
    }
    %c0 = arith.constant 0 : index
    %c0_1 = arith.constant 0 : index
    %3 = vector.load %arg7[%c0, %c0_1] : memref<16x64xf32, #tpu.memory_space<vmem>>, vector<16x64xf32>
    %c0_2 = arith.constant 0 : index
    %c0_3 = arith.constant 0 : index
    %4 = vector.load %arg3[%c0_2, %c0_3] : memref<16x32xf32, #tpu.memory_space<vmem>>, vector<16x32xf32>
    %5 = arith.truncf %4 : vector<16x32xf32> to vector<16x32xbf16>
    %c0_4 = arith.constant 0 : index
    %c0_5 = arith.constant 0 : index
    %6 = vector.load %arg4[%c0_4, %c0_5] : memref<32x64xbf16, #tpu.memory_space<vmem>>, vector<32x64xbf16>
    %cst = arith.constant dense<0.000000e+00> : vector<16x64xf32>
    %7 = tpu.matmul %5, %6, %cst {dimension_numbers = #tpu.dot_dimension_numbers<[1], [0], [0], [1], [0, 0, 1, 1], [], []>} : vector<16x32xbf16>, vector<32x64xbf16>, vector<16x64xf32> -> vector<16x64xf32>
    %8 = arith.addf %3, %7 : vector<16x64xf32>
    %c0_6 = arith.constant 0 : index
    %c0_7 = arith.constant 0 : index
    %9 = vector.load %arg7[%c0_6, %c0_7] : memref<16x64xf32, #tpu.memory_space<vmem>>, vector<16x64xf32>
    tpu.vector_store %arg7[%c0_6, %c0_7], %8 {strides = array<i32>} : memref<16x64xf32, #tpu.memory_space<vmem>>, vector<16x64xf32>,
    %c0_i32_8 = arith.constant 0 : i32
    %10 = arith.cmpi eq, %arg2, %c0_i32_8 : i32
    %11 = arith.extui %10 : i1 to i32
    %c0_i32_9 = arith.constant 0 : i32
    %12 = arith.cmpi ne, %11, %c0_i32_9 : i32
    scf.if %12 {
      %c0_10 = arith.constant 0 : index
      %c0_11 = arith.constant 0 : index
      %13 = vector.load %arg7[%c0_10, %c0_11] : memref<16x64xf32, #tpu.memory_space<vmem>>, vector<16x64xf32>
      %c0_12 = arith.constant 0 : index
      %c0_13 = arith.constant 0 : index
      %14 = vector.load %arg5[%c0_12, %c0_13] : memref<1x64xf32, #tpu.memory_space<vmem>>, vector<1x64xf32>
      %15 = vector.broadcast %14 : vector<1x64xf32> to vector<16x64xf32>
      %16 = arith.addf %13, %15 : vector<16x64xf32>
      %c0_14 = arith.constant 0 : index
      %c0_15 = arith.constant 0 : index
      %17 = vector.load %arg6[%c0_14, %c0_15] : memref<16x64xf32, #tpu.memory_space<vmem>>, vector<16x64xf32>
      tpu.vector_store %arg6[%c0_14, %c0_15], %16 {strides = array<i32>} : memref<16x64xf32, #tpu.memory_space<vmem>>, vector<16x64xf32>,
    } else {
    }
    return
  }
  func.func @transform_0(%arg0: i32, %arg1: i32, %arg2: i32) -> (i32, i32) {
    %c0_i32 = arith.constant 0 : i32
    return %arg0, %arg2 : i32, i32
  }
  func.func @transform_1(%arg0: i32, %arg1: i32, %arg2: i32) -> (i32, i32) {
    %c0_i32 = arith.constant 0 : i32
    return %arg2, %arg1 : i32, i32
  }
  func.func @transform_2(%arg0: i32, %arg1: i32, %arg2: i32) -> (i32, i32) {
    %c0_i32 = arith.constant 0 : i32
    %c0_i32_0 = arith.constant 0 : i32
    return %c0_i32, %arg1 : i32, i32
  }
  func.func @transform_3(%arg0: i32, %arg1: i32, %arg2: i32) -> (i32, i32) {
    %c0_i32 = arith.constant 0 : i32
    return %arg0, %arg1 : i32, i32
  }
}

module attributes {stable_mosaic.version = 11 : i64} {
  func.func @_ln_kernel(%arg0: i32, %arg1: memref<16x32xf32, #tpu.memory_space<vmem>>, %arg2: memref<1x32xf32, #tpu.memory_space<vmem>>, %arg3: memref<1x32xf32, #tpu.memory_space<vmem>>, %arg4: memref<16x32xf32, #tpu.memory_space<vmem>>) attributes {dimension_semantics = [#tpu.dimension_semantics<parallel>], iteration_bounds = array<i64: 1>, scalar_prefetch = 0 : i64, scratch_operands = 0 : i64, tpu.core_type = #tpu.core_type<tc>, window_params = [{transform_indices = @transform_0, window_bounds = array<i64: 16, 32>}, {pipeline_mode = #tpu.pipeline_mode<synchronous>, transform_indices = @transform_1, window_bounds = array<i64: 1, 32>}, {pipeline_mode = #tpu.pipeline_mode<synchronous>, transform_indices = @transform_2, window_bounds = array<i64: 1, 32>}, {transform_indices = @transform_3, window_bounds = array<i64: 16, 32>}]} {
    %c0 = arith.constant 0 : index
    %c0_0 = arith.constant 0 : index
    %0 = vector.load %arg1[%c0, %c0_0] : memref<16x32xf32, #tpu.memory_space<vmem>>, vector<16x32xf32>
    %cst = arith.constant dense<0.000000e+00> : vector<16xf32>
    %1 = vector.multi_reduction <add>, %0, %cst [1] : vector<16x32xf32> to vector<16xf32>
    %2 = vector.shape_cast %1 : vector<16xf32> to vector<16x1xf32>
    %cst_1 = arith.constant 3.200000e+01 : f32
    %3 = vector.broadcast %cst_1 : f32 to vector<16x1xf32>
    %4 = arith.divf %2, %3 : vector<16x1xf32>
    %5 = vector.broadcast %4 : vector<16x1xf32> to vector<16x32xf32>
    %6 = arith.subf %0, %5 : vector<16x32xf32>
    %7 = arith.mulf %6, %6 : vector<16x32xf32>
    %cst_2 = arith.constant dense<0.000000e+00> : vector<16xf32>
    %8 = vector.multi_reduction <add>, %7, %cst_2 [1] : vector<16x32xf32> to vector<16xf32>
    %9 = vector.shape_cast %8 : vector<16xf32> to vector<16x1xf32>
    %cst_3 = arith.constant 3.200000e+01 : f32
    %10 = vector.broadcast %cst_3 : f32 to vector<16x1xf32>
    %11 = arith.divf %9, %10 : vector<16x1xf32>
    %12 = vector.broadcast %4 : vector<16x1xf32> to vector<16x32xf32>
    %13 = arith.subf %0, %12 : vector<16x32xf32>
    %cst_4 = arith.constant 9.99999974E-6 : f32
    %14 = vector.broadcast %cst_4 : f32 to vector<16x1xf32>
    %15 = arith.addf %11, %14 : vector<16x1xf32>
    %16 = math.rsqrt %15 : vector<16x1xf32>
    %17 = vector.broadcast %16 : vector<16x1xf32> to vector<16x32xf32>
    %18 = arith.mulf %13, %17 : vector<16x32xf32>
    %c0_5 = arith.constant 0 : index
    %c0_6 = arith.constant 0 : index
    %19 = vector.load %arg2[%c0_5, %c0_6] : memref<1x32xf32, #tpu.memory_space<vmem>>, vector<1x32xf32>
    %20 = vector.broadcast %19 : vector<1x32xf32> to vector<16x32xf32>
    %21 = arith.mulf %18, %20 : vector<16x32xf32>
    %c0_7 = arith.constant 0 : index
    %c0_8 = arith.constant 0 : index
    %22 = vector.load %arg3[%c0_7, %c0_8] : memref<1x32xf32, #tpu.memory_space<vmem>>, vector<1x32xf32>
    %23 = vector.broadcast %22 : vector<1x32xf32> to vector<16x32xf32>
    %24 = arith.addf %21, %23 : vector<16x32xf32>
    %c0_9 = arith.constant 0 : index
    %c0_10 = arith.constant 0 : index
    %25 = vector.load %arg4[%c0_9, %c0_10] : memref<16x32xf32, #tpu.memory_space<vmem>>, vector<16x32xf32>
    tpu.vector_store %arg4[%c0_9, %c0_10], %24 {strides = array<i32>} : memref<16x32xf32, #tpu.memory_space<vmem>>, vector<16x32xf32>,
    return
  }
  func.func @transform_0(%arg0: i32) -> (i32, i32) {
    %c0_i32 = arith.constant 0 : i32
    %c0_i32_0 = arith.constant 0 : i32
    return %arg0, %c0_i32 : i32, i32
  }
  func.func @transform_1(%arg0: i32) -> (i32, i32) {
    %c0_i32 = arith.constant 0 : i32
    %c0_i32_0 = arith.constant 0 : i32
    %c0_i32_1 = arith.constant 0 : i32
    return %c0_i32, %c0_i32_0 : i32, i32
  }
  func.func @transform_2(%arg0: i32) -> (i32, i32) {
    %c0_i32 = arith.constant 0 : i32
    %c0_i32_0 = arith.constant 0 : i32
    %c0_i32_1 = arith.constant 0 : i32
    return %c0_i32, %c0_i32_0 : i32, i32
  }
  func.func @transform_3(%arg0: i32) -> (i32, i32) {
    %c0_i32 = arith.constant 0 : i32
    %c0_i32_0 = arith.constant 0 : i32
    return %arg0, %c0_i32 : i32, i32
  }
}

module attributes {stable_mosaic.version = 11 : i64} {
  func.func @_attention_kernel(%arg0: i32, %arg1: memref<1x4x8x8xf32, #tpu.memory_space<vmem>>, %arg2: memref<1x4x8x8xf32, #tpu.memory_space<vmem>>, %arg3: memref<1x4x8x8xf32, #tpu.memory_space<vmem>>, %arg4: memref<1x4x8x8xf32, #tpu.memory_space<vmem>>) attributes {dimension_semantics = [#tpu.dimension_semantics<parallel>], iteration_bounds = array<i64: 2>, scalar_prefetch = 0 : i64, scratch_operands = 0 : i64, tpu.core_type = #tpu.core_type<tc>, window_params = [{transform_indices = @transform_0, window_bounds = array<i64: 1, 4, 8, 8>}, {transform_indices = @transform_1, window_bounds = array<i64: 1, 4, 8, 8>}, {transform_indices = @transform_2, window_bounds = array<i64: 1, 4, 8, 8>}, {transform_indices = @transform_3, window_bounds = array<i64: 1, 4, 8, 8>}]} {
    %c0 = arith.constant 0 : index
    %c0_0 = arith.constant 0 : index
    %c0_1 = arith.constant 0 : index
    %c0_2 = arith.constant 0 : index
    %0 = vector.load %arg1[%c0, %c0_0, %c0_1, %c0_2] : memref<1x4x8x8xf32, #tpu.memory_space<vmem>>, vector<1x4x8x8xf32>
    %1 = vector.shape_cast %0 : vector<1x4x8x8xf32> to vector<4x8x8xf32>
    %cst = arith.constant 0.353553385 : f32
    %2 = vector.broadcast %cst : f32 to vector<4x8x8xf32>
    %3 = arith.mulf %1, %2 : vector<4x8x8xf32>
    %4 = arith.truncf %3 : vector<4x8x8xf32> to vector<4x8x8xbf16>
    %c0_3 = arith.constant 0 : index
    %c0_4 = arith.constant 0 : index
    %c0_5 = arith.constant 0 : index
    %c0_6 = arith.constant 0 : index
    %5 = vector.load %arg2[%c0_3, %c0_4, %c0_5, %c0_6] : memref<1x4x8x8xf32, #tpu.memory_space<vmem>>, vector<1x4x8x8xf32>
    %6 = vector.shape_cast %5 : vector<1x4x8x8xf32> to vector<4x8x8xf32>
    %7 = arith.truncf %6 : vector<4x8x8xf32> to vector<4x8x8xbf16>
    %c0_7 = arith.constant 0 : index
    %c0_8 = arith.constant 0 : index
    %c0_9 = arith.constant 0 : index
    %c0_10 = arith.constant 0 : index
    %8 = vector.load %arg3[%c0_7, %c0_8, %c0_9, %c0_10] : memref<1x4x8x8xf32, #tpu.memory_space<vmem>>, vector<1x4x8x8xf32>
    %9 = vector.shape_cast %8 : vector<1x4x8x8xf32> to vector<4x8x8xf32>
    %10 = arith.truncf %9 : vector<4x8x8xf32> to vector<4x8x8xbf16>
    "tpu.trace_start"() <{level = 10 : i32, message = "hqd,hkd->hqk"}> : () -> ()
    %cst_11 = arith.constant dense<0.000000e+00> : vector<4x8x8xf32>
    %11 = tpu.matmul %4, %7, %cst_11 {dimension_numbers = #tpu.dot_dimension_numbers<[2], [2], [1], [1], [0, 0, 0, 1, 1, 1], [0], [0]>} : vector<4x8x8xbf16>, vector<4x8x8xbf16>, vector<4x8x8xf32> -> vector<4x8x8xf32>
    "tpu.trace_stop"() : () -> ()
    %cst_12 = arith.constant dense<0xFF800000> : vector<4x8xf32>
    %12 = vector.multi_reduction <maximumf>, %11, %cst_12 [2] : vector<4x8x8xf32> to vector<4x8xf32>
    %13 = vector.shape_cast %12 : vector<4x8xf32> to vector<4x8x1xf32>
    %14 = vector.broadcast %13 : vector<4x8x1xf32> to vector<4x8x8xf32>
    %15 = arith.subf %11, %14 : vector<4x8x8xf32>
    %16 = math.exp %15 : vector<4x8x8xf32>
    %cst_13 = arith.constant dense<0.000000e+00> : vector<4x8xf32>
    %17 = vector.multi_reduction <add>, %16, %cst_13 [2] : vector<4x8x8xf32> to vector<4x8xf32>
    %18 = vector.shape_cast %17 : vector<4x8xf32> to vector<4x8x1xf32>
    %19 = tpu.reciprocal %18 {approx = true} : vector<4x8x1xf32> -> vector<4x8x1xf32>
    %20 = vector.broadcast %19 : vector<4x8x1xf32> to vector<4x8x8xf32>
    %21 = arith.mulf %16, %20 : vector<4x8x8xf32>
    %22 = arith.truncf %21 : vector<4x8x8xf32> to vector<4x8x8xbf16>
    "tpu.trace_start"() <{level = 10 : i32, message = "hqk,hkd->hqd"}> : () -> ()
    %cst_14 = arith.constant dense<0.000000e+00> : vector<4x8x8xf32>
    %23 = tpu.matmul %22, %10, %cst_14 {dimension_numbers = #tpu.dot_dimension_numbers<[2], [1], [1], [2], [0, 0, 0, 1, 1, 2], [0], [0]>} : vector<4x8x8xbf16>, vector<4x8x8xbf16>, vector<4x8x8xf32> -> vector<4x8x8xf32>
    "tpu.trace_stop"() : () -> ()
    %c0_15 = arith.constant 0 : index
    %c0_16 = arith.constant 0 : index
    %c0_17 = arith.constant 0 : index
    %c0_18 = arith.constant 0 : index
    %24 = vector.load %arg4[%c0_15, %c0_16, %c0_17, %c0_18] : memref<1x4x8x8xf32, #tpu.memory_space<vmem>>, vector<1x4x8x8xf32>
    %25 = vector.shape_cast %24 : vector<1x4x8x8xf32> to vector<4x8x8xf32>
    %26 = vector.shape_cast %23 : vector<4x8x8xf32> to vector<1x4x8x8xf32>
    tpu.vector_store %arg4[%c0_15, %c0_16, %c0_17, %c0_18], %26 {strides = array<i32>} : memref<1x4x8x8xf32, #tpu.memory_space<vmem>>, vector<1x4x8x8xf32>,
    return
  }
  func.func @transform_0(%arg0: i32) -> (i32, i32, i32, i32) {
    %c0_i32 = arith.constant 0 : i32
    %c0_i32_0 = arith.constant 0 : i32
    %c0_i32_1 = arith.constant 0 : i32
    %c0_i32_2 = arith.constant 0 : i32
    return %arg0, %c0_i32, %c0_i32_0, %c0_i32_1 : i32, i32, i32, i32
  }
  func.func @transform_1(%arg0: i32) -> (i32, i32, i32, i32) {
    %c0_i32 = arith.constant 0 : i32
    %c0_i32_0 = arith.constant 0 : i32
    %c0_i32_1 = arith.constant 0 : i32
    %c0_i32_2 = arith.constant 0 : i32
    return %arg0, %c0_i32, %c0_i32_0, %c0_i32_1 : i32, i32, i32, i32
  }
  func.func @transform_2(%arg0: i32) -> (i32, i32, i32, i32) {
    %c0_i32 = arith.constant 0 : i32
    %c0_i32_0 = arith.constant 0 : i32
    %c0_i32_1 = arith.constant 0 : i32
    %c0_i32_2 = arith.constant 0 : i32
    return %arg0, %c0_i32, %c0_i32_0, %c0_i32_1 : i32, i32, i32, i32
  }
  func.func @transform_3(%arg0: i32) -> (i32, i32, i32, i32) {
    %c0_i32 = arith.constant 0 : i32
    %c0_i32_0 = arith.constant 0 : i32
    %c0_i32_1 = arith.constant 0 : i32
    %c0_i32_2 = arith.constant 0 : i32
    return %arg0, %c0_i32, %c0_i32_0, %c0_i32_1 : i32, i32, i32, i32
  }
}

module attributes {stable_mosaic.version = 11 : i64} {
  func.func @_linear_kernel(%arg0: i32, %arg1: i32, %arg2: i32, %arg3: memref<16x32xf32, #tpu.memory_space<vmem>>, %arg4: memref<32x41xbf16, #tpu.memory_space<vmem>>, %arg5: memref<1x41xf32, #tpu.memory_space<vmem>>, %arg6: memref<16x41xf32, #tpu.memory_space<vmem>>, %arg7: memref<16x41xf32, #tpu.memory_space<vmem>>) attributes {dimension_semantics = [#tpu.dimension_semantics<parallel>, #tpu.dimension_semantics<parallel>, #tpu.dimension_semantics<arbitrary>], iteration_bounds = array<i64: 1, 1, 1>, scalar_prefetch = 0 : i64, scratch_operands = 1 : i64, tpu.core_type = #tpu.core_type<tc>, window_params = [{transform_indices = @transform_0, window_bounds = array<i64: 16, 32>}, {transform_indices = @transform_1, window_bounds = array<i64: 32, 41>}, {transform_indices = @transform_2, window_bounds = array<i64: 1, 41>}, {transform_indices = @transform_3, window_bounds = array<i64: 16, 41>}]} {
    %c0_i32 = arith.constant 0 : i32
    %0 = arith.cmpi eq, %arg2, %c0_i32 : i32
    %1 = arith.extui %0 : i1 to i32
    %c0_i32_0 = arith.constant 0 : i32
    %2 = arith.cmpi ne, %1, %c0_i32_0 : i32
    scf.if %2 {
      %cst_10 = arith.constant 0.000000e+00 : f32
      %13 = vector.broadcast %cst_10 : f32 to vector<16x41xf32>
      %c0_11 = arith.constant 0 : index
      %c0_12 = arith.constant 0 : index
      %14 = vector.load %arg7[%c0_11, %c0_12] : memref<16x41xf32, #tpu.memory_space<vmem>>, vector<16x41xf32>
      tpu.vector_store %arg7[%c0_11, %c0_12], %13 {strides = array<i32>} : memref<16x41xf32, #tpu.memory_space<vmem>>, vector<16x41xf32>,
    } else {
    }
    %c0 = arith.constant 0 : index
    %c0_1 = arith.constant 0 : index
    %3 = vector.load %arg7[%c0, %c0_1] : memref<16x41xf32, #tpu.memory_space<vmem>>, vector<16x41xf32>
    %c0_2 = arith.constant 0 : index
    %c0_3 = arith.constant 0 : index
    %4 = vector.load %arg3[%c0_2, %c0_3] : memref<16x32xf32, #tpu.memory_space<vmem>>, vector<16x32xf32>
    %5 = arith.truncf %4 : vector<16x32xf32> to vector<16x32xbf16>
    %c0_4 = arith.constant 0 : index
    %c0_5 = arith.constant 0 : index
    %6 = vector.load %arg4[%c0_4, %c0_5] : memref<32x41xbf16, #tpu.memory_space<vmem>>, vector<32x41xbf16>
    %cst = arith.constant dense<0.000000e+00> : vector<16x41xf32>
    %7 = tpu.matmul %5, %6, %cst {dimension_numbers = #tpu.dot_dimension_numbers<[1], [0], [0], [1], [0, 0, 1, 1], [], []>} : vector<16x32xbf16>, vector<32x41xbf16>, vector<16x41xf32> -> vector<16x41xf32>
    %8 = arith.addf %3, %7 : vector<16x41xf32>
    %c0_6 = arith.constant 0 : index
    %c0_7 = arith.constant 0 : index
    %9 = vector.load %arg7[%c0_6, %c0_7] : memref<16x41xf32, #tpu.memory_space<vmem>>, vector<16x41xf32>
    tpu.vector_store %arg7[%c0_6, %c0_7], %8 {strides = array<i32>} : memref<16x41xf32, #tpu.memory_space<vmem>>, vector<16x41xf32>,
    %c0_i32_8 = arith.constant 0 : i32
    %10 = arith.cmpi eq, %arg2, %c0_i32_8 : i32
    %11 = arith.extui %10 : i1 to i32
    %c0_i32_9 = arith.constant 0 : i32
    %12 = arith.cmpi ne, %11, %c0_i32_9 : i32
    scf.if %12 {
      %c0_10 = arith.constant 0 : index
      %c0_11 = arith.constant 0 : index
      %13 = vector.load %arg7[%c0_10, %c0_11] : memref<16x41xf32, #tpu.memory_space<vmem>>, vector<16x41xf32>
      %c0_12 = arith.constant 0 : index
      %c0_13 = arith.constant 0 : index
      %14 = vector.load %arg5[%c0_12, %c0_13] : memref<1x41xf32, #tpu.memory_space<vmem>>, vector<1x41xf32>
      %15 = vector.broadcast %14 : vector<1x41xf32> to vector<16x41xf32>
      %16 = arith.addf %13, %15 : vector<16x41xf32>
      %c0_14 = arith.constant 0 : index
      %c0_15 = arith.constant 0 : index
      %17 = vector.load %arg6[%c0_14, %c0_15] : memref<16x41xf32, #tpu.memory_space<vmem>>, vector<16x41xf32>
      tpu.vector_store %arg6[%c0_14, %c0_15], %16 {strides = array<i32>} : memref<16x41xf32, #tpu.memory_space<vmem>>, vector<16x41xf32>,
    } else {
    }
    return
  }
  func.func @transform_0(%arg0: i32, %arg1: i32, %arg2: i32) -> (i32, i32) {
    %c0_i32 = arith.constant 0 : i32
    return %arg0, %arg2 : i32, i32
  }
  func.func @transform_1(%arg0: i32, %arg1: i32, %arg2: i32) -> (i32, i32) {
    %c0_i32 = arith.constant 0 : i32
    return %arg2, %arg1 : i32, i32
  }
  func.func @transform_2(%arg0: i32, %arg1: i32, %arg2: i32) -> (i32, i32) {
    %c0_i32 = arith.constant 0 : i32
    %c0_i32_0 = arith.constant 0 : i32
    return %c0_i32, %arg1 : i32, i32
  }
  func.func @transform_3(%arg0: i32, %arg1: i32, %arg2: i32) -> (i32, i32) {
    %c0_i32 = arith.constant 0 : i32
    return %arg0, %arg1 : i32, i32
  }
}

</mosaic_0001>

<llo_original>
// kernel: transformer_forward.50
$region0: #{transformer_forward.50}
  #allocation0 [shape = 'u32[]', space=smem, size = 0x4, offset = 0x4, fixed_abs, tag = 'smem constant byte address 0x4 - core index']
  #allocation1 [shape = 'u32[144,128]{1,0:T(1,128)}', space=vmem, size = 0x12000, scoped, tag = 'internal scratch']
  #allocation2 [shape = 'f32[16,96]{1,0:T(8,128)}', space=vmem, size = 0x2000, scoped, tag = 'scratch operand']
  %s0 = inlined_call_operand.vmem [shape: f32[16,32], index: 0, kind: input, shape index: {}]
  %s1 = inlined_call_operand.vmem [shape: bf16[32,96], index: 1, kind: input, shape index: {}]
  %s2 = inlined_call_operand.vmem [shape: f32[1,96], index: 2, kind: input, shape index: {}]
  %s3 = inlined_call_operand.vmem [shape: f32[16,96], index: 3, kind: output, shape index: {}]
  %s4 = sld [smem:[#allocation0]]
  $region30: #{transformer_forward.50} parent=0
    _
  %s6 = ssub.s32 1, %s4
  %s7 = scalar_select 0, %s6, %s4
  // Predicated region
  $region2: #{transformer_forward.50} parent=0 // pred_check
    _
  $region3: #{transformer_forward.50} parent=0 // pred_check_branch
    %9 = sbr.rel (0) target = $region5
  $region4: #{transformer_forward.50} parent=0 // pred_region
    _
  $region5: #{transformer_forward.50} parent=0 // pred_fallthru
    _
  // Predicated region
  $region6: #{transformer_forward.50} parent=0 // pred_check
    _
  $region7: #{transformer_forward.50} parent=0 // pred_check_branch
    %11 = sbr.rel (0) target = $region9
  $region8: #{transformer_forward.50} parent=0 // pred_region
    _
  $region9: #{transformer_forward.50} parent=0 // pred_fallthru
    _
  // Predicated region
  $region10: #{transformer_forward.50} parent=0 // pred_check
    _
  $region11: #{transformer_forward.50} parent=0 // pred_check_branch
    %13 = sbr.rel (0) target = $region13
  $region12: #{transformer_forward.50} parent=0 // pred_region
    _
  $region13: #{transformer_forward.50} parent=0 // pred_fallthru
    _
  %p15 = scmp.eq.s32.totalorder 0, 0
  // Predicated region
  $region14: #{transformer_forward.50} parent=0 // pred_check
    %p16 = pneg %p15
  $region15: #{transformer_forward.50} parent=0 // pred_check_branch
    %18 = sbr.rel (%p16) target = $region17
  $region16: #{transformer_forward.50} parent=0 // pred_region
    %vm19 = vcmask 785408
    %20 = vst.msk [vmem:[#allocation2] sm:$0xff] %vm19, 0.0
    %21 = vst.msk [vmem:[#allocation2 + $0x8] sm:$0xff] %vm19, 0.0
  $region17: #{transformer_forward.50} parent=0 // pred_fallthru
    _
  %v22 = vld [vmem:[#allocation2] sm:$0xff]
  %v23 = vld [vmem:[#allocation2 + $0x8] sm:$0xff]
  %v24 = vld [vmem:[%s0] sm:$0xff]
  %v25 = vld [vmem:[%s0 + $0x8] sm:$0xff]
  %v26 = vpack.c.bf16 %v25, %v24
  %v27 = vld [vmem:[%s1] sm:$0xf]
  %v28 = vld [vmem:[%s1 + $0x4] sm:$0xf]
  %v29 = vld [vmem:[%s1 + $0x8] sm:$0xf]
  %v30 = vld [vmem:[%s1 + $0xc] sm:$0xf]
  %v35 = vunpack.c.l.b16 %v27
  %v36 = vunpack.c.l.b16 %v28
  %v37 = vunpack.c.l.b16 %v29
  %v38 = vunpack.c.l.b16 %v30
  %v39 = vpack.c.b16 %v36, %v35
  %v40 = vpack.c.b16 %v38, %v37
  %vm43 = vcmask 261120
  %v45 = vsel %vm43, %v26, 0
  %47 = vmatprep.subr.bf16.mxu0 0
  %48 = vmatpush1.bf16.msra.mxu0 %v39
  %49 = vmatprep.subr.bf16.mxu0 0
  %50 = vmatpush1.bf16.msra.mxu0 %v40
  %51 = vmatprep.subr.bf16.mxu0 0
  %52 = vmatpush1.bf16.msra.mxu0 0
  %53 = vmatprep.subr.bf16.mxu0 0
  %54 = vmatpush1.bf16.msra.mxu0 0
  %55 = vmatprep.subr.bf16.mxu0 0
  %56 = vmatpush1.bf16.msra.mxu0 0
  %57 = vmatprep.subr.bf16.mxu0 0
  %58 = vmatpush1.bf16.msra.mxu0 0
  %59 = vmatprep.subr.bf16.mxu0 0
  %60 = vmatpush1.bf16.msra.mxu0 0
  %61 = vmatprep.subr.bf16.mxu0 0
  %62 = vmatpush1.bf16.msra.mxu0 0
  %63 = vmatprep.subr.bf16.mxu0 0
  %64 = vmatpush1.bf16.msra.mxu0 0
  %65 = vmatprep.subr.bf16.mxu0 0
  %66 = vmatpush1.bf16.msra.mxu0 0
  %67 = vmatprep.subr.bf16.mxu0 0
  %68 = vmatpush1.bf16.msra.mxu0 0
  %69 = vmatprep.subr.bf16.mxu0 0
  %70 = vmatpush1.bf16.msra.mxu0 0
  %71 = vmatprep.subr.bf16.mxu0 0
  %72 = vmatpush1.bf16.msra.mxu0 0
  %73 = vmatprep.subr.bf16.mxu0 0
  %74 = vmatpush1.bf16.msra.mxu0 0
  %75 = vmatprep.subr.bf16.mxu0 0
  %76 = vmatpush1.bf16.msra.mxu0 0
  %77 = vmatprep.subr.bf16.mxu0 0
  %78 = vmatpush1.bf16.msra.mxu0 0
  %79 = vmatprep.mubr.bf16.mxu0 0
  %80 = vmatmul.mubr.bf16.gmra.mrb[0].mxu0 %v45
  %v81 = vpop.f32.mrb[0].mxu0
  %v82 = vadd.f32 0.0, %v81
  %v83 = vpop.f32.mrb[0].mxu0
  %v84 = vpop.f32.mrb[0].mxu0
  %v85 = vadd.f32 0.0, %v84
  %v86 = vpop.f32.mrb[0].mxu0
  %87 = vdwg.mxu0
  %v88 = vadd.f32 %v22, %v82
  %v89 = vadd.f32 %v23, %v85
  %vm90 = vcmask 785408
  %91 = vst.msk [vmem:[#allocation2] sm:$0xff] %vm90, %v88
  %92 = vst.msk [vmem:[#allocation2 + $0x8] sm:$0xff] %vm90, %v89
  // Predicated region
  $region18: #{transformer_forward.50} parent=0 // pred_check
    %p93 = pneg %p15
  $region19: #{transformer_forward.50} parent=0 // pred_check_branch
    %95 = sbr.rel (%p93) target = $region21
  $region20: #{transformer_forward.50} parent=0 // pred_region
    %v96 = vld [vmem:[#allocation2] sm:$0xff]
    %v97 = vld [vmem:[#allocation2 + $0x8] sm:$0xff]
    %v98 = vld [vmem:[%s2] sm:$0x1]
    %v100 = vlaneseq
    %v101 = vshrl.u32 %v100, 7
    %v102 = vsub.s32 0, %v101
    %v103 = vrot.slane %v98, %v102
    %v105 = vadd.f32 %v96, %v103
    %v106 = vadd.f32 %v97, %v103
    %107 = vst.msk [vmem:[%s3] sm:$0xff] %vm90, %v105
    %108 = vst.msk [vmem:[%s3 + $0x8] sm:$0xff] %vm90, %v106
  $region21: #{transformer_forward.50} parent=0 // pred_fallthru
    _
  // Predicated region
  $region22: #{transformer_forward.50} parent=0 // pred_check
    _
  $region23: #{transformer_forward.50} parent=0 // pred_check_branch
    %110 = sbr.rel (0) target = $region25
  $region24: #{transformer_forward.50} parent=0 // pred_region
    _
  $region25: #{transformer_forward.50} parent=0 // pred_fallthru
    _
  // Predicated region
  $region26: #{transformer_forward.50} parent=0 // pred_check
    _
  $region27: #{transformer_forward.50} parent=0 // pred_check_branch
    %112 = sbr.rel (0) target = $region29
  $region28: #{transformer_forward.50} parent=0 // pred_region
    _
  $region29: #{transformer_forward.50} parent=0 // pred_fallthru
    _

// kernel: transformer_forward.53
$region0: #{transformer_forward.53}
  #allocation0 [shape = 'u32[]', space=smem, size = 0x4, offset = 0x4, fixed_abs, tag = 'smem constant byte address 0x4 - core index']
  #allocation1 [shape = 'u32[144,128]{1,0:T(1,128)}', space=vmem, size = 0x12000, scoped, tag = 'internal scratch']
  %s0 = inlined_call_operand.vmem [shape: f32[16,32], index: 0, kind: input, shape index: {}]
  %s1 = inlined_call_operand.vmem [shape: f32[16,32], index: 1, kind: input, shape index: {}]
  %s2 = inlined_call_operand.vmem [shape: f32[1,32], index: 2, kind: input, shape index: {}]
  %s3 = inlined_call_operand.vmem [shape: f32[1,32], index: 3, kind: input, shape index: {}]
  %s4 = inlined_call_operand.vmem [shape: f32[16,32], index: 4, kind: output, shape index: {}]
  %s5 = sld [smem:[#allocation0]]
  $region26: #{transformer_forward.53} parent=0
    _
  %s7 = ssub.s32 1, %s5
  %s8 = scalar_select 0, %s7, %s5
  // Predicated region
  $region2: #{transformer_forward.53} parent=0 // pred_check
    _
  $region3: #{transformer_forward.53} parent=0 // pred_check_branch
    %10 = sbr.rel (0) target = $region5
  $region4: #{transformer_forward.53} parent=0 // pred_region
    _
  $region5: #{transformer_forward.53} parent=0 // pred_fallthru
    _
  // Predicated region
  $region6: #{transformer_forward.53} parent=0 // pred_check
    _
  $region7: #{transformer_forward.53} parent=0 // pred_check_branch
    %12 = sbr.rel (0) target = $region9
  $region8: #{transformer_forward.53} parent=0 // pred_region
    _
  $region9: #{transformer_forward.53} parent=0 // pred_fallthru
    _
  // Predicated region
  $region10: #{transformer_forward.53} parent=0 // pred_check
    _
  $region11: #{transformer_forward.53} parent=0 // pred_check_branch
    %14 = sbr.rel (0) target = $region13
  $region12: #{transformer_forward.53} parent=0 // pred_region
    _
  $region13: #{transformer_forward.53} parent=0 // pred_fallthru
    _
  // Predicated region
  $region14: #{transformer_forward.53} parent=0 // pred_check
    _
  $region15: #{transformer_forward.53} parent=0 // pred_check_branch
    %16 = sbr.rel (0) target = $region17
  $region16: #{transformer_forward.53} parent=0 // pred_region
    _
  $region17: #{transformer_forward.53} parent=0 // pred_fallthru
    _
  %v17 = vld [vmem:[%s0] sm:$0xff]
  %v18 = vld [vmem:[%s0 + $0x8] sm:$0xff]
  %v19 = vld [vmem:[%s1] sm:$0xff]
  %v20 = vld [vmem:[%s1 + $0x8] sm:$0xff]
  %v21 = vadd.f32 %v17, %v19
  %v22 = vadd.f32 %v18, %v20
  %vm23 = vcmask 261120
  %v24 = vsel %vm23, %v21, 0.0
  %25 = vadd.xlane.f32.xlu0 %v24
  %v26 = vpop.xlane.xlu0 %25
  %v27 = vsel %vm23, %v22, 0.0
  %28 = vadd.xlane.f32.xlu0 %v27
  %v29 = vpop.xlane.xlu0 %28
  %v30 = vrcp.pop 32.0
  %v31 = vmul.f32 %v26, %v30
  %v32 = vmul.f32 %v29, %v30
  %v33 = vsub.f32 %v21, %v31
  %v34 = vsub.f32 %v22, %v32
  %v35 = vmul.f32 %v33, %v33
  %v36 = vmul.f32 %v34, %v34
  %v37 = vsel %vm23, %v35, 0.0
  %38 = vadd.xlane.f32.xlu0 %v37
  %v39 = vpop.xlane.xlu0 %38
  %v40 = vsel %vm23, %v36, 0.0
  %41 = vadd.xlane.f32.xlu0 %v40
  %v42 = vpop.xlane.xlu0 %41
  %v43 = vmul.f32 %v39, %v30
  %v44 = vmul.f32 %v42, %v30
  %v45 = vadd.f32 %v43, 1e-05
  %v46 = vadd.f32 %v44, 1e-05
  %v47 = vrsqrt.pop %v45
  %v48 = vrsqrt.pop %v46
  %v49 = vmul.f32 %v33, %v47
  %v50 = vmul.f32 %v34, %v48
  %v51 = vld [vmem:[%s2] sm:$0x1]
  %v53 = vlaneseq
  %v54 = vshrl.u32 %v53, 7
  %v55 = vsub.s32 0, %v54
  %v56 = vrot.slane %v51, %v55
  %v58 = vmul.f32 %v49, %v56
  %v59 = vmul.f32 %v50, %v56
  %v60 = vld [vmem:[%s3] sm:$0x1]
  %v62 = vlaneseq
  %v63 = vshrl.u32 %v62, 7
  %v64 = vsub.s32 0, %v63
  %v65 = vrot.slane %v60, %v64
  %v67 = vadd.f32 %v58, %v65
  %v68 = vadd.f32 %v59, %v65
  %69 = vst.msk [vmem:[%s4] sm:$0xff] %vm23, %v67
  %70 = vst.msk [vmem:[%s4 + $0x8] sm:$0xff] %vm23, %v68
  // Predicated region
  $region18: #{transformer_forward.53} parent=0 // pred_check
    _
  $region19: #{transformer_forward.53} parent=0 // pred_check_branch
    %72 = sbr.rel (0) target = $region21
  $region20: #{transformer_forward.53} parent=0 // pred_region
    _
  $region21: #{transformer_forward.53} parent=0 // pred_fallthru
    _
  // Predicated region
  $region22: #{transformer_forward.53} parent=0 // pred_check
    _
  $region23: #{transformer_forward.53} parent=0 // pred_check_branch
    %74 = sbr.rel (0) target = $region25
  $region24: #{transformer_forward.53} parent=0 // pred_region
    _
  $region25: #{transformer_forward.53} parent=0 // pred_fallthru
    _

// kernel: transformer_forward.52
$region0: #{transformer_forward.52}
  #allocation0 [shape = 'u32[]', space=smem, size = 0x4, offset = 0x4, fixed_abs, tag = 'smem constant byte address 0x4 - core index']
  #allocation1 [shape = 'u32[144,128]{1,0:T(1,128)}', space=vmem, size = 0x12000, scoped, tag = 'internal scratch']
  #allocation2 [shape = 'f32[16,32]{1,0:T(8,128)}', space=vmem, size = 0x2000, scoped, tag = 'scratch operand']
  %s0 = inlined_call_operand.vmem [shape: f32[16,32], index: 0, kind: input, shape index: {}]
  %s1 = inlined_call_operand.vmem [shape: bf16[32,32], index: 1, kind: input, shape index: {}]
  %s2 = inlined_call_operand.vmem [shape: f32[1,32], index: 2, kind: input, shape index: {}]
  %s3 = inlined_call_operand.vmem [shape: f32[16,32], index: 3, kind: output, shape index: {}]
  %s4 = sld [smem:[#allocation0]]
  $region30: #{transformer_forward.52} parent=0
    _
  %s6 = ssub.s32 1, %s4
  %s7 = scalar_select 0, %s6, %s4
  // Predicated region
  $region2: #{transformer_forward.52} parent=0 // pred_check
    _
  $region3: #{transformer_forward.52} parent=0 // pred_check_branch
    %9 = sbr.rel (0) target = $region5
  $region4: #{transformer_forward.52} parent=0 // pred_region
    _
  $region5: #{transformer_forward.52} parent=0 // pred_fallthru
    _
  // Predicated region
  $region6: #{transformer_forward.52} parent=0 // pred_check
    _
  $region7: #{transformer_forward.52} parent=0 // pred_check_branch
    %11 = sbr.rel (0) target = $region9
  $region8: #{transformer_forward.52} parent=0 // pred_region
    _
  $region9: #{transformer_forward.52} parent=0 // pred_fallthru
    _
  // Predicated region
  $region10: #{transformer_forward.52} parent=0 // pred_check
    _
  $region11: #{transformer_forward.52} parent=0 // pred_check_branch
    %13 = sbr.rel (0) target = $region13
  $region12: #{transformer_forward.52} parent=0 // pred_region
    _
  $region13: #{transformer_forward.52} parent=0 // pred_fallthru
    _
  %p15 = scmp.eq.s32.totalorder 0, 0
  // Predicated region
  $region14: #{transformer_forward.52} parent=0 // pred_check
    %p16 = pneg %p15
  $region15: #{transformer_forward.52} parent=0 // pred_check_branch
    %18 = sbr.rel (%p16) target = $region17
  $region16: #{transformer_forward.52} parent=0 // pred_region
    %vm19 = vcmask 261120
    %20 = vst.msk [vmem:[#allocation2] sm:$0xff] %vm19, 0.0
    %21 = vst.msk [vmem:[#allocation2 + $0x8] sm:$0xff] %vm19, 0.0
  $region17: #{transformer_forward.52} parent=0 // pred_fallthru
    _
  %v22 = vld [vmem:[#allocation2] sm:$0xff]
  %v23 = vld [vmem:[#allocation2 + $0x8] sm:$0xff]
  %v24 = vld [vmem:[%s0] sm:$0xff]
  %v25 = vld [vmem:[%s0 + $0x8] sm:$0xff]
  %v26 = vpack.c.bf16 %v25, %v24
  %v27 = vld [vmem:[%s1] sm:$0xf]
  %v28 = vld [vmem:[%s1 + $0x4] sm:$0xf]
  %v29 = vld [vmem:[%s1 + $0x8] sm:$0xf]
  %v30 = vld [vmem:[%s1 + $0xc] sm:$0xf]
  %v35 = vunpack.c.l.b16 %v27
  %v36 = vunpack.c.l.b16 %v28
  %v37 = vunpack.c.l.b16 %v29
  %v38 = vunpack.c.l.b16 %v30
  %v39 = vpack.c.b16 %v36, %v35
  %v40 = vpack.c.b16 %v38, %v37
  %vm43 = vcmask 261120
  %v45 = vsel %vm43, %v26, 0
  %47 = vmatprep.subr.bf16.mxu0 0
  %48 = vmatpush1.bf16.msra.mxu0 %v39
  %49 = vmatprep.subr.bf16.mxu0 0
  %50 = vmatpush1.bf16.msra.mxu0 %v40
  %51 = vmatprep.subr.bf16.mxu0 0
  %52 = vmatpush1.bf16.msra.mxu0 0
  %53 = vmatprep.subr.bf16.mxu0 0
  %54 = vmatpush1.bf16.msra.mxu0 0
  %55 = vmatprep.subr.bf16.mxu0 0
  %56 = vmatpush1.bf16.msra.mxu0 0
  %57 = vmatprep.subr.bf16.mxu0 0
  %58 = vmatpush1.bf16.msra.mxu0 0
  %59 = vmatprep.subr.bf16.mxu0 0
  %60 = vmatpush1.bf16.msra.mxu0 0
  %61 = vmatprep.subr.bf16.mxu0 0
  %62 = vmatpush1.bf16.msra.mxu0 0
  %63 = vmatprep.subr.bf16.mxu0 0
  %64 = vmatpush1.bf16.msra.mxu0 0
  %65 = vmatprep.subr.bf16.mxu0 0
  %66 = vmatpush1.bf16.msra.mxu0 0
  %67 = vmatprep.subr.bf16.mxu0 0
  %68 = vmatpush1.bf16.msra.mxu0 0
  %69 = vmatprep.subr.bf16.mxu0 0
  %70 = vmatpush1.bf16.msra.mxu0 0
  %71 = vmatprep.subr.bf16.mxu0 0
  %72 = vmatpush1.bf16.msra.mxu0 0
  %73 = vmatprep.subr.bf16.mxu0 0
  %74 = vmatpush1.bf16.msra.mxu0 0
  %75 = vmatprep.subr.bf16.mxu0 0
  %76 = vmatpush1.bf16.msra.mxu0 0
  %77 = vmatprep.subr.bf16.mxu0 0
  %78 = vmatpush1.bf16.msra.mxu0 0
  %79 = vmatprep.mubr.bf16.mxu0 0
  %80 = vmatmul.mubr.bf16.gmra.mrb[0].mxu0 %v45
  %v81 = vpop.f32.mrb[0].mxu0
  %v82 = vadd.f32 0.0, %v81
  %v83 = vpop.f32.mrb[0].mxu0
  %v84 = vpop.f32.mrb[0].mxu0
  %v85 = vadd.f32 0.0, %v84
  %v86 = vpop.f32.mrb[0].mxu0
  %87 = vdwg.mxu0
  %v88 = vadd.f32 %v22, %v82
  %v89 = vadd.f32 %v23, %v85
  %90 = vst.msk [vmem:[#allocation2] sm:$0xff] %vm43, %v88
  %91 = vst.msk [vmem:[#allocation2 + $0x8] sm:$0xff] %vm43, %v89
  // Predicated region
  $region18: #{transformer_forward.52} parent=0 // pred_check
    %p92 = pneg %p15
  $region19: #{transformer_forward.52} parent=0 // pred_check_branch
    %94 = sbr.rel (%p92) target = $region21
  $region20: #{transformer_forward.52} parent=0 // pred_region
    %v95 = vld [vmem:[#allocation2] sm:$0xff]
    %v96 = vld [vmem:[#allocation2 + $0x8] sm:$0xff]
    %v97 = vld [vmem:[%s2] sm:$0x1]
    %v99 = vlaneseq
    %v100 = vshrl.u32 %v99, 7
    %v101 = vsub.s32 0, %v100
    %v102 = vrot.slane %v97, %v101
    %v104 = vadd.f32 %v95, %v102
    %v105 = vadd.f32 %v96, %v102
    %106 = vst.msk [vmem:[%s3] sm:$0xff] %vm43, %v104
    %107 = vst.msk [vmem:[%s3 + $0x8] sm:$0xff] %vm43, %v105
  $region21: #{transformer_forward.52} parent=0 // pred_fallthru
    _
  // Predicated region
  $region22: #{transformer_forward.52} parent=0 // pred_check
    _
  $region23: #{transformer_forward.52} parent=0 // pred_check_branch
    %109 = sbr.rel (0) target = $region25
  $region24: #{transformer_forward.52} parent=0 // pred_region
    _
  $region25: #{transformer_forward.52} parent=0 // pred_fallthru
    _
  // Predicated region
  $region26: #{transformer_forward.52} parent=0 // pred_check
    _
  $region27: #{transformer_forward.52} parent=0 // pred_check_branch
    %111 = sbr.rel (0) target = $region29
  $region28: #{transformer_forward.52} parent=0 // pred_region
    _
  $region29: #{transformer_forward.52} parent=0 // pred_fallthru
    _

// kernel: transformer_forward.51
$region0: #{transformer_forward.51}
  #allocation0 [shape = 'u32[]', space=smem, size = 0x4, offset = 0x4, fixed_abs, tag = 'smem constant byte address 0x4 - core index']
  #allocation1 [shape = 'u32[144,128]{1,0:T(1,128)}', space=vmem, size = 0x12000, scoped, tag = 'internal scratch']
  %s0 = inlined_call_operand.vmem [shape: f32[2,4,8,8], index: 0, kind: input, shape index: {}]
  %s1 = inlined_call_operand.vmem [shape: f32[2,4,8,8], index: 1, kind: input, shape index: {}]
  %s2 = inlined_call_operand.vmem [shape: f32[2,4,8,8], index: 2, kind: input, shape index: {}]
  %s3 = inlined_call_operand.vmem [shape: f32[2,4,8,8], index: 3, kind: output, shape index: {}]
  %s4 = sld [smem:[#allocation0]]
  $region45: #{transformer_forward.51} parent=0
    _
  %s6 = ssub.s32 1, %s4
  %s7 = scalar_select 0, %s6, %s4
  loop: start=0, step=1, limit=4
  $region2: #{transformer_forward.51} parent=0 // loop_pre_header
    _
  $region3: #{transformer_forward.51} parent=0 // loop_header
    %s9 = sphi 0, %s13
    %p10 = scmp.ge.s32.totalorder %s9, 4
    %s19 = sphi 0, %s21
    %s22 = sphi 0, %s19
    %s23 = sphi 0, %s22
    %s39 = sphi 0, %s23
    %s45 = sphi 0, %s47
    %s48 = sphi 0, %s45
    %s49 = sphi 0, %s48
    %s65 = sphi 0, %s49
    %s71 = sphi 0, %s73
    %s74 = sphi 0, %s71
    %s75 = sphi 0, %s74
    %s91 = sphi 0, %s75
    %s97 = sphi 0, %s99
    %s100 = sphi 0, %s97
    %s101 = sphi 0, %s100
    %s117 = sphi 0, %s101
  $region4: #{transformer_forward.51} parent=0 // loop_header_branch
    %12 = sbr.rel (%p10) target = $region8
  $region5: #{transformer_forward.51} parent=0 // loop_body
    %s14 = ssub.s32 %s9, 1
    %s15 = ssub.s32 %s9, 2
    %s16 = sadd.s32 %s9, 1
    %s17 = ssub.s32 %s9, %s16
    %p18 = scmp.eq.s32.totalorder %s17, 0
    %s20 = sadd.s32 %s19, 1
    %s21 = scalar_select %p18, %s19, %s20
    %p24 = pneg %p18
    %p25 = scmp.eq.s32.totalorder %s9, 1
    %p26 = por %p24, %p25
    %p27 = scmp.ne.s32.totalorder %s19, %s22
    %p28 = scmp.eq.s32.totalorder %s9, 0
    %p29 = por %p27, %p28
    %p30 = scmp.ne.s32.totalorder %s19, %s22
    %p31 = scmp.eq.s32.totalorder %s14, 1
    %p32 = por %p30, %p31
    %p33 = scmp.ne.s32.totalorder %s22, %s23
    %p34 = scmp.eq.s32.totalorder %s14, 0
    %p35 = por %p33, %p34
    %p36 = scmp.ne.s32.totalorder %s22, %s23
    %p37 = scmp.eq.s32.totalorder %s15, 1
    %p38 = por %p36, %p37
    %p40 = scmp.ne.s32.totalorder %s23, %s39
    %p41 = scmp.eq.s32.totalorder %s15, 0
    %p42 = por %p40, %p41
    %s43 = ssub.s32 %s9, %s16
    %p44 = scmp.eq.s32.totalorder %s43, 0
    %s46 = sadd.s32 %s45, 1
    %s47 = scalar_select %p44, %s45, %s46
    %p50 = pneg %p44
    %p51 = scmp.eq.s32.totalorder %s9, 1
    %p52 = por %p50, %p51
    %p53 = scmp.ne.s32.totalorder %s45, %s48
    %p54 = scmp.eq.s32.totalorder %s9, 0
    %p55 = por %p53, %p54
    %p56 = scmp.ne.s32.totalorder %s45, %s48
    %p57 = scmp.eq.s32.totalorder %s14, 1
    %p58 = por %p56, %p57
    %p59 = scmp.ne.s32.totalorder %s48, %s49
    %p60 = scmp.eq.s32.totalorder %s14, 0
    %p61 = por %p59, %p60
    %p62 = scmp.ne.s32.totalorder %s48, %s49
    %p63 = scmp.eq.s32.totalorder %s15, 1
    %p64 = por %p62, %p63
    %p66 = scmp.ne.s32.totalorder %s49, %s65
    %p67 = scmp.eq.s32.totalorder %s15, 0
    %p68 = por %p66, %p67
    %s69 = ssub.s32 %s9, %s16
    %p70 = scmp.eq.s32.totalorder %s69, 0
    %s72 = sadd.s32 %s71, 1
    %s73 = scalar_select %p70, %s71, %s72
    %p76 = pneg %p70
    %p77 = scmp.eq.s32.totalorder %s9, 1
    %p78 = por %p76, %p77
    %p79 = scmp.ne.s32.totalorder %s71, %s74
    %p80 = scmp.eq.s32.totalorder %s9, 0
    %p81 = por %p79, %p80
    %p82 = scmp.ne.s32.totalorder %s71, %s74
    %p83 = scmp.eq.s32.totalorder %s14, 1
    %p84 = por %p82, %p83
    %p85 = scmp.ne.s32.totalorder %s74, %s75
    %p86 = scmp.eq.s32.totalorder %s14, 0
    %p87 = por %p85, %p86
    %p88 = scmp.ne.s32.totalorder %s74, %s75
    %p89 = scmp.eq.s32.totalorder %s15, 1
    %p90 = por %p88, %p89
    %p92 = scmp.ne.s32.totalorder %s75, %s91
    %p93 = scmp.eq.s32.totalorder %s15, 0
    %p94 = por %p92, %p93
    %s95 = ssub.s32 %s9, %s16
    %p96 = scmp.eq.s32.totalorder %s95, 0
    %s98 = sadd.s32 %s97, 1
    %s99 = scalar_select %p96, %s97, %s98
    %p102 = pneg %p96
    %p103 = scmp.eq.s32.totalorder %s9, 1
    %p104 = por %p102, %p103
    %p105 = scmp.ne.s32.totalorder %s97, %s100
    %p106 = scmp.eq.s32.totalorder %s9, 0
    %p107 = por %p105, %p106
    %p108 = scmp.ne.s32.totalorder %s97, %s100
    %p109 = scmp.eq.s32.totalorder %s14, 1
    %p110 = por %p108, %p109
    %p111 = scmp.ne.s32.totalorder %s100, %s101
    %p112 = scmp.eq.s32.totalorder %s14, 0
    %p113 = por %p111, %p112
    %p114 = scmp.ne.s32.totalorder %s100, %s101
    %p115 = scmp.eq.s32.totalorder %s15, 1
    %p116 = por %p114, %p115
    %p118 = scmp.ne.s32.totalorder %s101, %s117
    %p119 = scmp.eq.s32.totalorder %s15, 0
    %p120 = por %p118, %p119
    %p121 = scmp.le.s32.totalorder 1, %s9
    %p122 = scmp.lt.s32.totalorder %s9, 3
    %p123 = pnand %p121, %p122
    %p124 = pneg %p123
    // Predicated region
    $region9: #{transformer_forward.51} parent=5 // pred_check
      _
    $region10: #{transformer_forward.51} parent=5 // pred_check_branch
      %126 = sbr.rel (%p123) target = $region12
    $region11: #{transformer_forward.51} parent=5 // pred_region
      %s127 = ssub.s32 %s9, 1
    $region12: #{transformer_forward.51} parent=5 // pred_fallthru
      _
    %p128 = scmp.lt.s32.totalorder %s9, 2
    // Predicated region
    $region13: #{transformer_forward.51} parent=5 // pred_check
      %p129 = pneg %p128
    $region14: #{transformer_forward.51} parent=5 // pred_check_branch
      %131 = sbr.rel (%p129) target = $region16
    $region15: #{transformer_forward.51} parent=5 // pred_region
      // Predicated region
      $region17: #{transformer_forward.51} parent=15 // pred_check
        %p132 = pneg %p29
      $region18: #{transformer_forward.51} parent=15 // pred_check_branch
        %134 = sbr.rel (%p132) target = $region20
      $region19: #{transformer_forward.51} parent=15 // pred_region
        %p135 = scmp.lt.s32.totalorder %s9, 1
        %s136 = scalar_select %p135, %s9, 1
        %s137 = smul.addr %s136, 4
        %s138 = smul.addr %s137, 8
        %s139 = scalar_lea.vmem %s0, %s138
      $region20: #{transformer_forward.51} parent=15 // pred_fallthru
        _
      // Predicated region
      $region21: #{transformer_forward.51} parent=15 // pred_check
        %p140 = pneg %p55
      $region22: #{transformer_forward.51} parent=15 // pred_check_branch
        %142 = sbr.rel (%p140) target = $region24
      $region23: #{transformer_forward.51} parent=15 // pred_region
        %p143 = scmp.lt.s32.totalorder %s9, 1
        %s144 = scalar_select %p143, %s9, 1
        %s145 = smul.addr %s144, 4
        %s146 = smul.addr %s145, 8
        %s147 = scalar_lea.vmem %s1, %s146
      $region24: #{transformer_forward.51} parent=15 // pred_fallthru
        _
      // Predicated region
      $region25: #{transformer_forward.51} parent=15 // pred_check
        %p148 = pneg %p81
      $region26: #{transformer_forward.51} parent=15 // pred_check_branch
        %150 = sbr.rel (%p148) target = $region28
      $region27: #{transformer_forward.51} parent=15 // pred_region
        %p151 = scmp.lt.s32.totalorder %s9, 1
        %s152 = scalar_select %p151, %s9, 1
        %s153 = smul.addr %s152, 4
        %s154 = smul.addr %s153, 8
        %s155 = scalar_lea.vmem %s2, %s154
      $region28: #{transformer_forward.51} parent=15 // pred_fallthru
        _
    $region16: #{transformer_forward.51} parent=5 // pred_fallthru
      _
    %p156 = scmp.le.s32.totalorder 1, %s9
    %p157 = scmp.lt.s32.totalorder %s9, 3
    %p158 = pnand %p156, %p157
    %p159 = pneg %p158
    // Predicated region
    $region29: #{transformer_forward.51} parent=5 // pred_check
      _
    $region30: #{transformer_forward.51} parent=5 // pred_check_branch
      %161 = sbr.rel (%p158) target = $region32
    $region31: #{transformer_forward.51} parent=5 // pred_region
      %s162 = ssub.s32 %s9, 1
      %p163 = scmp.lt.s32.totalorder %s14, 1
      %s164 = scalar_select %p163, %s14, 1
      %s165 = smul.addr %s164, 4
      %s166 = smul.addr %s165, 8
      %s167 = scalar_lea.vmem %s0, %s166
      %p168 = pneg %p35
      %p169 = pneg %p32
      %p170 = scmp.lt.s32.totalorder %s14, 1
      %s171 = scalar_select %p170, %s14, 1
      %s172 = smul.addr %s171, 4
      %s173 = smul.addr %s172, 8
      %s174 = scalar_lea.vmem %s1, %s173
      %p175 = pneg %p61
      %p176 = pneg %p58
      %p177 = scmp.lt.s32.totalorder %s14, 1
      %s178 = scalar_select %p177, %s14, 1
      %s179 = smul.addr %s178, 4
      %s180 = smul.addr %s179, 8
      %s181 = scalar_lea.vmem %s2, %s180
      %p182 = pneg %p87
      %p183 = pneg %p84
      %p184 = pneg %p113
      %p185 = pneg %p110
      %p186 = scmp.lt.s32.totalorder %s14, 1
      %s187 = scalar_select %p186, %s14, 1
      %s188 = smul.addr %s187, 4
      %s189 = smul.addr %s188, 8
      %s190 = scalar_lea.vmem %s3, %s189
      %p191 = scmp.lt.s32.totalorder %s14, 1
      %s192 = scalar_select %p191, %s14, 1
      %s193 = smul.addr %s192, 4
      %s194 = smul.addr %s193, 8
      %s195 = scalar_lea.vmem %s0, %s194
      %p196 = scmp.lt.s32.totalorder %s14, 1
      %s197 = scalar_select %p196, %s14, 1
      %s198 = smul.addr %s197, 4
      %s199 = smul.addr %s198, 8
      %s200 = scalar_lea.vmem %s1, %s199
      %p201 = scmp.lt.s32.totalorder %s14, 1
      %s202 = scalar_select %p201, %s14, 1
      %s203 = smul.addr %s202, 4
      %s204 = smul.addr %s203, 8
      %s205 = scalar_lea.vmem %s2, %s204
      %p206 = scmp.lt.s32.totalorder %s14, 1
      %s207 = scalar_select %p206, %s14, 1
      %s208 = smul.addr %s207, 4
      %s209 = smul.addr %s208, 8
      %s210 = scalar_lea.vmem %s3, %s209
      %v212 = vld [vmem:[%s195] sm:$0xff]
      %v213 = vld [vmem:[%s195 + $0x8] sm:$0xff]
      %v214 = vld [vmem:[%s195 + $0x10] sm:$0xff]
      %v215 = vld [vmem:[%s195 + $0x18] sm:$0xff]
      %v216 = vmul.f32 %v212, 0.35355338
      %v217 = vmul.f32 %v213, 0.35355338
      %v218 = vmul.f32 %v214, 0.35355338
      %v219 = vmul.f32 %v215, 0.35355338
      %v220 = vpack.c.bf16 %v216, %v216
      %v221 = vpack.c.bf16 %v217, %v217
      %v222 = vpack.c.bf16 %v218, %v218
      %v223 = vpack.c.bf16 %v219, %v219
      %v224 = vld [vmem:[%s200] sm:$0xff]
      %v225 = vld [vmem:[%s200 + $0x8] sm:$0xff]
      %v226 = vld [vmem:[%s200 + $0x10] sm:$0xff]
      %v227 = vld [vmem:[%s200 + $0x18] sm:$0xff]
      %v228 = vpack.c.bf16 %v224, %v224
      %v229 = vpack.c.bf16 %v225, %v225
      %v230 = vpack.c.bf16 %v226, %v226
      %v231 = vpack.c.bf16 %v227, %v227
      %v232 = vld [vmem:[%s205] sm:$0xff]
      %v233 = vld [vmem:[%s205 + $0x8] sm:$0xff]
      %v234 = vld [vmem:[%s205 + $0x10] sm:$0xff]
      %v235 = vld [vmem:[%s205 + $0x18] sm:$0xff]
      %v236 = vpack.c.bf16 %v232, %v232
      %v237 = vpack.c.bf16 %v233, %v233
      %v238 = vpack.c.bf16 %v234, %v234
      %v239 = vpack.c.bf16 %v235, %v235
      %vm240 = vcmask 64512
      %v242 = vsel %vm240, %v220, 0
      %v245 = vsel %vm240, %v228, 0
      %247 = vmatprep.subr.bf16.mxu0 0
      %248 = vmatpush1.bf16.xpose.msra.mxu0 %v245
      %249 = vmatprep.subr.bf16.mxu0 0
      %250 = vmatpush1.bf16.xpose.msra.mxu0 0
      %251 = vmatprep.subr.bf16.mxu0 0
      %252 = vmatpush1.bf16.xpose.msra.mxu0 0
      %253 = vmatprep.subr.bf16.mxu0 0
      %254 = vmatpush1.bf16.xpose.msra.mxu0 0
      %255 = vmatprep.subr.bf16.mxu0 0
      %256 = vmatpush1.bf16.xpose.msra.mxu0 0
      %257 = vmatprep.subr.bf16.mxu0 0
      %258 = vmatpush1.bf16.xpose.msra.mxu0 0
      %259 = vmatprep.subr.bf16.mxu0 0
      %260 = vmatpush1.bf16.xpose.msra.mxu0 0
      %261 = vmatprep.subr.bf16.mxu0 0
      %262 = vmatpush1.bf16.xpose.msra.mxu0 0
      %263 = vmatprep.subr.bf16.mxu0 0
      %264 = vmatpush1.bf16.xpose.msra.mxu0 0
      %265 = vmatprep.subr.bf16.mxu0 0
      %266 = vmatpush1.bf16.xpose.msra.mxu0 0
      %267 = vmatprep.subr.bf16.mxu0 0
      %268 = vmatpush1.bf16.xpose.msra.mxu0 0
      %269 = vmatprep.subr.bf16.mxu0 0
      %270 = vmatpush1.bf16.xpose.msra.mxu0 0
      %271 = vmatprep.subr.bf16.mxu0 0
      %272 = vmatpush1.bf16.xpose.msra.mxu0 0
      %273 = vmatprep.subr.bf16.mxu0 0
      %274 = vmatpush1.bf16.xpose.msra.mxu0 0
      %275 = vmatprep.subr.bf16.mxu0 0
      %276 = vmatpush1.bf16.xpose.msra.mxu0 0
      %277 = vmatprep.subr.bf16.mxu0 0
      %278 = vmatpush1.bf16.xpose.msra.mxu0 0
      %279 = vmatprep.mubr.bf16.mxu0 0
      %280 = vmatmul.mubr.bf16.gmra.mrb[0].mxu0 %v242
      %v281 = vpop.f32.mrb[0].mxu0
      %v282 = vadd.f32 0.0, %v281
      %v283 = vpop.f32.mrb[0].mxu0
      %v284 = vpop.f32.mrb[0].mxu0
      %v285 = vpop.f32.mrb[0].mxu0
      %286 = vdwg.mxu0
      %v288 = vsel %vm240, %v221, 0
      %v291 = vsel %vm240, %v229, 0
      %293 = vmatprep.subr.bf16.mxu0 0
      %294 = vmatpush1.bf16.xpose.msra.mxu0 %v291
      %295 = vmatprep.subr.bf16.mxu0 0
      %296 = vmatpush1.bf16.xpose.msra.mxu0 0
      %297 = vmatprep.subr.bf16.mxu0 0
      %298 = vmatpush1.bf16.xpose.msra.mxu0 0
      %299 = vmatprep.subr.bf16.mxu0 0
      %300 = vmatpush1.bf16.xpose.msra.mxu0 0
      %301 = vmatprep.subr.bf16.mxu0 0
      %302 = vmatpush1.bf16.xpose.msra.mxu0 0
      %303 = vmatprep.subr.bf16.mxu0 0
      %304 = vmatpush1.bf16.xpose.msra.mxu0 0
      %305 = vmatprep.subr.bf16.mxu0 0
      %306 = vmatpush1.bf16.xpose.msra.mxu0 0
      %307 = vmatprep.subr.bf16.mxu0 0
      %308 = vmatpush1.bf16.xpose.msra.mxu0 0
      %309 = vmatprep.subr.bf16.mxu0 0
      %310 = vmatpush1.bf16.xpose.msra.mxu0 0
      %311 = vmatprep.subr.bf16.mxu0 0
      %312 = vmatpush1.bf16.xpose.msra.mxu0 0
      %313 = vmatprep.subr.bf16.mxu0 0
      %314 = vmatpush1.bf16.xpose.msra.mxu0 0
      %315 = vmatprep.subr.bf16.mxu0 0
      %316 = vmatpush1.bf16.xpose.msra.mxu0 0
      %317 = vmatprep.subr.bf16.mxu0 0
      %318 = vmatpush1.bf16.xpose.msra.mxu0 0
      %319 = vmatprep.subr.bf16.mxu0 0
      %320 = vmatpush1.bf16.xpose.msra.mxu0 0
      %321 = vmatprep.subr.bf16.mxu0 0
      %322 = vmatpush1.bf16.xpose.msra.mxu0 0
      %323 = vmatprep.subr.bf16.mxu0 0
      %324 = vmatpush1.bf16.xpose.msra.mxu0 0
      %325 = vmatprep.mubr.bf16.mxu0 0
      %326 = vmatmul.mubr.bf16.gmra.mrb[0].mxu0 %v288
      %v327 = vpop.f32.mrb[0].mxu0
      %v328 = vadd.f32 0.0, %v327
      %v329 = vpop.f32.mrb[0].mxu0
      %v330 = vpop.f32.mrb[0].mxu0
      %v331 = vpop.f32.mrb[0].mxu0
      %332 = vdwg.mxu0
      %v334 = vsel %vm240, %v222, 0
      %v337 = vsel %vm240, %v230, 0
      %339 = vmatprep.subr.bf16.mxu0 0
      %340 = vmatpush1.bf16.xpose.msra.mxu0 %v337
      %341 = vmatprep.subr.bf16.mxu0 0
      %342 = vmatpush1.bf16.xpose.msra.mxu0 0
      %343 = vmatprep.subr.bf16.mxu0 0
      %344 = vmatpush1.bf16.xpose.msra.mxu0 0
      %345 = vmatprep.subr.bf16.mxu0 0
      %346 = vmatpush1.bf16.xpose.msra.mxu0 0
      %347 = vmatprep.subr.bf16.mxu0 0
      %348 = vmatpush1.bf16.xpose.msra.mxu0 0
      %349 = vmatprep.subr.bf16.mxu0 0
      %350 = vmatpush1.bf16.xpose.msra.mxu0 0
      %351 = vmatprep.subr.bf16.mxu0 0
      %352 = vmatpush1.bf16.xpose.msra.mxu0 0
      %353 = vmatprep.subr.bf16.mxu0 0
      %354 = vmatpush1.bf16.xpose.msra.mxu0 0
      %355 = vmatprep.subr.bf16.mxu0 0
      %356 = vmatpush1.bf16.xpose.msra.mxu0 0
      %357 = vmatprep.subr.bf16.mxu0 0
      %358 = vmatpush1.bf16.xpose.msra.mxu0 0
      %359 = vmatprep.subr.bf16.mxu0 0
      %360 = vmatpush1.bf16.xpose.msra.mxu0 0
      %361 = vmatprep.subr.bf16.mxu0 0
      %362 = vmatpush1.bf16.xpose.msra.mxu0 0
      %363 = vmatprep.subr.bf16.mxu0 0
      %364 = vmatpush1.bf16.xpose.msra.mxu0 0
      %365 = vmatprep.subr.bf16.mxu0 0
      %366 = vmatpush1.bf16.xpose.msra.mxu0 0
      %367 = vmatprep.subr.bf16.mxu0 0
      %368 = vmatpush1.bf16.xpose.msra.mxu0 0
      %369 = vmatprep.subr.bf16.mxu0 0
      %370 = vmatpush1.bf16.xpose.msra.mxu0 0
      %371 = vmatprep.mubr.bf16.mxu0 0
      %372 = vmatmul.mubr.bf16.gmra.mrb[0].mxu0 %v334
      %v373 = vpop.f32.mrb[0].mxu0
      %v374 = vadd.f32 0.0, %v373
      %v375 = vpop.f32.mrb[0].mxu0
      %v376 = vpop.f32.mrb[0].mxu0
      %v377 = vpop.f32.mrb[0].mxu0
      %378 = vdwg.mxu0
      %v380 = vsel %vm240, %v223, 0
      %v383 = vsel %vm240, %v231, 0
      %385 = vmatprep.subr.bf16.mxu0 0
      %386 = vmatpush1.bf16.xpose.msra.mxu0 %v383
      %387 = vmatprep.subr.bf16.mxu0 0
      %388 = vmatpush1.bf16.xpose.msra.mxu0 0
      %389 = vmatprep.subr.bf16.mxu0 0
      %390 = vmatpush1.bf16.xpose.msra.mxu0 0
      %391 = vmatprep.subr.bf16.mxu0 0
      %392 = vmatpush1.bf16.xpose.msra.mxu0 0
      %393 = vmatprep.subr.bf16.mxu0 0
      %394 = vmatpush1.bf16.xpose.msra.mxu0 0
      %395 = vmatprep.subr.bf16.mxu0 0
      %396 = vmatpush1.bf16.xpose.msra.mxu0 0
      %397 = vmatprep.subr.bf16.mxu0 0
      %398 = vmatpush1.bf16.xpose.msra.mxu0 0
      %399 = vmatprep.subr.bf16.mxu0 0
      %400 = vmatpush1.bf16.xpose.msra.mxu0 0
      %401 = vmatprep.subr.bf16.mxu0 0
      %402 = vmatpush1.bf16.xpose.msra.mxu0 0
      %403 = vmatprep.subr.bf16.mxu0 0
      %404 = vmatpush1.bf16.xpose.msra.mxu0 0
      %405 = vmatprep.subr.bf16.mxu0 0
      %406 = vmatpush1.bf16.xpose.msra.mxu0 0
      %407 = vmatprep.subr.bf16.mxu0 0
      %408 = vmatpush1.bf16.xpose.msra.mxu0 0
      %409 = vmatprep.subr.bf16.mxu0 0
      %410 = vmatpush1.bf16.xpose.msra.mxu0 0
      %411 = vmatprep.subr.bf16.mxu0 0
      %412 = vmatpush1.bf16.xpose.msra.mxu0 0
      %413 = vmatprep.subr.bf16.mxu0 0
      %414 = vmatpush1.bf16.xpose.msra.mxu0 0
      %415 = vmatprep.subr.bf16.mxu0 0
      %416 = vmatpush1.bf16.xpose.msra.mxu0 0
      %417 = vmatprep.mubr.bf16.mxu0 0
      %418 = vmatmul.mubr.bf16.gmra.mrb[0].mxu0 %v380
      %v419 = vpop.f32.mrb[0].mxu0
      %v420 = vadd.f32 0.0, %v419
      %v421 = vpop.f32.mrb[0].mxu0
      %v422 = vpop.f32.mrb[0].mxu0
      %v423 = vpop.f32.mrb[0].mxu0
      %424 = vdwg.mxu0
      %v425 = vlaneseq
      %v426 = vshrl.u32 %v425, 7
      %v427 = vlaneseq
      %v428 = vand.u32 %v427, 127
      %vm429 = vcmp.gt.s32.totalorder %v428, %v426
      %v430 = vsel %vm429, 1, 0
      %vm431 = vcmp.eq.s32.totalorder %v430, 1
      %v432 = vsel %vm431, -1e+30, %v282
      %v433 = vsel %vm431, -1e+30, %v328
      %v434 = vsel %vm431, -1e+30, %v374
      %v435 = vsel %vm431, -1e+30, %v420
      %v436 = vsel %vm240, %v432, -inf
      %437 = vmax.xlane.f32.xlu0 %v436
      %v438 = vpop.xlane.xlu0 %437
      %v439 = vsel %vm240, %v433, -inf
      %440 = vmax.xlane.f32.xlu0 %v439
      %v441 = vpop.xlane.xlu0 %440
      %v442 = vsel %vm240, %v434, -inf
      %443 = vmax.xlane.f32.xlu0 %v442
      %v444 = vpop.xlane.xlu0 %443
      %v445 = vsel %vm240, %v435, -inf
      %446 = vmax.xlane.f32.xlu0 %v445
      %v447 = vpop.xlane.xlu0 %446
      %v448 = vsub.f32 %v432, %v438
      %v449 = vsub.f32 %v433, %v441
      %v450 = vsub.f32 %v434, %v444
      %v451 = vsub.f32 %v435, %v447
      %v452 = vmul.f32 %v448, 1.442695
      %v453 = vpow.pop %v452
      %v454 = vmul.f32 %v449, 1.442695
      %v455 = vpow.pop %v454
      %v456 = vmul.f32 %v450, 1.442695
      %v457 = vpow.pop %v456
      %v458 = vmul.f32 %v451, 1.442695
      %v459 = vpow.pop %v458
      %v460 = vsel %vm240, %v453, 0.0
      %461 = vadd.xlane.f32.xlu0 %v460
      %v462 = vpop.xlane.xlu0 %461
      %v463 = vsel %vm240, %v455, 0.0
      %464 = vadd.xlane.f32.xlu0 %v463
      %v465 = vpop.xlane.xlu0 %464
      %v466 = vsel %vm240, %v457, 0.0
      %467 = vadd.xlane.f32.xlu0 %v466
      %v468 = vpop.xlane.xlu0 %467
      %v469 = vsel %vm240, %v459, 0.0
      %470 = vadd.xlane.f32.xlu0 %v469
      %v471 = vpop.xlane.xlu0 %470
      %v472 = vrcp.pop %v462
      %v473 = vrcp.pop %v465
      %v474 = vrcp.pop %v468
      %v475 = vrcp.pop %v471
      %v476 = vmul.f32 %v453, %v472
      %v477 = vmul.f32 %v455, %v473
      %v478 = vmul.f32 %v457, %v474
      %v479 = vmul.f32 %v459, %v475
      %v480 = vpack.c.bf16 %v476, %v476
      %v481 = vpack.c.bf16 %v477, %v477
      %v482 = vpack.c.bf16 %v478, %v478
      %v483 = vpack.c.bf16 %v479, %v479
      %v485 = vsel %vm240, %v480, 0
      %vm487 = vcmask 1043456
      %v489 = vsel %vm487, %v236, 0
      %491 = vmatprep.subr.bf16.mxu0 0
      %492 = vmatpush1.bf16.msra.mxu0 %v489
      %493 = vmatprep.subr.bf16.mxu0 0
      %494 = vmatpush1.bf16.msra.mxu0 0
      %495 = vmatprep.subr.bf16.mxu0 0
      %496 = vmatpush1.bf16.msra.mxu0 0
      %497 = vmatprep.subr.bf16.mxu0 0
      %498 = vmatpush1.bf16.msra.mxu0 0
      %499 = vmatprep.subr.bf16.mxu0 0
      %500 = vmatpush1.bf16.msra.mxu0 0
      %501 = vmatprep.subr.bf16.mxu0 0
      %502 = vmatpush1.bf16.msra.mxu0 0
      %503 = vmatprep.subr.bf16.mxu0 0
      %504 = vmatpush1.bf16.msra.mxu0 0
      %505 = vmatprep.subr.bf16.mxu0 0
      %506 = vmatpush1.bf16.msra.mxu0 0
      %507 = vmatprep.subr.bf16.mxu0 0
      %508 = vmatpush1.bf16.msra.mxu0 0
      %509 = vmatprep.subr.bf16.mxu0 0
      %510 = vmatpush1.bf16.msra.mxu0 0
      %511 = vmatprep.subr.bf16.mxu0 0
      %512 = vmatpush1.bf16.msra.mxu0 0
      %513 = vmatprep.subr.bf16.mxu0 0
      %514 = vmatpush1.bf16.msra.mxu0 0
      %515 = vmatprep.subr.bf16.mxu0 0
      %516 = vmatpush1.bf16.msra.mxu0 0
      %517 = vmatprep.subr.bf16.mxu0 0
      %518 = vmatpush1.bf16.msra.mxu0 0
      %519 = vmatprep.subr.bf16.mxu0 0
      %520 = vmatpush1.bf16.msra.mxu0 0
      %521 = vmatprep.subr.bf16.mxu0 0
      %522 = vmatpush1.bf16.msra.mxu0 0
      %523 = vmatprep.mubr.bf16.mxu0 0
      %524 = vmatmul.mubr.bf16.gmra.mrb[0].mxu0 %v485
      %v525 = vpop.f32.mrb[0].mxu0
      %v526 = vadd.f32 0.0, %v525
      %v527 = vpop.f32.mrb[0].mxu0
      %v528 = vpop.f32.mrb[0].mxu0
      %v529 = vpop.f32.mrb[0].mxu0
      %530 = vdwg.mxu0
      %v532 = vsel %vm240, %v481, 0
      %v535 = vsel %vm487, %v237, 0
      %537 = vmatprep.subr.bf16.mxu0 0
      %538 = vmatpush1.bf16.msra.mxu0 %v535
      %539 = vmatprep.subr.bf16.mxu0 0
      %540 = vmatpush1.bf16.msra.mxu0 0
      %541 = vmatprep.subr.bf16.mxu0 0
      %542 = vmatpush1.bf16.msra.mxu0 0
      %543 = vmatprep.subr.bf16.mxu0 0
      %544 = vmatpush1.bf16.msra.mxu0 0
      %545 = vmatprep.subr.bf16.mxu0 0
      %546 = vmatpush1.bf16.msra.mxu0 0
      %547 = vmatprep.subr.bf16.mxu0 0
      %548 = vmatpush1.bf16.msra.mxu0 0
      %549 = vmatprep.subr.bf16.mxu0 0
      %550 = vmatpush1.bf16.msra.mxu0 0
      %551 = vmatprep.subr.bf16.mxu0 0
      %552 = vmatpush1.bf16.msra.mxu0 0
      %553 = vmatprep.subr.bf16.mxu0 0
      %554 = vmatpush1.bf16.msra.mxu0 0
      %555 = vmatprep.subr.bf16.mxu0 0
      %556 = vmatpush1.bf16.msra.mxu0 0
      %557 = vmatprep.subr.bf16.mxu0 0
      %558 = vmatpush1.bf16.msra.mxu0 0
      %559 = vmatprep.subr.bf16.mxu0 0
      %560 = vmatpush1.bf16.msra.mxu0 0
      %561 = vmatprep.subr.bf16.mxu0 0
      %562 = vmatpush1.bf16.msra.mxu0 0
      %563 = vmatprep.subr.bf16.mxu0 0
      %564 = vmatpush1.bf16.msra.mxu0 0
      %565 = vmatprep.subr.bf16.mxu0 0
      %566 = vmatpush1.bf16.msra.mxu0 0
      %567 = vmatprep.subr.bf16.mxu0 0
      %568 = vmatpush1.bf16.msra.mxu0 0
      %569 = vmatprep.mubr.bf16.mxu0 0
      %570 = vmatmul.mubr.bf16.gmra.mrb[0].mxu0 %v532
      %v571 = vpop.f32.mrb[0].mxu0
      %v572 = vadd.f32 0.0, %v571
      %v573 = vpop.f32.mrb[0].mxu0
      %v574 = vpop.f32.mrb[0].mxu0
      %v575 = vpop.f32.mrb[0].mxu0
      %576 = vdwg.mxu0
      %v578 = vsel %vm240, %v482, 0
      %v581 = vsel %vm487, %v238, 0
      %583 = vmatprep.subr.bf16.mxu0 0
      %584 = vmatpush1.bf16.msra.mxu0 %v581
      %585 = vmatprep.subr.bf16.mxu0 0
      %586 = vmatpush1.bf16.msra.mxu0 0
      %587 = vmatprep.subr.bf16.mxu0 0
      %588 = vmatpush1.bf16.msra.mxu0 0
      %589 = vmatprep.subr.bf16.mxu0 0
      %590 = vmatpush1.bf16.msra.mxu0 0
      %591 = vmatprep.subr.bf16.mxu0 0
      %592 = vmatpush1.bf16.msra.mxu0 0
      %593 = vmatprep.subr.bf16.mxu0 0
      %594 = vmatpush1.bf16.msra.mxu0 0
      %595 = vmatprep.subr.bf16.mxu0 0
      %596 = vmatpush1.bf16.msra.mxu0 0
      %597 = vmatprep.subr.bf16.mxu0 0
      %598 = vmatpush1.bf16.msra.mxu0 0
      %599 = vmatprep.subr.bf16.mxu0 0
      %600 = vmatpush1.bf16.msra.mxu0 0
      %601 = vmatprep.subr.bf16.mxu0 0
      %602 = vmatpush1.bf16.msra.mxu0 0
      %603 = vmatprep.subr.bf16.mxu0 0
      %604 = vmatpush1.bf16.msra.mxu0 0
      %605 = vmatprep.subr.bf16.mxu0 0
      %606 = vmatpush1.bf16.msra.mxu0 0
      %607 = vmatprep.subr.bf16.mxu0 0
      %608 = vmatpush1.bf16.msra.mxu0 0
      %609 = vmatprep.subr.bf16.mxu0 0
      %610 = vmatpush1.bf16.msra.mxu0 0
      %611 = vmatprep.subr.bf16.mxu0 0
      %612 = vmatpush1.bf16.msra.mxu0 0
      %613 = vmatprep.subr.bf16.mxu0 0
      %614 = vmatpush1.bf16.msra.mxu0 0
      %615 = vmatprep.mubr.bf16.mxu0 0
      %616 = vmatmul.mubr.bf16.gmra.mrb[0].mxu0 %v578
      %v617 = vpop.f32.mrb[0].mxu0
      %v618 = vadd.f32 0.0, %v617
      %v619 = vpop.f32.mrb[0].mxu0
      %v620 = vpop.f32.mrb[0].mxu0
      %v621 = vpop.f32.mrb[0].mxu0
      %622 = vdwg.mxu0
      %v624 = vsel %vm240, %v483, 0
      %v627 = vsel %vm487, %v239, 0
      %629 = vmatprep.subr.bf16.mxu0 0
      %630 = vmatpush1.bf16.msra.mxu0 %v627
      %631 = vmatprep.subr.bf16.mxu0 0
      %632 = vmatpush1.bf16.msra.mxu0 0
      %633 = vmatprep.subr.bf16.mxu0 0
      %634 = vmatpush1.bf16.msra.mxu0 0
      %635 = vmatprep.subr.bf16.mxu0 0
      %636 = vmatpush1.bf16.msra.mxu0 0
      %637 = vmatprep.subr.bf16.mxu0 0
      %638 = vmatpush1.bf16.msra.mxu0 0
      %639 = vmatprep.subr.bf16.mxu0 0
      %640 = vmatpush1.bf16.msra.mxu0 0
      %641 = vmatprep.subr.bf16.mxu0 0
      %642 = vmatpush1.bf16.msra.mxu0 0
      %643 = vmatprep.subr.bf16.mxu0 0
      %644 = vmatpush1.bf16.msra.mxu0 0
      %645 = vmatprep.subr.bf16.mxu0 0
      %646 = vmatpush1.bf16.msra.mxu0 0
      %647 = vmatprep.subr.bf16.mxu0 0
      %648 = vmatpush1.bf16.msra.mxu0 0
      %649 = vmatprep.subr.bf16.mxu0 0
      %650 = vmatpush1.bf16.msra.mxu0 0
      %651 = vmatprep.subr.bf16.mxu0 0
      %652 = vmatpush1.bf16.msra.mxu0 0
      %653 = vmatprep.subr.bf16.mxu0 0
      %654 = vmatpush1.bf16.msra.mxu0 0
      %655 = vmatprep.subr.bf16.mxu0 0
      %656 = vmatpush1.bf16.msra.mxu0 0
      %657 = vmatprep.subr.bf16.mxu0 0
      %658 = vmatpush1.bf16.msra.mxu0 0
      %659 = vmatprep.subr.bf16.mxu0 0
      %660 = vmatpush1.bf16.msra.mxu0 0
      %661 = vmatprep.mubr.bf16.mxu0 0
      %662 = vmatmul.mubr.bf16.gmra.mrb[0].mxu0 %v624
      %v663 = vpop.f32.mrb[0].mxu0
      %v664 = vadd.f32 0.0, %v663
      %v665 = vpop.f32.mrb[0].mxu0
      %v666 = vpop.f32.mrb[0].mxu0
      %v667 = vpop.f32.mrb[0].mxu0
      %668 = vdwg.mxu0
      %669 = vst.msk [vmem:[%s210] sm:$0xff] %vm240, %v526
      %670 = vst.msk [vmem:[%s210 + $0x8] sm:$0xff] %vm240, %v572
      %671 = vst.msk [vmem:[%s210 + $0x10] sm:$0xff] %vm240, %v618
      %672 = vst.msk [vmem:[%s210 + $0x18] sm:$0xff] %vm240, %v664
      %p673 = scmp.lt.s32.totalorder %s14, 1
      %s674 = scalar_select %p673, %s14, 1
      %s675 = smul.addr %s674, 4
      %s676 = smul.addr %s675, 8
      %s677 = scalar_lea.vmem %s3, %s676
      // Predicated region
      $region33: #{transformer_forward.51} parent=31 // pred_check
        %p678 = pneg %p110
      $region34: #{transformer_forward.51} parent=31 // pred_check_branch
        %680 = sbr.rel (%p678) target = $region36
      $region35: #{transformer_forward.51} parent=31 // pred_region
        _
      $region36: #{transformer_forward.51} parent=31 // pred_fallthru
        _
    $region32: #{transformer_forward.51} parent=5 // pred_fallthru
      _
    %p681 = scmp.le.s32.totalorder 2, %s9
    // Predicated region
    $region37: #{transformer_forward.51} parent=5 // pred_check
      %p682 = pneg %p681
    $region38: #{transformer_forward.51} parent=5 // pred_check_branch
      %684 = sbr.rel (%p682) target = $region40
    $region39: #{transformer_forward.51} parent=5 // pred_region
      %s685 = ssub.s32 %s9, 2
      // Predicated region
      $region41: #{transformer_forward.51} parent=39 // pred_check
        %p686 = pneg %p116
      $region42: #{transformer_forward.51} parent=39 // pred_check_branch
        %688 = sbr.rel (%p686) target = $region44
      $region43: #{transformer_forward.51} parent=39 // pred_region
        %p689 = scmp.lt.s32.totalorder %s15, 1
        %s690 = scalar_select %p689, %s15, 1
        %s691 = smul.addr %s690, 4
        %s692 = smul.addr %s691, 8
        %s693 = scalar_lea.vmem %s3, %s692
      $region44: #{transformer_forward.51} parent=39 // pred_fallthru
        _
    $region40: #{transformer_forward.51} parent=5 // pred_fallthru
      _
  $region6: #{transformer_forward.51} parent=0 // loop_footer
    %s13 = sadd.s32 1, %s9
  $region7: #{transformer_forward.51} parent=0 // loop_footer_branch
    %8 = sbr.rel target = $region3
  $region8: #{transformer_forward.51} parent=0 // loop_exit
    _

// kernel: transformer_forward.55
$region0: #{transformer_forward.55}
  #allocation0 [shape = 'u32[]', space=smem, size = 0x4, offset = 0x4, fixed_abs, tag = 'smem constant byte address 0x4 - core index']
  #allocation1 [shape = 'u32[144,128]{1,0:T(1,128)}', space=vmem, size = 0x12000, scoped, tag = 'internal scratch']
  #allocation2 [shape = 'f32[16,64]{1,0:T(8,128)}', space=vmem, size = 0x2000, scoped, tag = 'scratch operand']
  %s0 = inlined_call_operand.vmem [shape: f32[16,32], index: 0, kind: input, shape index: {}]
  %s1 = inlined_call_operand.vmem [shape: bf16[32,64], index: 1, kind: input, shape index: {}]
  %s2 = inlined_call_operand.vmem [shape: f32[1,64], index: 2, kind: input, shape index: {}]
  %s3 = inlined_call_operand.vmem [shape: f32[16,64], index: 3, kind: output, shape index: {}]
  %s4 = sld [smem:[#allocation0]]
  $region30: #{transformer_forward.55} parent=0
    _
  %s6 = ssub.s32 1, %s4
  %s7 = scalar_select 0, %s6, %s4
  // Predicated region
  $region2: #{transformer_forward.55} parent=0 // pred_check
    _
  $region3: #{transformer_forward.55} parent=0 // pred_check_branch
    %9 = sbr.rel (0) target = $region5
  $region4: #{transformer_forward.55} parent=0 // pred_region
    _
  $region5: #{transformer_forward.55} parent=0 // pred_fallthru
    _
  // Predicated region
  $region6: #{transformer_forward.55} parent=0 // pred_check
    _
  $region7: #{transformer_forward.55} parent=0 // pred_check_branch
    %11 = sbr.rel (0) target = $region9
  $region8: #{transformer_forward.55} parent=0 // pred_region
    _
  $region9: #{transformer_forward.55} parent=0 // pred_fallthru
    _
  // Predicated region
  $region10: #{transformer_forward.55} parent=0 // pred_check
    _
  $region11: #{transformer_forward.55} parent=0 // pred_check_branch
    %13 = sbr.rel (0) target = $region13
  $region12: #{transformer_forward.55} parent=0 // pred_region
    _
  $region13: #{transformer_forward.55} parent=0 // pred_fallthru
    _
  %p15 = scmp.eq.s32.totalorder 0, 0
  // Predicated region
  $region14: #{transformer_forward.55} parent=0 // pred_check
    %p16 = pneg %p15
  $region15: #{transformer_forward.55} parent=0 // pred_check_branch
    %18 = sbr.rel (%p16) target = $region17
  $region16: #{transformer_forward.55} parent=0 // pred_region
    %vm19 = vcmask 523264
    %20 = vst.msk [vmem:[#allocation2] sm:$0xff] %vm19, 0.0
    %21 = vst.msk [vmem:[#allocation2 + $0x8] sm:$0xff] %vm19, 0.0
  $region17: #{transformer_forward.55} parent=0 // pred_fallthru
    _
  %v22 = vld [vmem:[#allocation2] sm:$0xff]
  %v23 = vld [vmem:[#allocation2 + $0x8] sm:$0xff]
  %v24 = vld [vmem:[%s0] sm:$0xff]
  %v25 = vld [vmem:[%s0 + $0x8] sm:$0xff]
  %v26 = vpack.c.bf16 %v25, %v24
  %v27 = vld [vmem:[%s1] sm:$0xf]
  %v28 = vld [vmem:[%s1 + $0x4] sm:$0xf]
  %v29 = vld [vmem:[%s1 + $0x8] sm:$0xf]
  %v30 = vld [vmem:[%s1 + $0xc] sm:$0xf]
  %v35 = vunpack.c.l.b16 %v27
  %v36 = vunpack.c.l.b16 %v28
  %v37 = vunpack.c.l.b16 %v29
  %v38 = vunpack.c.l.b16 %v30
  %v39 = vpack.c.b16 %v36, %v35
  %v40 = vpack.c.b16 %v38, %v37
  %vm43 = vcmask 261120
  %v45 = vsel %vm43, %v26, 0
  %47 = vmatprep.subr.bf16.mxu0 0
  %48 = vmatpush1.bf16.msra.mxu0 %v39
  %49 = vmatprep.subr.bf16.mxu0 0
  %50 = vmatpush1.bf16.msra.mxu0 %v40
  %51 = vmatprep.subr.bf16.mxu0 0
  %52 = vmatpush1.bf16.msra.mxu0 0
  %53 = vmatprep.subr.bf16.mxu0 0
  %54 = vmatpush1.bf16.msra.mxu0 0
  %55 = vmatprep.subr.bf16.mxu0 0
  %56 = vmatpush1.bf16.msra.mxu0 0
  %57 = vmatprep.subr.bf16.mxu0 0
  %58 = vmatpush1.bf16.msra.mxu0 0
  %59 = vmatprep.subr.bf16.mxu0 0
  %60 = vmatpush1.bf16.msra.mxu0 0
  %61 = vmatprep.subr.bf16.mxu0 0
  %62 = vmatpush1.bf16.msra.mxu0 0
  %63 = vmatprep.subr.bf16.mxu0 0
  %64 = vmatpush1.bf16.msra.mxu0 0
  %65 = vmatprep.subr.bf16.mxu0 0
  %66 = vmatpush1.bf16.msra.mxu0 0
  %67 = vmatprep.subr.bf16.mxu0 0
  %68 = vmatpush1.bf16.msra.mxu0 0
  %69 = vmatprep.subr.bf16.mxu0 0
  %70 = vmatpush1.bf16.msra.mxu0 0
  %71 = vmatprep.subr.bf16.mxu0 0
  %72 = vmatpush1.bf16.msra.mxu0 0
  %73 = vmatprep.subr.bf16.mxu0 0
  %74 = vmatpush1.bf16.msra.mxu0 0
  %75 = vmatprep.subr.bf16.mxu0 0
  %76 = vmatpush1.bf16.msra.mxu0 0
  %77 = vmatprep.subr.bf16.mxu0 0
  %78 = vmatpush1.bf16.msra.mxu0 0
  %79 = vmatprep.mubr.bf16.mxu0 0
  %80 = vmatmul.mubr.bf16.gmra.mrb[0].mxu0 %v45
  %v81 = vpop.f32.mrb[0].mxu0
  %v82 = vadd.f32 0.0, %v81
  %v83 = vpop.f32.mrb[0].mxu0
  %v84 = vpop.f32.mrb[0].mxu0
  %v85 = vadd.f32 0.0, %v84
  %v86 = vpop.f32.mrb[0].mxu0
  %87 = vdwg.mxu0
  %v88 = vadd.f32 %v22, %v82
  %v89 = vadd.f32 %v23, %v85
  %vm90 = vcmask 523264
  %91 = vst.msk [vmem:[#allocation2] sm:$0xff] %vm90, %v88
  %92 = vst.msk [vmem:[#allocation2 + $0x8] sm:$0xff] %vm90, %v89
  // Predicated region
  $region18: #{transformer_forward.55} parent=0 // pred_check
    %p93 = pneg %p15
  $region19: #{transformer_forward.55} parent=0 // pred_check_branch
    %95 = sbr.rel (%p93) target = $region21
  $region20: #{transformer_forward.55} parent=0 // pred_region
    %v96 = vld [vmem:[#allocation2] sm:$0xff]
    %v97 = vld [vmem:[#allocation2 + $0x8] sm:$0xff]
    %v98 = vld [vmem:[%s2] sm:$0x1]
    %v100 = vlaneseq
    %v101 = vshrl.u32 %v100, 7
    %v102 = vsub.s32 0, %v101
    %v103 = vrot.slane %v98, %v102
    %v105 = vadd.f32 %v96, %v103
    %v106 = vadd.f32 %v97, %v103
    %107 = vst.msk [vmem:[%s3] sm:$0xff] %vm90, %v105
    %108 = vst.msk [vmem:[%s3 + $0x8] sm:$0xff] %vm90, %v106
  $region21: #{transformer_forward.55} parent=0 // pred_fallthru
    _
  // Predicated region
  $region22: #{transformer_forward.55} parent=0 // pred_check
    _
  $region23: #{transformer_forward.55} parent=0 // pred_check_branch
    %110 = sbr.rel (0) target = $region25
  $region24: #{transformer_forward.55} parent=0 // pred_region
    _
  $region25: #{transformer_forward.55} parent=0 // pred_fallthru
    _
  // Predicated region
  $region26: #{transformer_forward.55} parent=0 // pred_check
    _
  $region27: #{transformer_forward.55} parent=0 // pred_check_branch
    %112 = sbr.rel (0) target = $region29
  $region28: #{transformer_forward.55} parent=0 // pred_region
    _
  $region29: #{transformer_forward.55} parent=0 // pred_fallthru
    _

// kernel: transformer_forward.38
$region0: #{transformer_forward.38}
  #allocation0 [shape = 'u32[]', space=smem, size = 0x4, offset = 0x4, fixed_abs, tag = 'smem constant byte address 0x4 - core index']
  #allocation1 [shape = 'u32[144,128]{1,0:T(1,128)}', space=vmem, size = 0x12000, scoped, tag = 'internal scratch']
  %s0 = inlined_call_operand.vmem [shape: f32[2,4,8,8], index: 0, kind: input, shape index: {}]
  %s1 = inlined_call_operand.vmem [shape: f32[2,4,8,8], index: 1, kind: input, shape index: {}]
  %s2 = inlined_call_operand.vmem [shape: f32[2,4,8,8], index: 2, kind: input, shape index: {}]
  %s3 = inlined_call_operand.vmem [shape: f32[2,1,8], index: 3, kind: input, shape index: {}]
  %s4 = inlined_call_operand.vmem [shape: f32[2,4,8,8], index: 4, kind: output, shape index: {}]
  %s5 = sld [smem:[#allocation0]]
  $region49: #{transformer_forward.38} parent=0
    _
  %s7 = ssub.s32 1, %s5
  %s8 = scalar_select 0, %s7, %s5
  loop: start=0, step=1, limit=4
  $region2: #{transformer_forward.38} parent=0 // loop_pre_header
    _
  $region3: #{transformer_forward.38} parent=0 // loop_header
    %s10 = sphi 0, %s14
    %p11 = scmp.ge.s32.totalorder %s10, 4
    %s20 = sphi 0, %s22
    %s23 = sphi 0, %s20
    %s24 = sphi 0, %s23
    %s40 = sphi 0, %s24
    %s46 = sphi 0, %s48
    %s49 = sphi 0, %s46
    %s50 = sphi 0, %s49
    %s66 = sphi 0, %s50
    %s72 = sphi 0, %s74
    %s75 = sphi 0, %s72
    %s76 = sphi 0, %s75
    %s92 = sphi 0, %s76
    %s98 = sphi 0, %s100
    %s101 = sphi 0, %s98
    %s102 = sphi 0, %s101
    %s118 = sphi 0, %s102
    %s124 = sphi 0, %s126
    %s127 = sphi 0, %s124
    %s128 = sphi 0, %s127
    %s144 = sphi 0, %s128
  $region4: #{transformer_forward.38} parent=0 // loop_header_branch
    %13 = sbr.rel (%p11) target = $region8
  $region5: #{transformer_forward.38} parent=0 // loop_body
    %s15 = ssub.s32 %s10, 1
    %s16 = ssub.s32 %s10, 2
    %s17 = sadd.s32 %s10, 1
    %s18 = ssub.s32 %s10, %s17
    %p19 = scmp.eq.s32.totalorder %s18, 0
    %s21 = sadd.s32 %s20, 1
    %s22 = scalar_select %p19, %s20, %s21
    %p25 = pneg %p19
    %p26 = scmp.eq.s32.totalorder %s10, 1
    %p27 = por %p25, %p26
    %p28 = scmp.ne.s32.totalorder %s20, %s23
    %p29 = scmp.eq.s32.totalorder %s10, 0
    %p30 = por %p28, %p29
    %p31 = scmp.ne.s32.totalorder %s20, %s23
    %p32 = scmp.eq.s32.totalorder %s15, 1
    %p33 = por %p31, %p32
    %p34 = scmp.ne.s32.totalorder %s23, %s24
    %p35 = scmp.eq.s32.totalorder %s15, 0
    %p36 = por %p34, %p35
    %p37 = scmp.ne.s32.totalorder %s23, %s24
    %p38 = scmp.eq.s32.totalorder %s16, 1
    %p39 = por %p37, %p38
    %p41 = scmp.ne.s32.totalorder %s24, %s40
    %p42 = scmp.eq.s32.totalorder %s16, 0
    %p43 = por %p41, %p42
    %s44 = ssub.s32 %s10, %s17
    %p45 = scmp.eq.s32.totalorder %s44, 0
    %s47 = sadd.s32 %s46, 1
    %s48 = scalar_select %p45, %s46, %s47
    %p51 = pneg %p45
    %p52 = scmp.eq.s32.totalorder %s10, 1
    %p53 = por %p51, %p52
    %p54 = scmp.ne.s32.totalorder %s46, %s49
    %p55 = scmp.eq.s32.totalorder %s10, 0
    %p56 = por %p54, %p55
    %p57 = scmp.ne.s32.totalorder %s46, %s49
    %p58 = scmp.eq.s32.totalorder %s15, 1
    %p59 = por %p57, %p58
    %p60 = scmp.ne.s32.totalorder %s49, %s50
    %p61 = scmp.eq.s32.totalorder %s15, 0
    %p62 = por %p60, %p61
    %p63 = scmp.ne.s32.totalorder %s49, %s50
    %p64 = scmp.eq.s32.totalorder %s16, 1
    %p65 = por %p63, %p64
    %p67 = scmp.ne.s32.totalorder %s50, %s66
    %p68 = scmp.eq.s32.totalorder %s16, 0
    %p69 = por %p67, %p68
    %s70 = ssub.s32 %s10, %s17
    %p71 = scmp.eq.s32.totalorder %s70, 0
    %s73 = sadd.s32 %s72, 1
    %s74 = scalar_select %p71, %s72, %s73
    %p77 = pneg %p71
    %p78 = scmp.eq.s32.totalorder %s10, 1
    %p79 = por %p77, %p78
    %p80 = scmp.ne.s32.totalorder %s72, %s75
    %p81 = scmp.eq.s32.totalorder %s10, 0
    %p82 = por %p80, %p81
    %p83 = scmp.ne.s32.totalorder %s72, %s75
    %p84 = scmp.eq.s32.totalorder %s15, 1
    %p85 = por %p83, %p84
    %p86 = scmp.ne.s32.totalorder %s75, %s76
    %p87 = scmp.eq.s32.totalorder %s15, 0
    %p88 = por %p86, %p87
    %p89 = scmp.ne.s32.totalorder %s75, %s76
    %p90 = scmp.eq.s32.totalorder %s16, 1
    %p91 = por %p89, %p90
    %p93 = scmp.ne.s32.totalorder %s76, %s92
    %p94 = scmp.eq.s32.totalorder %s16, 0
    %p95 = por %p93, %p94
    %s96 = ssub.s32 %s10, %s17
    %p97 = scmp.eq.s32.totalorder %s96, 0
    %s99 = sadd.s32 %s98, 1
    %s100 = scalar_select %p97, %s98, %s99
    %p103 = pneg %p97
    %p104 = scmp.eq.s32.totalorder %s10, 1
    %p105 = por %p103, %p104
    %p106 = scmp.ne.s32.totalorder %s98, %s101
    %p107 = scmp.eq.s32.totalorder %s10, 0
    %p108 = por %p106, %p107
    %p109 = scmp.ne.s32.totalorder %s98, %s101
    %p110 = scmp.eq.s32.totalorder %s15, 1
    %p111 = por %p109, %p110
    %p112 = scmp.ne.s32.totalorder %s101, %s102
    %p113 = scmp.eq.s32.totalorder %s15, 0
    %p114 = por %p112, %p113
    %p115 = scmp.ne.s32.totalorder %s101, %s102
    %p116 = scmp.eq.s32.totalorder %s16, 1
    %p117 = por %p115, %p116
    %p119 = scmp.ne.s32.totalorder %s102, %s118
    %p120 = scmp.eq.s32.totalorder %s16, 0
    %p121 = por %p119, %p120
    %s122 = ssub.s32 %s10, %s17
    %p123 = scmp.eq.s32.totalorder %s122, 0
    %s125 = sadd.s32 %s124, 1
    %s126 = scalar_select %p123, %s124, %s125
    %p129 = pneg %p123
    %p130 = scmp.eq.s32.totalorder %s10, 1
    %p131 = por %p129, %p130
    %p132 = scmp.ne.s32.totalorder %s124, %s127
    %p133 = scmp.eq.s32.totalorder %s10, 0
    %p134 = por %p132, %p133
    %p135 = scmp.ne.s32.totalorder %s124, %s127
    %p136 = scmp.eq.s32.totalorder %s15, 1
    %p137 = por %p135, %p136
    %p138 = scmp.ne.s32.totalorder %s127, %s128
    %p139 = scmp.eq.s32.totalorder %s15, 0
    %p140 = por %p138, %p139
    %p141 = scmp.ne.s32.totalorder %s127, %s128
    %p142 = scmp.eq.s32.totalorder %s16, 1
    %p143 = por %p141, %p142
    %p145 = scmp.ne.s32.totalorder %s128, %s144
    %p146 = scmp.eq.s32.totalorder %s16, 0
    %p147 = por %p145, %p146
    %p148 = scmp.le.s32.totalorder 1, %s10
    %p149 = scmp.lt.s32.totalorder %s10, 3
    %p150 = pnand %p148, %p149
    %p151 = pneg %p150
    // Predicated region
    $region9: #{transformer_forward.38} parent=5 // pred_check
      _
    $region10: #{transformer_forward.38} parent=5 // pred_check_branch
      %153 = sbr.rel (%p150) target = $region12
    $region11: #{transformer_forward.38} parent=5 // pred_region
      %s154 = ssub.s32 %s10, 1
    $region12: #{transformer_forward.38} parent=5 // pred_fallthru
      _
    %p155 = scmp.lt.s32.totalorder %s10, 2
    // Predicated region
    $region13: #{transformer_forward.38} parent=5 // pred_check
      %p156 = pneg %p155
    $region14: #{transformer_forward.38} parent=5 // pred_check_branch
      %158 = sbr.rel (%p156) target = $region16
    $region15: #{transformer_forward.38} parent=5 // pred_region
      // Predicated region
      $region17: #{transformer_forward.38} parent=15 // pred_check
        %p159 = pneg %p30
      $region18: #{transformer_forward.38} parent=15 // pred_check_branch
        %161 = sbr.rel (%p159) target = $region20
      $region19: #{transformer_forward.38} parent=15 // pred_region
        %p162 = scmp.lt.s32.totalorder %s10, 1
        %s163 = scalar_select %p162, %s10, 1
        %s164 = smul.addr %s163, 4
        %s165 = smul.addr %s164, 8
        %s166 = scalar_lea.vmem %s0, %s165
      $region20: #{transformer_forward.38} parent=15 // pred_fallthru
        _
      // Predicated region
      $region21: #{transformer_forward.38} parent=15 // pred_check
        %p167 = pneg %p56
      $region22: #{transformer_forward.38} parent=15 // pred_check_branch
        %169 = sbr.rel (%p167) target = $region24
      $region23: #{transformer_forward.38} parent=15 // pred_region
        %p170 = scmp.lt.s32.totalorder %s10, 1
        %s171 = scalar_select %p170, %s10, 1
        %s172 = smul.addr %s171, 4
        %s173 = smul.addr %s172, 8
        %s174 = scalar_lea.vmem %s1, %s173
      $region24: #{transformer_forward.38} parent=15 // pred_fallthru
        _
      // Predicated region
      $region25: #{transformer_forward.38} parent=15 // pred_check
        %p175 = pneg %p82
      $region26: #{transformer_forward.38} parent=15 // pred_check_branch
        %177 = sbr.rel (%p175) target = $region28
      $region27: #{transformer_forward.38} parent=15 // pred_region
        %p178 = scmp.lt.s32.totalorder %s10, 1
        %s179 = scalar_select %p178, %s10, 1
        %s180 = smul.addr %s179, 4
        %s181 = smul.addr %s180, 8
        %s182 = scalar_lea.vmem %s2, %s181
      $region28: #{transformer_forward.38} parent=15 // pred_fallthru
        _
      // Predicated region
      $region29: #{transformer_forward.38} parent=15 // pred_check
        %p183 = pneg %p108
      $region30: #{transformer_forward.38} parent=15 // pred_check_branch
        %185 = sbr.rel (%p183) target = $region32
      $region31: #{transformer_forward.38} parent=15 // pred_region
        %p186 = scmp.lt.s32.totalorder %s10, 1
        %s187 = scalar_select %p186, %s10, 1
        %s188 = scalar_lea.vmem %s3, %s187
      $region32: #{transformer_forward.38} parent=15 // pred_fallthru
        _
    $region16: #{transformer_forward.38} parent=5 // pred_fallthru
      _
    %p189 = scmp.le.s32.totalorder 1, %s10
    %p190 = scmp.lt.s32.totalorder %s10, 3
    %p191 = pnand %p189, %p190
    %p192 = pneg %p191
    // Predicated region
    $region33: #{transformer_forward.38} parent=5 // pred_check
      _
    $region34: #{transformer_forward.38} parent=5 // pred_check_branch
      %194 = sbr.rel (%p191) target = $region36
    $region35: #{transformer_forward.38} parent=5 // pred_region
      %s195 = ssub.s32 %s10, 1
      %p196 = scmp.lt.s32.totalorder %s15, 1
      %s197 = scalar_select %p196, %s15, 1
      %s198 = smul.addr %s197, 4
      %s199 = smul.addr %s198, 8
      %s200 = scalar_lea.vmem %s0, %s199
      %p201 = pneg %p36
      %p202 = pneg %p33
      %p203 = scmp.lt.s32.totalorder %s15, 1
      %s204 = scalar_select %p203, %s15, 1
      %s205 = smul.addr %s204, 4
      %s206 = smul.addr %s205, 8
      %s207 = scalar_lea.vmem %s1, %s206
      %p208 = pneg %p62
      %p209 = pneg %p59
      %p210 = scmp.lt.s32.totalorder %s15, 1
      %s211 = scalar_select %p210, %s15, 1
      %s212 = smul.addr %s211, 4
      %s213 = smul.addr %s212, 8
      %s214 = scalar_lea.vmem %s2, %s213
      %p215 = pneg %p88
      %p216 = pneg %p85
      %p217 = scmp.lt.s32.totalorder %s15, 1
      %s218 = scalar_select %p217, %s15, 1
      %s219 = scalar_lea.vmem %s3, %s218
      %p220 = pneg %p114
      %p221 = pneg %p111
      %p222 = pneg %p140
      %p223 = pneg %p137
      %p224 = scmp.lt.s32.totalorder %s15, 1
      %s225 = scalar_select %p224, %s15, 1
      %s226 = smul.addr %s225, 4
      %s227 = smul.addr %s226, 8
      %s228 = scalar_lea.vmem %s4, %s227
      %p229 = scmp.lt.s32.totalorder %s15, 1
      %s230 = scalar_select %p229, %s15, 1
      %s231 = smul.addr %s230, 4
      %s232 = smul.addr %s231, 8
      %s233 = scalar_lea.vmem %s0, %s232
      %p234 = scmp.lt.s32.totalorder %s15, 1
      %s235 = scalar_select %p234, %s15, 1
      %s236 = smul.addr %s235, 4
      %s237 = smul.addr %s236, 8
      %s238 = scalar_lea.vmem %s1, %s237
      %p239 = scmp.lt.s32.totalorder %s15, 1
      %s240 = scalar_select %p239, %s15, 1
      %s241 = smul.addr %s240, 4
      %s242 = smul.addr %s241, 8
      %s243 = scalar_lea.vmem %s2, %s242
      %p244 = scmp.lt.s32.totalorder %s15, 1
      %s245 = scalar_select %p244, %s15, 1
      %s246 = scalar_lea.vmem %s3, %s245
      %p247 = scmp.lt.s32.totalorder %s15, 1
      %s248 = scalar_select %p247, %s15, 1
      %s249 = smul.addr %s248, 4
      %s250 = smul.addr %s249, 8
      %s251 = scalar_lea.vmem %s4, %s250
      %v253 = vld [vmem:[%s233] sm:$0xff]
      %v254 = vld [vmem:[%s233 + $0x8] sm:$0xff]
      %v255 = vld [vmem:[%s233 + $0x10] sm:$0xff]
      %v256 = vld [vmem:[%s233 + $0x18] sm:$0xff]
      %v257 = vmul.f32 %v253, 0.35355338
      %v258 = vmul.f32 %v254, 0.35355338
      %v259 = vmul.f32 %v255, 0.35355338
      %v260 = vmul.f32 %v256, 0.35355338
      %v261 = vpack.c.bf16 %v257, %v257
      %v262 = vpack.c.bf16 %v258, %v258
      %v263 = vpack.c.bf16 %v259, %v259
      %v264 = vpack.c.bf16 %v260, %v260
      %v265 = vld [vmem:[%s238] sm:$0xff]
      %v266 = vld [vmem:[%s238 + $0x8] sm:$0xff]
      %v267 = vld [vmem:[%s238 + $0x10] sm:$0xff]
      %v268 = vld [vmem:[%s238 + $0x18] sm:$0xff]
      %v269 = vpack.c.bf16 %v265, %v265
      %v270 = vpack.c.bf16 %v266, %v266
      %v271 = vpack.c.bf16 %v267, %v267
      %v272 = vpack.c.bf16 %v268, %v268
      %v273 = vld [vmem:[%s243] sm:$0xff]
      %v274 = vld [vmem:[%s243 + $0x8] sm:$0xff]
      %v275 = vld [vmem:[%s243 + $0x10] sm:$0xff]
      %v276 = vld [vmem:[%s243 + $0x18] sm:$0xff]
      %v277 = vpack.c.bf16 %v273, %v273
      %v278 = vpack.c.bf16 %v274, %v274
      %v279 = vpack.c.bf16 %v275, %v275
      %v280 = vpack.c.bf16 %v276, %v276
      %v281 = vld [vmem:[%s246] sm:$0x1]
      %v283 = vlaneseq
      %v284 = vshrl.u32 %v283, 7
      %v285 = vsub.s32 0, %v284
      %v286 = vrot.slane %v281, %v285
      %vm288 = vcmask 64512
      %v290 = vsel %vm288, %v261, 0
      %v293 = vsel %vm288, %v269, 0
      %295 = vmatprep.subr.bf16.mxu0 0
      %296 = vmatpush1.bf16.xpose.msra.mxu0 %v293
      %297 = vmatprep.subr.bf16.mxu0 0
      %298 = vmatpush1.bf16.xpose.msra.mxu0 0
      %299 = vmatprep.subr.bf16.mxu0 0
      %300 = vmatpush1.bf16.xpose.msra.mxu0 0
      %301 = vmatprep.subr.bf16.mxu0 0
      %302 = vmatpush1.bf16.xpose.msra.mxu0 0
      %303 = vmatprep.subr.bf16.mxu0 0
      %304 = vmatpush1.bf16.xpose.msra.mxu0 0
      %305 = vmatprep.subr.bf16.mxu0 0
      %306 = vmatpush1.bf16.xpose.msra.mxu0 0
      %307 = vmatprep.subr.bf16.mxu0 0
      %308 = vmatpush1.bf16.xpose.msra.mxu0 0
      %309 = vmatprep.subr.bf16.mxu0 0
      %310 = vmatpush1.bf16.xpose.msra.mxu0 0
      %311 = vmatprep.subr.bf16.mxu0 0
      %312 = vmatpush1.bf16.xpose.msra.mxu0 0
      %313 = vmatprep.subr.bf16.mxu0 0
      %314 = vmatpush1.bf16.xpose.msra.mxu0 0
      %315 = vmatprep.subr.bf16.mxu0 0
      %316 = vmatpush1.bf16.xpose.msra.mxu0 0
      %317 = vmatprep.subr.bf16.mxu0 0
      %318 = vmatpush1.bf16.xpose.msra.mxu0 0
      %319 = vmatprep.subr.bf16.mxu0 0
      %320 = vmatpush1.bf16.xpose.msra.mxu0 0
      %321 = vmatprep.subr.bf16.mxu0 0
      %322 = vmatpush1.bf16.xpose.msra.mxu0 0
      %323 = vmatprep.subr.bf16.mxu0 0
      %324 = vmatpush1.bf16.xpose.msra.mxu0 0
      %325 = vmatprep.subr.bf16.mxu0 0
      %326 = vmatpush1.bf16.xpose.msra.mxu0 0
      %327 = vmatprep.mubr.bf16.mxu0 0
      %328 = vmatmul.mubr.bf16.gmra.mrb[0].mxu0 %v290
      %v329 = vpop.f32.mrb[0].mxu0
      %v330 = vadd.f32 %v286, %v329
      %v331 = vpop.f32.mrb[0].mxu0
      %v332 = vpop.f32.mrb[0].mxu0
      %v333 = vpop.f32.mrb[0].mxu0
      %334 = vdwg.mxu0
      %v336 = vsel %vm288, %v262, 0
      %v339 = vsel %vm288, %v270, 0
      %341 = vmatprep.subr.bf16.mxu0 0
      %342 = vmatpush1.bf16.xpose.msra.mxu0 %v339
      %343 = vmatprep.subr.bf16.mxu0 0
      %344 = vmatpush1.bf16.xpose.msra.mxu0 0
      %345 = vmatprep.subr.bf16.mxu0 0
      %346 = vmatpush1.bf16.xpose.msra.mxu0 0
      %347 = vmatprep.subr.bf16.mxu0 0
      %348 = vmatpush1.bf16.xpose.msra.mxu0 0
      %349 = vmatprep.subr.bf16.mxu0 0
      %350 = vmatpush1.bf16.xpose.msra.mxu0 0
      %351 = vmatprep.subr.bf16.mxu0 0
      %352 = vmatpush1.bf16.xpose.msra.mxu0 0
      %353 = vmatprep.subr.bf16.mxu0 0
      %354 = vmatpush1.bf16.xpose.msra.mxu0 0
      %355 = vmatprep.subr.bf16.mxu0 0
      %356 = vmatpush1.bf16.xpose.msra.mxu0 0
      %357 = vmatprep.subr.bf16.mxu0 0
      %358 = vmatpush1.bf16.xpose.msra.mxu0 0
      %359 = vmatprep.subr.bf16.mxu0 0
      %360 = vmatpush1.bf16.xpose.msra.mxu0 0
      %361 = vmatprep.subr.bf16.mxu0 0
      %362 = vmatpush1.bf16.xpose.msra.mxu0 0
      %363 = vmatprep.subr.bf16.mxu0 0
      %364 = vmatpush1.bf16.xpose.msra.mxu0 0
      %365 = vmatprep.subr.bf16.mxu0 0
      %366 = vmatpush1.bf16.xpose.msra.mxu0 0
      %367 = vmatprep.subr.bf16.mxu0 0
      %368 = vmatpush1.bf16.xpose.msra.mxu0 0
      %369 = vmatprep.subr.bf16.mxu0 0
      %370 = vmatpush1.bf16.xpose.msra.mxu0 0
      %371 = vmatprep.subr.bf16.mxu0 0
      %372 = vmatpush1.bf16.xpose.msra.mxu0 0
      %373 = vmatprep.mubr.bf16.mxu0 0
      %374 = vmatmul.mubr.bf16.gmra.mrb[0].mxu0 %v336
      %v375 = vpop.f32.mrb[0].mxu0
      %v376 = vadd.f32 %v286, %v375
      %v377 = vpop.f32.mrb[0].mxu0
      %v378 = vpop.f32.mrb[0].mxu0
      %v379 = vpop.f32.mrb[0].mxu0
      %380 = vdwg.mxu0
      %v382 = vsel %vm288, %v263, 0
      %v385 = vsel %vm288, %v271, 0
      %387 = vmatprep.subr.bf16.mxu0 0
      %388 = vmatpush1.bf16.xpose.msra.mxu0 %v385
      %389 = vmatprep.subr.bf16.mxu0 0
      %390 = vmatpush1.bf16.xpose.msra.mxu0 0
      %391 = vmatprep.subr.bf16.mxu0 0
      %392 = vmatpush1.bf16.xpose.msra.mxu0 0
      %393 = vmatprep.subr.bf16.mxu0 0
      %394 = vmatpush1.bf16.xpose.msra.mxu0 0
      %395 = vmatprep.subr.bf16.mxu0 0
      %396 = vmatpush1.bf16.xpose.msra.mxu0 0
      %397 = vmatprep.subr.bf16.mxu0 0
      %398 = vmatpush1.bf16.xpose.msra.mxu0 0
      %399 = vmatprep.subr.bf16.mxu0 0
      %400 = vmatpush1.bf16.xpose.msra.mxu0 0
      %401 = vmatprep.subr.bf16.mxu0 0
      %402 = vmatpush1.bf16.xpose.msra.mxu0 0
      %403 = vmatprep.subr.bf16.mxu0 0
      %404 = vmatpush1.bf16.xpose.msra.mxu0 0
      %405 = vmatprep.subr.bf16.mxu0 0
      %406 = vmatpush1.bf16.xpose.msra.mxu0 0
      %407 = vmatprep.subr.bf16.mxu0 0
      %408 = vmatpush1.bf16.xpose.msra.mxu0 0
      %409 = vmatprep.subr.bf16.mxu0 0
      %410 = vmatpush1.bf16.xpose.msra.mxu0 0
      %411 = vmatprep.subr.bf16.mxu0 0
      %412 = vmatpush1.bf16.xpose.msra.mxu0 0
      %413 = vmatprep.subr.bf16.mxu0 0
      %414 = vmatpush1.bf16.xpose.msra.mxu0 0
      %415 = vmatprep.subr.bf16.mxu0 0
      %416 = vmatpush1.bf16.xpose.msra.mxu0 0
      %417 = vmatprep.subr.bf16.mxu0 0
      %418 = vmatpush1.bf16.xpose.msra.mxu0 0
      %419 = vmatprep.mubr.bf16.mxu0 0
      %420 = vmatmul.mubr.bf16.gmra.mrb[0].mxu0 %v382
      %v421 = vpop.f32.mrb[0].mxu0
      %v422 = vadd.f32 %v286, %v421
      %v423 = vpop.f32.mrb[0].mxu0
      %v424 = vpop.f32.mrb[0].mxu0
      %v425 = vpop.f32.mrb[0].mxu0
      %426 = vdwg.mxu0
      %v428 = vsel %vm288, %v264, 0
      %v431 = vsel %vm288, %v272, 0
      %433 = vmatprep.subr.bf16.mxu0 0
      %434 = vmatpush1.bf16.xpose.msra.mxu0 %v431
      %435 = vmatprep.subr.bf16.mxu0 0
      %436 = vmatpush1.bf16.xpose.msra.mxu0 0
      %437 = vmatprep.subr.bf16.mxu0 0
      %438 = vmatpush1.bf16.xpose.msra.mxu0 0
      %439 = vmatprep.subr.bf16.mxu0 0
      %440 = vmatpush1.bf16.xpose.msra.mxu0 0
      %441 = vmatprep.subr.bf16.mxu0 0
      %442 = vmatpush1.bf16.xpose.msra.mxu0 0
      %443 = vmatprep.subr.bf16.mxu0 0
      %444 = vmatpush1.bf16.xpose.msra.mxu0 0
      %445 = vmatprep.subr.bf16.mxu0 0
      %446 = vmatpush1.bf16.xpose.msra.mxu0 0
      %447 = vmatprep.subr.bf16.mxu0 0
      %448 = vmatpush1.bf16.xpose.msra.mxu0 0
      %449 = vmatprep.subr.bf16.mxu0 0
      %450 = vmatpush1.bf16.xpose.msra.mxu0 0
      %451 = vmatprep.subr.bf16.mxu0 0
      %452 = vmatpush1.bf16.xpose.msra.mxu0 0
      %453 = vmatprep.subr.bf16.mxu0 0
      %454 = vmatpush1.bf16.xpose.msra.mxu0 0
      %455 = vmatprep.subr.bf16.mxu0 0
      %456 = vmatpush1.bf16.xpose.msra.mxu0 0
      %457 = vmatprep.subr.bf16.mxu0 0
      %458 = vmatpush1.bf16.xpose.msra.mxu0 0
      %459 = vmatprep.subr.bf16.mxu0 0
      %460 = vmatpush1.bf16.xpose.msra.mxu0 0
      %461 = vmatprep.subr.bf16.mxu0 0
      %462 = vmatpush1.bf16.xpose.msra.mxu0 0
      %463 = vmatprep.subr.bf16.mxu0 0
      %464 = vmatpush1.bf16.xpose.msra.mxu0 0
      %465 = vmatprep.mubr.bf16.mxu0 0
      %466 = vmatmul.mubr.bf16.gmra.mrb[0].mxu0 %v428
      %v467 = vpop.f32.mrb[0].mxu0
      %v468 = vadd.f32 %v286, %v467
      %v469 = vpop.f32.mrb[0].mxu0
      %v470 = vpop.f32.mrb[0].mxu0
      %v471 = vpop.f32.mrb[0].mxu0
      %472 = vdwg.mxu0
      %v473 = vsel %vm288, %v330, -inf
      %474 = vmax.xlane.f32.xlu0 %v473
      %v475 = vpop.xlane.xlu0 %474
      %v476 = vsel %vm288, %v376, -inf
      %477 = vmax.xlane.f32.xlu0 %v476
      %v478 = vpop.xlane.xlu0 %477
      %v479 = vsel %vm288, %v422, -inf
      %480 = vmax.xlane.f32.xlu0 %v479
      %v481 = vpop.xlane.xlu0 %480
      %v482 = vsel %vm288, %v468, -inf
      %483 = vmax.xlane.f32.xlu0 %v482
      %v484 = vpop.xlane.xlu0 %483
      %v485 = vsub.f32 %v330, %v475
      %v486 = vsub.f32 %v376, %v478
      %v487 = vsub.f32 %v422, %v481
      %v488 = vsub.f32 %v468, %v484
      %v489 = vmul.f32 %v485, 1.442695
      %v490 = vpow.pop %v489
      %v491 = vmul.f32 %v486, 1.442695
      %v492 = vpow.pop %v491
      %v493 = vmul.f32 %v487, 1.442695
      %v494 = vpow.pop %v493
      %v495 = vmul.f32 %v488, 1.442695
      %v496 = vpow.pop %v495
      %v497 = vsel %vm288, %v490, 0.0
      %498 = vadd.xlane.f32.xlu0 %v497
      %v499 = vpop.xlane.xlu0 %498
      %v500 = vsel %vm288, %v492, 0.0
      %501 = vadd.xlane.f32.xlu0 %v500
      %v502 = vpop.xlane.xlu0 %501
      %v503 = vsel %vm288, %v494, 0.0
      %504 = vadd.xlane.f32.xlu0 %v503
      %v505 = vpop.xlane.xlu0 %504
      %v506 = vsel %vm288, %v496, 0.0
      %507 = vadd.xlane.f32.xlu0 %v506
      %v508 = vpop.xlane.xlu0 %507
      %v509 = vrcp.pop %v499
      %v510 = vrcp.pop %v502
      %v511 = vrcp.pop %v505
      %v512 = vrcp.pop %v508
      %v513 = vmul.f32 %v490, %v509
      %v514 = vmul.f32 %v492, %v510
      %v515 = vmul.f32 %v494, %v511
      %v516 = vmul.f32 %v496, %v512
      %v517 = vpack.c.bf16 %v513, %v513
      %v518 = vpack.c.bf16 %v514, %v514
      %v519 = vpack.c.bf16 %v515, %v515
      %v520 = vpack.c.bf16 %v516, %v516
      %v522 = vsel %vm288, %v517, 0
      %vm524 = vcmask 1043456
      %v526 = vsel %vm524, %v277, 0
      %528 = vmatprep.subr.bf16.mxu0 0
      %529 = vmatpush1.bf16.msra.mxu0 %v526
      %530 = vmatprep.subr.bf16.mxu0 0
      %531 = vmatpush1.bf16.msra.mxu0 0
      %532 = vmatprep.subr.bf16.mxu0 0
      %533 = vmatpush1.bf16.msra.mxu0 0
      %534 = vmatprep.subr.bf16.mxu0 0
      %535 = vmatpush1.bf16.msra.mxu0 0
      %536 = vmatprep.subr.bf16.mxu0 0
      %537 = vmatpush1.bf16.msra.mxu0 0
      %538 = vmatprep.subr.bf16.mxu0 0
      %539 = vmatpush1.bf16.msra.mxu0 0
      %540 = vmatprep.subr.bf16.mxu0 0
      %541 = vmatpush1.bf16.msra.mxu0 0
      %542 = vmatprep.subr.bf16.mxu0 0
      %543 = vmatpush1.bf16.msra.mxu0 0
      %544 = vmatprep.subr.bf16.mxu0 0
      %545 = vmatpush1.bf16.msra.mxu0 0
      %546 = vmatprep.subr.bf16.mxu0 0
      %547 = vmatpush1.bf16.msra.mxu0 0
      %548 = vmatprep.subr.bf16.mxu0 0
      %549 = vmatpush1.bf16.msra.mxu0 0
      %550 = vmatprep.subr.bf16.mxu0 0
      %551 = vmatpush1.bf16.msra.mxu0 0
      %552 = vmatprep.subr.bf16.mxu0 0
      %553 = vmatpush1.bf16.msra.mxu0 0
      %554 = vmatprep.subr.bf16.mxu0 0
      %555 = vmatpush1.bf16.msra.mxu0 0
      %556 = vmatprep.subr.bf16.mxu0 0
      %557 = vmatpush1.bf16.msra.mxu0 0
      %558 = vmatprep.subr.bf16.mxu0 0
      %559 = vmatpush1.bf16.msra.mxu0 0
      %560 = vmatprep.mubr.bf16.mxu0 0
      %561 = vmatmul.mubr.bf16.gmra.mrb[0].mxu0 %v522
      %v562 = vpop.f32.mrb[0].mxu0
      %v563 = vadd.f32 0.0, %v562
      %v564 = vpop.f32.mrb[0].mxu0
      %v565 = vpop.f32.mrb[0].mxu0
      %v566 = vpop.f32.mrb[0].mxu0
      %567 = vdwg.mxu0
      %v569 = vsel %vm288, %v518, 0
      %v572 = vsel %vm524, %v278, 0
      %574 = vmatprep.subr.bf16.mxu0 0
      %575 = vmatpush1.bf16.msra.mxu0 %v572
      %576 = vmatprep.subr.bf16.mxu0 0
      %577 = vmatpush1.bf16.msra.mxu0 0
      %578 = vmatprep.subr.bf16.mxu0 0
      %579 = vmatpush1.bf16.msra.mxu0 0
      %580 = vmatprep.subr.bf16.mxu0 0
      %581 = vmatpush1.bf16.msra.mxu0 0
      %582 = vmatprep.subr.bf16.mxu0 0
      %583 = vmatpush1.bf16.msra.mxu0 0
      %584 = vmatprep.subr.bf16.mxu0 0
      %585 = vmatpush1.bf16.msra.mxu0 0
      %586 = vmatprep.subr.bf16.mxu0 0
      %587 = vmatpush1.bf16.msra.mxu0 0
      %588 = vmatprep.subr.bf16.mxu0 0
      %589 = vmatpush1.bf16.msra.mxu0 0
      %590 = vmatprep.subr.bf16.mxu0 0
      %591 = vmatpush1.bf16.msra.mxu0 0
      %592 = vmatprep.subr.bf16.mxu0 0
      %593 = vmatpush1.bf16.msra.mxu0 0
      %594 = vmatprep.subr.bf16.mxu0 0
      %595 = vmatpush1.bf16.msra.mxu0 0
      %596 = vmatprep.subr.bf16.mxu0 0
      %597 = vmatpush1.bf16.msra.mxu0 0
      %598 = vmatprep.subr.bf16.mxu0 0
      %599 = vmatpush1.bf16.msra.mxu0 0
      %600 = vmatprep.subr.bf16.mxu0 0
      %601 = vmatpush1.bf16.msra.mxu0 0
      %602 = vmatprep.subr.bf16.mxu0 0
      %603 = vmatpush1.bf16.msra.mxu0 0
      %604 = vmatprep.subr.bf16.mxu0 0
      %605 = vmatpush1.bf16.msra.mxu0 0
      %606 = vmatprep.mubr.bf16.mxu0 0
      %607 = vmatmul.mubr.bf16.gmra.mrb[0].mxu0 %v569
      %v608 = vpop.f32.mrb[0].mxu0
      %v609 = vadd.f32 0.0, %v608
      %v610 = vpop.f32.mrb[0].mxu0
      %v611 = vpop.f32.mrb[0].mxu0
      %v612 = vpop.f32.mrb[0].mxu0
      %613 = vdwg.mxu0
      %v615 = vsel %vm288, %v519, 0
      %v618 = vsel %vm524, %v279, 0
      %620 = vmatprep.subr.bf16.mxu0 0
      %621 = vmatpush1.bf16.msra.mxu0 %v618
      %622 = vmatprep.subr.bf16.mxu0 0
      %623 = vmatpush1.bf16.msra.mxu0 0
      %624 = vmatprep.subr.bf16.mxu0 0
      %625 = vmatpush1.bf16.msra.mxu0 0
      %626 = vmatprep.subr.bf16.mxu0 0
      %627 = vmatpush1.bf16.msra.mxu0 0
      %628 = vmatprep.subr.bf16.mxu0 0
      %629 = vmatpush1.bf16.msra.mxu0 0
      %630 = vmatprep.subr.bf16.mxu0 0
      %631 = vmatpush1.bf16.msra.mxu0 0
      %632 = vmatprep.subr.bf16.mxu0 0
      %633 = vmatpush1.bf16.msra.mxu0 0
      %634 = vmatprep.subr.bf16.mxu0 0
      %635 = vmatpush1.bf16.msra.mxu0 0
      %636 = vmatprep.subr.bf16.mxu0 0
      %637 = vmatpush1.bf16.msra.mxu0 0
      %638 = vmatprep.subr.bf16.mxu0 0
      %639 = vmatpush1.bf16.msra.mxu0 0
      %640 = vmatprep.subr.bf16.mxu0 0
      %641 = vmatpush1.bf16.msra.mxu0 0
      %642 = vmatprep.subr.bf16.mxu0 0
      %643 = vmatpush1.bf16.msra.mxu0 0
      %644 = vmatprep.subr.bf16.mxu0 0
      %645 = vmatpush1.bf16.msra.mxu0 0
      %646 = vmatprep.subr.bf16.mxu0 0
      %647 = vmatpush1.bf16.msra.mxu0 0
      %648 = vmatprep.subr.bf16.mxu0 0
      %649 = vmatpush1.bf16.msra.mxu0 0
      %650 = vmatprep.subr.bf16.mxu0 0
      %651 = vmatpush1.bf16.msra.mxu0 0
      %652 = vmatprep.mubr.bf16.mxu0 0
      %653 = vmatmul.mubr.bf16.gmra.mrb[0].mxu0 %v615
      %v654 = vpop.f32.mrb[0].mxu0
      %v655 = vadd.f32 0.0, %v654
      %v656 = vpop.f32.mrb[0].mxu0
      %v657 = vpop.f32.mrb[0].mxu0
      %v658 = vpop.f32.mrb[0].mxu0
      %659 = vdwg.mxu0
      %v661 = vsel %vm288, %v520, 0
      %v664 = vsel %vm524, %v280, 0
      %666 = vmatprep.subr.bf16.mxu0 0
      %667 = vmatpush1.bf16.msra.mxu0 %v664
      %668 = vmatprep.subr.bf16.mxu0 0
      %669 = vmatpush1.bf16.msra.mxu0 0
      %670 = vmatprep.subr.bf16.mxu0 0
      %671 = vmatpush1.bf16.msra.mxu0 0
      %672 = vmatprep.subr.bf16.mxu0 0
      %673 = vmatpush1.bf16.msra.mxu0 0
      %674 = vmatprep.subr.bf16.mxu0 0
      %675 = vmatpush1.bf16.msra.mxu0 0
      %676 = vmatprep.subr.bf16.mxu0 0
      %677 = vmatpush1.bf16.msra.mxu0 0
      %678 = vmatprep.subr.bf16.mxu0 0
      %679 = vmatpush1.bf16.msra.mxu0 0
      %680 = vmatprep.subr.bf16.mxu0 0
      %681 = vmatpush1.bf16.msra.mxu0 0
      %682 = vmatprep.subr.bf16.mxu0 0
      %683 = vmatpush1.bf16.msra.mxu0 0
      %684 = vmatprep.subr.bf16.mxu0 0
      %685 = vmatpush1.bf16.msra.mxu0 0
      %686 = vmatprep.subr.bf16.mxu0 0
      %687 = vmatpush1.bf16.msra.mxu0 0
      %688 = vmatprep.subr.bf16.mxu0 0
      %689 = vmatpush1.bf16.msra.mxu0 0
      %690 = vmatprep.subr.bf16.mxu0 0
      %691 = vmatpush1.bf16.msra.mxu0 0
      %692 = vmatprep.subr.bf16.mxu0 0
      %693 = vmatpush1.bf16.msra.mxu0 0
      %694 = vmatprep.subr.bf16.mxu0 0
      %695 = vmatpush1.bf16.msra.mxu0 0
      %696 = vmatprep.subr.bf16.mxu0 0
      %697 = vmatpush1.bf16.msra.mxu0 0
      %698 = vmatprep.mubr.bf16.mxu0 0
      %699 = vmatmul.mubr.bf16.gmra.mrb[0].mxu0 %v661
      %v700 = vpop.f32.mrb[0].mxu0
      %v701 = vadd.f32 0.0, %v700
      %v702 = vpop.f32.mrb[0].mxu0
      %v703 = vpop.f32.mrb[0].mxu0
      %v704 = vpop.f32.mrb[0].mxu0
      %705 = vdwg.mxu0
      %706 = vst.msk [vmem:[%s251] sm:$0xff] %vm288, %v563
      %707 = vst.msk [vmem:[%s251 + $0x8] sm:$0xff] %vm288, %v609
      %708 = vst.msk [vmem:[%s251 + $0x10] sm:$0xff] %vm288, %v655
      %709 = vst.msk [vmem:[%s251 + $0x18] sm:$0xff] %vm288, %v701
      %p710 = scmp.lt.s32.totalorder %s15, 1
      %s711 = scalar_select %p710, %s15, 1
      %s712 = smul.addr %s711, 4
      %s713 = smul.addr %s712, 8
      %s714 = scalar_lea.vmem %s4, %s713
      // Predicated region
      $region37: #{transformer_forward.38} parent=35 // pred_check
        %p715 = pneg %p137
      $region38: #{transformer_forward.38} parent=35 // pred_check_branch
        %717 = sbr.rel (%p715) target = $region40
      $region39: #{transformer_forward.38} parent=35 // pred_region
        _
      $region40: #{transformer_forward.38} parent=35 // pred_fallthru
        _
    $region36: #{transformer_forward.38} parent=5 // pred_fallthru
      _
    %p718 = scmp.le.s32.totalorder 2, %s10
    // Predicated region
    $region41: #{transformer_forward.38} parent=5 // pred_check
      %p719 = pneg %p718
    $region42: #{transformer_forward.38} parent=5 // pred_check_branch
      %721 = sbr.rel (%p719) target = $region44
    $region43: #{transformer_forward.38} parent=5 // pred_region
      %s722 = ssub.s32 %s10, 2
      // Predicated region
      $region45: #{transformer_forward.38} parent=43 // pred_check
        %p723 = pneg %p143
      $region46: #{transformer_forward.38} parent=43 // pred_check_branch
        %725 = sbr.rel (%p723) target = $region48
      $region47: #{transformer_forward.38} parent=43 // pred_region
        %p726 = scmp.lt.s32.totalorder %s16, 1
        %s727 = scalar_select %p726, %s16, 1
        %s728 = smul.addr %s727, 4
        %s729 = smul.addr %s728, 8
        %s730 = scalar_lea.vmem %s4, %s729
      $region48: #{transformer_forward.38} parent=43 // pred_fallthru
        _
    $region44: #{transformer_forward.38} parent=5 // pred_fallthru
      _
  $region6: #{transformer_forward.38} parent=0 // loop_footer
    %s14 = sadd.s32 1, %s10
  $region7: #{transformer_forward.38} parent=0 // loop_footer_branch
    %9 = sbr.rel target = $region3
  $region8: #{transformer_forward.38} parent=0 // loop_exit
    _

// kernel: transformer_forward.41
$region0: #{transformer_forward.41}
  #allocation0 [shape = 'u32[]', space=smem, size = 0x4, offset = 0x4, fixed_abs, tag = 'smem constant byte address 0x4 - core index']
  #allocation1 [shape = 'u32[144,128]{1,0:T(1,128)}', space=vmem, size = 0x12000, scoped, tag = 'internal scratch']
  %s0 = inlined_call_operand.vmem [shape: f32[16,32], index: 0, kind: input, shape index: {}]
  %s1 = inlined_call_operand.vmem [shape: bf16[32,128], index: 1, kind: input, shape index: {}]
  %s2 = inlined_call_operand.vmem [shape: f32[1,128], index: 2, kind: input, shape index: {}]
  %s3 = inlined_call_operand.vmem [shape: bf16[128,32], index: 3, kind: input, shape index: {}]
  %s4 = inlined_call_operand.vmem [shape: f32[1,32], index: 4, kind: input, shape index: {}]
  %s5 = inlined_call_operand.vmem [shape: f32[16,32], index: 5, kind: output, shape index: {}]
  %s6 = sld [smem:[#allocation0]]
  $region30: #{transformer_forward.41} parent=0
    _
  %s8 = ssub.s32 1, %s6
  %s9 = scalar_select 0, %s8, %s6
  // Predicated region
  $region2: #{transformer_forward.41} parent=0 // pred_check
    _
  $region3: #{transformer_forward.41} parent=0 // pred_check_branch
    %11 = sbr.rel (0) target = $region5
  $region4: #{transformer_forward.41} parent=0 // pred_region
    _
  $region5: #{transformer_forward.41} parent=0 // pred_fallthru
    _
  // Predicated region
  $region6: #{transformer_forward.41} parent=0 // pred_check
    _
  $region7: #{transformer_forward.41} parent=0 // pred_check_branch
    %13 = sbr.rel (0) target = $region9
  $region8: #{transformer_forward.41} parent=0 // pred_region
    _
  $region9: #{transformer_forward.41} parent=0 // pred_fallthru
    _
  // Predicated region
  $region10: #{transformer_forward.41} parent=0 // pred_check
    _
  $region11: #{transformer_forward.41} parent=0 // pred_check_branch
    %15 = sbr.rel (0) target = $region13
  $region12: #{transformer_forward.41} parent=0 // pred_region
    _
  $region13: #{transformer_forward.41} parent=0 // pred_fallthru
    _
  // Predicated region
  $region14: #{transformer_forward.41} parent=0 // pred_check
    _
  $region15: #{transformer_forward.41} parent=0 // pred_check_branch
    %17 = sbr.rel (0) target = $region17
  $region16: #{transformer_forward.41} parent=0 // pred_region
    _
  $region17: #{transformer_forward.41} parent=0 // pred_fallthru
    _
  // Predicated region
  $region18: #{transformer_forward.41} parent=0 // pred_check
    _
  $region19: #{transformer_forward.41} parent=0 // pred_check_branch
    %19 = sbr.rel (0) target = $region21
  $region20: #{transformer_forward.41} parent=0 // pred_region
    _
  $region21: #{transformer_forward.41} parent=0 // pred_fallthru
    _
  %v21 = vld [vmem:[%s0] sm:$0xff]
  %v22 = vld [vmem:[%s0 + $0x8] sm:$0xff]
  %v23 = vpack.c.bf16 %v22, %v21
  %v24 = vld [vmem:[%s1] sm:$0xf]
  %v25 = vld [vmem:[%s1 + $0x4] sm:$0xf]
  %v26 = vld [vmem:[%s1 + $0x8] sm:$0xf]
  %v27 = vld [vmem:[%s1 + $0xc] sm:$0xf]
  %v28 = vld [vmem:[%s2] sm:$0x1]
  %v30 = vlaneseq
  %v31 = vshrl.u32 %v30, 7
  %v32 = vsub.s32 0, %v31
  %v33 = vrot.slane %v28, %v32
  %v39 = vunpack.c.l.b16 %v24
  %v40 = vunpack.c.l.b16 %v25
  %v41 = vunpack.c.l.b16 %v26
  %v42 = vunpack.c.l.b16 %v27
  %v43 = vpack.c.b16 %v40, %v39
  %v44 = vpack.c.b16 %v42, %v41
  %vm47 = vcmask 261120
  %v49 = vsel %vm47, %v23, 0
  %51 = vmatprep.subr.bf16.mxu0 0
  %52 = vmatpush1.bf16.msra.mxu0 %v43
  %53 = vmatprep.subr.bf16.mxu0 0
  %54 = vmatpush1.bf16.msra.mxu0 %v44
  %55 = vmatprep.subr.bf16.mxu0 0
  %56 = vmatpush1.bf16.msra.mxu0 0
  %57 = vmatprep.subr.bf16.mxu0 0
  %58 = vmatpush1.bf16.msra.mxu0 0
  %59 = vmatprep.subr.bf16.mxu0 0
  %60 = vmatpush1.bf16.msra.mxu0 0
  %61 = vmatprep.subr.bf16.mxu0 0
  %62 = vmatpush1.bf16.msra.mxu0 0
  %63 = vmatprep.subr.bf16.mxu0 0
  %64 = vmatpush1.bf16.msra.mxu0 0
  %65 = vmatprep.subr.bf16.mxu0 0
  %66 = vmatpush1.bf16.msra.mxu0 0
  %67 = vmatprep.subr.bf16.mxu0 0
  %68 = vmatpush1.bf16.msra.mxu0 0
  %69 = vmatprep.subr.bf16.mxu0 0
  %70 = vmatpush1.bf16.msra.mxu0 0
  %71 = vmatprep.subr.bf16.mxu0 0
  %72 = vmatpush1.bf16.msra.mxu0 0
  %73 = vmatprep.subr.bf16.mxu0 0
  %74 = vmatpush1.bf16.msra.mxu0 0
  %75 = vmatprep.subr.bf16.mxu0 0
  %76 = vmatpush1.bf16.msra.mxu0 0
  %77 = vmatprep.subr.bf16.mxu0 0
  %78 = vmatpush1.bf16.msra.mxu0 0
  %79 = vmatprep.subr.bf16.mxu0 0
  %80 = vmatpush1.bf16.msra.mxu0 0
  %81 = vmatprep.subr.bf16.mxu0 0
  %82 = vmatpush1.bf16.msra.mxu0 0
  %83 = vmatprep.mubr.bf16.mxu0 0
  %84 = vmatmul.mubr.bf16.gmra.mrb[0].mxu0 %v49
  %v85 = vpop.f32.mrb[0].mxu0
  %v86 = vadd.f32 %v33, %v85
  %v87 = vpop.f32.mrb[0].mxu0
  %v88 = vpop.f32.mrb[0].mxu0
  %v89 = vadd.f32 %v33, %v88
  %v90 = vpop.f32.mrb[0].mxu0
  %91 = vdwg.mxu0
  %v92 = vmax.f32 %v86, 0.0
  %v93 = vmax.f32 %v89, 0.0
  %v94 = vpack.c.bf16 %v93, %v92
  %v95 = vld [vmem:[%s3] sm:$0xf]
  %v96 = vld [vmem:[%s3 + $0x4] sm:$0xf]
  %v97 = vld [vmem:[%s3 + $0x8] sm:$0xf]
  %v98 = vld [vmem:[%s3 + $0xc] sm:$0xf]
  %v99 = vld [vmem:[%s3 + $0x10] sm:$0xf]
  %v100 = vld [vmem:[%s3 + $0x14] sm:$0xf]
  %v101 = vld [vmem:[%s3 + $0x18] sm:$0xf]
  %v102 = vld [vmem:[%s3 + $0x1c] sm:$0xf]
  %v103 = vld [vmem:[%s3 + $0x20] sm:$0xf]
  %v104 = vld [vmem:[%s3 + $0x24] sm:$0xf]
  %v105 = vld [vmem:[%s3 + $0x28] sm:$0xf]
  %v106 = vld [vmem:[%s3 + $0x2c] sm:$0xf]
  %v107 = vld [vmem:[%s3 + $0x30] sm:$0xf]
  %v108 = vld [vmem:[%s3 + $0x34] sm:$0xf]
  %v109 = vld [vmem:[%s3 + $0x38] sm:$0xf]
  %v110 = vld [vmem:[%s3 + $0x3c] sm:$0xf]
  %v111 = vld [vmem:[%s4] sm:$0x1]
  %v113 = vlaneseq
  %v114 = vshrl.u32 %v113, 7
  %v115 = vsub.s32 0, %v114
  %v116 = vrot.slane %v111, %v115
  %v134 = vunpack.c.l.b16 %v95
  %v135 = vunpack.c.l.b16 %v96
  %v136 = vunpack.c.l.b16 %v97
  %v137 = vunpack.c.l.b16 %v98
  %v138 = vunpack.c.l.b16 %v99
  %v139 = vunpack.c.l.b16 %v100
  %v140 = vunpack.c.l.b16 %v101
  %v141 = vunpack.c.l.b16 %v102
  %v142 = vunpack.c.l.b16 %v103
  %v143 = vunpack.c.l.b16 %v104
  %v144 = vunpack.c.l.b16 %v105
  %v145 = vunpack.c.l.b16 %v106
  %v146 = vunpack.c.l.b16 %v107
  %v147 = vunpack.c.l.b16 %v108
  %v148 = vunpack.c.l.b16 %v109
  %v149 = vunpack.c.l.b16 %v110
  %v150 = vpack.c.b16 %v135, %v134
  %v151 = vpack.c.b16 %v137, %v136
  %v152 = vpack.c.b16 %v139, %v138
  %v153 = vpack.c.b16 %v141, %v140
  %v154 = vpack.c.b16 %v143, %v142
  %v155 = vpack.c.b16 %v145, %v144
  %v156 = vpack.c.b16 %v147, %v146
  %v157 = vpack.c.b16 %v149, %v148
  %166 = vmatprep.subr.bf16.mxu0 0
  %167 = vmatpush1.bf16.msra.mxu0 %v150
  %168 = vmatprep.subr.bf16.mxu0 0
  %169 = vmatpush1.bf16.msra.mxu0 %v151
  %170 = vmatprep.subr.bf16.mxu0 0
  %171 = vmatpush1.bf16.msra.mxu0 %v152
  %172 = vmatprep.subr.bf16.mxu0 0
  %173 = vmatpush1.bf16.msra.mxu0 %v153
  %174 = vmatprep.subr.bf16.mxu0 0
  %175 = vmatpush1.bf16.msra.mxu0 %v154
  %176 = vmatprep.subr.bf16.mxu0 0
  %177 = vmatpush1.bf16.msra.mxu0 %v155
  %178 = vmatprep.subr.bf16.mxu0 0
  %179 = vmatpush1.bf16.msra.mxu0 %v156
  %180 = vmatprep.subr.bf16.mxu0 0
  %181 = vmatpush1.bf16.msra.mxu0 %v157
  %182 = vmatprep.subr.bf16.mxu0 0
  %183 = vmatpush1.bf16.msra.mxu0 0
  %184 = vmatprep.subr.bf16.mxu0 0
  %185 = vmatpush1.bf16.msra.mxu0 0
  %186 = vmatprep.subr.bf16.mxu0 0
  %187 = vmatpush1.bf16.msra.mxu0 0
  %188 = vmatprep.subr.bf16.mxu0 0
  %189 = vmatpush1.bf16.msra.mxu0 0
  %190 = vmatprep.subr.bf16.mxu0 0
  %191 = vmatpush1.bf16.msra.mxu0 0
  %192 = vmatprep.subr.bf16.mxu0 0
  %193 = vmatpush1.bf16.msra.mxu0 0
  %194 = vmatprep.subr.bf16.mxu0 0
  %195 = vmatpush1.bf16.msra.mxu0 0
  %196 = vmatprep.subr.bf16.mxu0 0
  %197 = vmatpush1.bf16.msra.mxu0 0
  %198 = vmatprep.mubr.bf16.mxu0 0
  %199 = vmatmul.mubr.bf16.gmra.mrb[0].mxu0 %v94
  %v200 = vpop.f32.mrb[0].mxu0
  %v201 = vadd.f32 %v116, %v200
  %v202 = vpop.f32.mrb[0].mxu0
  %v203 = vpop.f32.mrb[0].mxu0
  %v204 = vadd.f32 %v116, %v203
  %v205 = vpop.f32.mrb[0].mxu0
  %206 = vdwg.mxu0
  %207 = vst.msk [vmem:[%s5] sm:$0xff] %vm47, %v201
  %208 = vst.msk [vmem:[%s5 + $0x8] sm:$0xff] %vm47, %v204
  // Predicated region
  $region22: #{transformer_forward.41} parent=0 // pred_check
    _
  $region23: #{transformer_forward.41} parent=0 // pred_check_branch
    %210 = sbr.rel (0) target = $region25
  $region24: #{transformer_forward.41} parent=0 // pred_region
    _
  $region25: #{transformer_forward.41} parent=0 // pred_fallthru
    _
  // Predicated region
  $region26: #{transformer_forward.41} parent=0 // pred_check
    _
  $region27: #{transformer_forward.41} parent=0 // pred_check_branch
    %212 = sbr.rel (0) target = $region29
  $region28: #{transformer_forward.41} parent=0 // pred_region
    _
  $region29: #{transformer_forward.41} parent=0 // pred_fallthru
    _

// kernel: transformer_forward.49
$region0: #{transformer_forward.49}
  #allocation0 [shape = 'u32[]', space=smem, size = 0x4, offset = 0x4, fixed_abs, tag = 'smem constant byte address 0x4 - core index']
  #allocation1 [shape = 'u32[144,128]{1,0:T(1,128)}', space=vmem, size = 0x12000, scoped, tag = 'internal scratch']
  %s0 = inlined_call_operand.vmem [shape: f32[16,32], index: 0, kind: input, shape index: {}]
  %s1 = inlined_call_operand.vmem [shape: f32[1,32], index: 1, kind: input, shape index: {}]
  %s2 = inlined_call_operand.vmem [shape: f32[1,32], index: 2, kind: input, shape index: {}]
  %s3 = inlined_call_operand.vmem [shape: f32[16,32], index: 3, kind: output, shape index: {}]
  %s4 = sld [smem:[#allocation0]]
  $region22: #{transformer_forward.49} parent=0
    _
  %s6 = ssub.s32 1, %s4
  %s7 = scalar_select 0, %s6, %s4
  // Predicated region
  $region2: #{transformer_forward.49} parent=0 // pred_check
    _
  $region3: #{transformer_forward.49} parent=0 // pred_check_branch
    %9 = sbr.rel (0) target = $region5
  $region4: #{transformer_forward.49} parent=0 // pred_region
    _
  $region5: #{transformer_forward.49} parent=0 // pred_fallthru
    _
  // Predicated region
  $region6: #{transformer_forward.49} parent=0 // pred_check
    _
  $region7: #{transformer_forward.49} parent=0 // pred_check_branch
    %11 = sbr.rel (0) target = $region9
  $region8: #{transformer_forward.49} parent=0 // pred_region
    _
  $region9: #{transformer_forward.49} parent=0 // pred_fallthru
    _
  // Predicated region
  $region10: #{transformer_forward.49} parent=0 // pred_check
    _
  $region11: #{transformer_forward.49} parent=0 // pred_check_branch
    %13 = sbr.rel (0) target = $region13
  $region12: #{transformer_forward.49} parent=0 // pred_region
    _
  $region13: #{transformer_forward.49} parent=0 // pred_fallthru
    _
  %v14 = vld [vmem:[%s0] sm:$0xff]
  %v15 = vld [vmem:[%s0 + $0x8] sm:$0xff]
  %vm16 = vcmask 261120
  %v17 = vsel %vm16, %v14, 0.0
  %18 = vadd.xlane.f32.xlu0 %v17
  %v19 = vpop.xlane.xlu0 %18
  %v20 = vsel %vm16, %v15, 0.0
  %21 = vadd.xlane.f32.xlu0 %v20
  %v22 = vpop.xlane.xlu0 %21
  %v23 = vrcp.pop 32.0
  %v24 = vmul.f32 %v19, %v23
  %v25 = vmul.f32 %v22, %v23
  %v26 = vsub.f32 %v14, %v24
  %v27 = vsub.f32 %v15, %v25
  %v28 = vmul.f32 %v26, %v26
  %v29 = vmul.f32 %v27, %v27
  %v30 = vsel %vm16, %v28, 0.0
  %31 = vadd.xlane.f32.xlu0 %v30
  %v32 = vpop.xlane.xlu0 %31
  %v33 = vsel %vm16, %v29, 0.0
  %34 = vadd.xlane.f32.xlu0 %v33
  %v35 = vpop.xlane.xlu0 %34
  %v36 = vmul.f32 %v32, %v23
  %v37 = vmul.f32 %v35, %v23
  %v38 = vadd.f32 %v36, 1e-05
  %v39 = vadd.f32 %v37, 1e-05
  %v40 = vrsqrt.pop %v38
  %v41 = vrsqrt.pop %v39
  %v42 = vmul.f32 %v26, %v40
  %v43 = vmul.f32 %v27, %v41
  %v44 = vld [vmem:[%s1] sm:$0x1]
  %v46 = vlaneseq
  %v47 = vshrl.u32 %v46, 7
  %v48 = vsub.s32 0, %v47
  %v49 = vrot.slane %v44, %v48
  %v51 = vmul.f32 %v42, %v49
  %v52 = vmul.f32 %v43, %v49
  %v53 = vld [vmem:[%s2] sm:$0x1]
  %v55 = vlaneseq
  %v56 = vshrl.u32 %v55, 7
  %v57 = vsub.s32 0, %v56
  %v58 = vrot.slane %v53, %v57
  %v60 = vadd.f32 %v51, %v58
  %v61 = vadd.f32 %v52, %v58
  %62 = vst.msk [vmem:[%s3] sm:$0xff] %vm16, %v60
  %63 = vst.msk [vmem:[%s3 + $0x8] sm:$0xff] %vm16, %v61
  // Predicated region
  $region14: #{transformer_forward.49} parent=0 // pred_check
    _
  $region15: #{transformer_forward.49} parent=0 // pred_check_branch
    %65 = sbr.rel (0) target = $region17
  $region16: #{transformer_forward.49} parent=0 // pred_region
    _
  $region17: #{transformer_forward.49} parent=0 // pred_fallthru
    _
  // Predicated region
  $region18: #{transformer_forward.49} parent=0 // pred_check
    _
  $region19: #{transformer_forward.49} parent=0 // pred_check_branch
    %67 = sbr.rel (0) target = $region21
  $region20: #{transformer_forward.49} parent=0 // pred_region
    _
  $region21: #{transformer_forward.49} parent=0 // pred_fallthru
    _

// kernel: transformer_forward.73
$region0: #{transformer_forward.73}
  #allocation0 [shape = 'u32[]', space=smem, size = 0x4, offset = 0x4, fixed_abs, tag = 'smem constant byte address 0x4 - core index']
  #allocation1 [shape = 'u32[144,128]{1,0:T(1,128)}', space=vmem, size = 0x12000, scoped, tag = 'internal scratch']
  #allocation2 [shape = 'f32[16,41]{1,0:T(8,128)}', space=vmem, size = 0x2000, scoped, tag = 'scratch operand']
  %s0 = inlined_call_operand.vmem [shape: f32[16,32], index: 0, kind: input, shape index: {}]
  %s1 = inlined_call_operand.vmem [shape: bf16[32,41], index: 1, kind: input, shape index: {}]
  %s2 = inlined_call_operand.vmem [shape: f32[1,41], index: 2, kind: input, shape index: {}]
  %s3 = inlined_call_operand.vmem [shape: f32[16,41], index: 3, kind: output, shape index: {}]
  %s4 = sld [smem:[#allocation0]]
  $region30: #{transformer_forward.73} parent=0
    _
  %s6 = ssub.s32 1, %s4
  %s7 = scalar_select 0, %s6, %s4
  // Predicated region
  $region2: #{transformer_forward.73} parent=0 // pred_check
    _
  $region3: #{transformer_forward.73} parent=0 // pred_check_branch
    %9 = sbr.rel (0) target = $region5
  $region4: #{transformer_forward.73} parent=0 // pred_region
    _
  $region5: #{transformer_forward.73} parent=0 // pred_fallthru
    _
  // Predicated region
  $region6: #{transformer_forward.73} parent=0 // pred_check
    _
  $region7: #{transformer_forward.73} parent=0 // pred_check_branch
    %11 = sbr.rel (0) target = $region9
  $region8: #{transformer_forward.73} parent=0 // pred_region
    _
  $region9: #{transformer_forward.73} parent=0 // pred_fallthru
    _
  // Predicated region
  $region10: #{transformer_forward.73} parent=0 // pred_check
    _
  $region11: #{transformer_forward.73} parent=0 // pred_check_branch
    %13 = sbr.rel (0) target = $region13
  $region12: #{transformer_forward.73} parent=0 // pred_region
    _
  $region13: #{transformer_forward.73} parent=0 // pred_fallthru
    _
  %p15 = scmp.eq.s32.totalorder 0, 0
  // Predicated region
  $region14: #{transformer_forward.73} parent=0 // pred_check
    %p16 = pneg %p15
  $region15: #{transformer_forward.73} parent=0 // pred_check_branch
    %18 = sbr.rel (%p16) target = $region17
  $region16: #{transformer_forward.73} parent=0 // pred_region
    %vm19 = vcmask 334848
    %20 = vst.msk [vmem:[#allocation2] sm:$0xff] %vm19, 0.0
    %21 = vst.msk [vmem:[#allocation2 + $0x8] sm:$0xff] %vm19, 0.0
  $region17: #{transformer_forward.73} parent=0 // pred_fallthru
    _
  %v22 = vld [vmem:[#allocation2] sm:$0xff]
  %v23 = vld [vmem:[#allocation2 + $0x8] sm:$0xff]
  %v24 = vld [vmem:[%s0] sm:$0xff]
  %v25 = vld [vmem:[%s0 + $0x8] sm:$0xff]
  %v26 = vpack.c.bf16 %v25, %v24
  %v27 = vld [vmem:[%s1] sm:$0xf]
  %v28 = vld [vmem:[%s1 + $0x4] sm:$0xf]
  %v29 = vld [vmem:[%s1 + $0x8] sm:$0xf]
  %v30 = vld [vmem:[%s1 + $0xc] sm:$0xf]
  %v35 = vunpack.c.l.b16 %v27
  %v36 = vunpack.c.l.b16 %v28
  %v37 = vunpack.c.l.b16 %v29
  %v38 = vunpack.c.l.b16 %v30
  %v39 = vpack.c.b16 %v36, %v35
  %v40 = vpack.c.b16 %v38, %v37
  %vm43 = vcmask 261120
  %v45 = vsel %vm43, %v26, 0
  %47 = vmatprep.subr.bf16.mxu0 0
  %48 = vmatpush1.bf16.msra.mxu0 %v39
  %49 = vmatprep.subr.bf16.mxu0 0
  %50 = vmatpush1.bf16.msra.mxu0 %v40
  %51 = vmatprep.subr.bf16.mxu0 0
  %52 = vmatpush1.bf16.msra.mxu0 0
  %53 = vmatprep.subr.bf16.mxu0 0
  %54 = vmatpush1.bf16.msra.mxu0 0
  %55 = vmatprep.subr.bf16.mxu0 0
  %56 = vmatpush1.bf16.msra.mxu0 0
  %57 = vmatprep.subr.bf16.mxu0 0
  %58 = vmatpush1.bf16.msra.mxu0 0
  %59 = vmatprep.subr.bf16.mxu0 0
  %60 = vmatpush1.bf16.msra.mxu0 0
  %61 = vmatprep.subr.bf16.mxu0 0
  %62 = vmatpush1.bf16.msra.mxu0 0
  %63 = vmatprep.subr.bf16.mxu0 0
  %64 = vmatpush1.bf16.msra.mxu0 0
  %65 = vmatprep.subr.bf16.mxu0 0
  %66 = vmatpush1.bf16.msra.mxu0 0
  %67 = vmatprep.subr.bf16.mxu0 0
  %68 = vmatpush1.bf16.msra.mxu0 0
  %69 = vmatprep.subr.bf16.mxu0 0
  %70 = vmatpush1.bf16.msra.mxu0 0
  %71 = vmatprep.subr.bf16.mxu0 0
  %72 = vmatpush1.bf16.msra.mxu0 0
  %73 = vmatprep.subr.bf16.mxu0 0
  %74 = vmatpush1.bf16.msra.mxu0 0
  %75 = vmatprep.subr.bf16.mxu0 0
  %76 = vmatpush1.bf16.msra.mxu0 0
  %77 = vmatprep.subr.bf16.mxu0 0
  %78 = vmatpush1.bf16.msra.mxu0 0
  %79 = vmatprep.mubr.bf16.mxu0 0
  %80 = vmatmul.mubr.bf16.gmra.mrb[0].mxu0 %v45
  %v81 = vpop.f32.mrb[0].mxu0
  %v82 = vadd.f32 0.0, %v81
  %v83 = vpop.f32.mrb[0].mxu0
  %v84 = vpop.f32.mrb[0].mxu0
  %v85 = vadd.f32 0.0, %v84
  %v86 = vpop.f32.mrb[0].mxu0
  %87 = vdwg.mxu0
  %v88 = vadd.f32 %v22, %v82
  %v89 = vadd.f32 %v23, %v85
  %vm90 = vcmask 334848
  %91 = vst.msk [vmem:[#allocation2] sm:$0xff] %vm90, %v88
  %92 = vst.msk [vmem:[#allocation2 + $0x8] sm:$0xff] %vm90, %v89
  // Predicated region
  $region18: #{transformer_forward.73} parent=0 // pred_check
    %p93 = pneg %p15
  $region19: #{transformer_forward.73} parent=0 // pred_check_branch
    %95 = sbr.rel (%p93) target = $region21
  $region20: #{transformer_forward.73} parent=0 // pred_region
    %v96 = vld [vmem:[#allocation2] sm:$0xff]
    %v97 = vld [vmem:[#allocation2 + $0x8] sm:$0xff]
    %v98 = vld [vmem:[%s2] sm:$0x1]
    %v100 = vlaneseq
    %v101 = vshrl.u32 %v100, 7
    %v102 = vsub.s32 0, %v101
    %v103 = vrot.slane %v98, %v102
    %v105 = vadd.f32 %v96, %v103
    %v106 = vadd.f32 %v97, %v103
    %107 = vst.msk [vmem:[%s3] sm:$0xff] %vm90, %v105
    %108 = vst.msk [vmem:[%s3 + $0x8] sm:$0xff] %vm90, %v106
  $region21: #{transformer_forward.73} parent=0 // pred_fallthru
    _
  // Predicated region
  $region22: #{transformer_forward.73} parent=0 // pred_check
    _
  $region23: #{transformer_forward.73} parent=0 // pred_check_branch
    %110 = sbr.rel (0) target = $region25
  $region24: #{transformer_forward.73} parent=0 // pred_region
    _
  $region25: #{transformer_forward.73} parent=0 // pred_fallthru
    _
  // Predicated region
  $region26: #{transformer_forward.73} parent=0 // pred_check
    _
  $region27: #{transformer_forward.73} parent=0 // pred_check_branch
    %112 = sbr.rel (0) target = $region29
  $region28: #{transformer_forward.73} parent=0 // pred_region
    _
  $region29: #{transformer_forward.73} parent=0 // pred_fallthru
    _

// kernel: transformer_forward.56
$region0: #{transformer_forward.56}
  #allocation0 [shape = 'u32[]', space=smem, size = 0x4, offset = 0x4, fixed_abs, tag = 'smem constant byte address 0x4 - core index']
  #allocation1 [shape = 'u32[144,128]{1,0:T(1,128)}', space=vmem, size = 0x12000, scoped, tag = 'internal scratch']
  %s0 = inlined_call_operand.vmem [shape: f32[2,4,8,8], index: 0, kind: input, shape index: {}]
  %s1 = inlined_call_operand.vmem [shape: f32[2,4,8,8], index: 1, kind: input, shape index: {}]
  %s2 = inlined_call_operand.vmem [shape: f32[2,4,8,8], index: 2, kind: input, shape index: {}]
  %s3 = inlined_call_operand.vmem [shape: f32[2,4,8,8], index: 3, kind: output, shape index: {}]
  %s4 = sld [smem:[#allocation0]]
  $region45: #{transformer_forward.56} parent=0
    _
  %s6 = ssub.s32 1, %s4
  %s7 = scalar_select 0, %s6, %s4
  loop: start=0, step=1, limit=4
  $region2: #{transformer_forward.56} parent=0 // loop_pre_header
    _
  $region3: #{transformer_forward.56} parent=0 // loop_header
    %s9 = sphi 0, %s13
    %p10 = scmp.ge.s32.totalorder %s9, 4
    %s19 = sphi 0, %s21
    %s22 = sphi 0, %s19
    %s23 = sphi 0, %s22
    %s39 = sphi 0, %s23
    %s45 = sphi 0, %s47
    %s48 = sphi 0, %s45
    %s49 = sphi 0, %s48
    %s65 = sphi 0, %s49
    %s71 = sphi 0, %s73
    %s74 = sphi 0, %s71
    %s75 = sphi 0, %s74
    %s91 = sphi 0, %s75
    %s97 = sphi 0, %s99
    %s100 = sphi 0, %s97
    %s101 = sphi 0, %s100
    %s117 = sphi 0, %s101
  $region4: #{transformer_forward.56} parent=0 // loop_header_branch
    %12 = sbr.rel (%p10) target = $region8
  $region5: #{transformer_forward.56} parent=0 // loop_body
    %s14 = ssub.s32 %s9, 1
    %s15 = ssub.s32 %s9, 2
    %s16 = sadd.s32 %s9, 1
    %s17 = ssub.s32 %s9, %s16
    %p18 = scmp.eq.s32.totalorder %s17, 0
    %s20 = sadd.s32 %s19, 1
    %s21 = scalar_select %p18, %s19, %s20
    %p24 = pneg %p18
    %p25 = scmp.eq.s32.totalorder %s9, 1
    %p26 = por %p24, %p25
    %p27 = scmp.ne.s32.totalorder %s19, %s22
    %p28 = scmp.eq.s32.totalorder %s9, 0
    %p29 = por %p27, %p28
    %p30 = scmp.ne.s32.totalorder %s19, %s22
    %p31 = scmp.eq.s32.totalorder %s14, 1
    %p32 = por %p30, %p31
    %p33 = scmp.ne.s32.totalorder %s22, %s23
    %p34 = scmp.eq.s32.totalorder %s14, 0
    %p35 = por %p33, %p34
    %p36 = scmp.ne.s32.totalorder %s22, %s23
    %p37 = scmp.eq.s32.totalorder %s15, 1
    %p38 = por %p36, %p37
    %p40 = scmp.ne.s32.totalorder %s23, %s39
    %p41 = scmp.eq.s32.totalorder %s15, 0
    %p42 = por %p40, %p41
    %s43 = ssub.s32 %s9, %s16
    %p44 = scmp.eq.s32.totalorder %s43, 0
    %s46 = sadd.s32 %s45, 1
    %s47 = scalar_select %p44, %s45, %s46
    %p50 = pneg %p44
    %p51 = scmp.eq.s32.totalorder %s9, 1
    %p52 = por %p50, %p51
    %p53 = scmp.ne.s32.totalorder %s45, %s48
    %p54 = scmp.eq.s32.totalorder %s9, 0
    %p55 = por %p53, %p54
    %p56 = scmp.ne.s32.totalorder %s45, %s48
    %p57 = scmp.eq.s32.totalorder %s14, 1
    %p58 = por %p56, %p57
    %p59 = scmp.ne.s32.totalorder %s48, %s49
    %p60 = scmp.eq.s32.totalorder %s14, 0
    %p61 = por %p59, %p60
    %p62 = scmp.ne.s32.totalorder %s48, %s49
    %p63 = scmp.eq.s32.totalorder %s15, 1
    %p64 = por %p62, %p63
    %p66 = scmp.ne.s32.totalorder %s49, %s65
    %p67 = scmp.eq.s32.totalorder %s15, 0
    %p68 = por %p66, %p67
    %s69 = ssub.s32 %s9, %s16
    %p70 = scmp.eq.s32.totalorder %s69, 0
    %s72 = sadd.s32 %s71, 1
    %s73 = scalar_select %p70, %s71, %s72
    %p76 = pneg %p70
    %p77 = scmp.eq.s32.totalorder %s9, 1
    %p78 = por %p76, %p77
    %p79 = scmp.ne.s32.totalorder %s71, %s74
    %p80 = scmp.eq.s32.totalorder %s9, 0
    %p81 = por %p79, %p80
    %p82 = scmp.ne.s32.totalorder %s71, %s74
    %p83 = scmp.eq.s32.totalorder %s14, 1
    %p84 = por %p82, %p83
    %p85 = scmp.ne.s32.totalorder %s74, %s75
    %p86 = scmp.eq.s32.totalorder %s14, 0
    %p87 = por %p85, %p86
    %p88 = scmp.ne.s32.totalorder %s74, %s75
    %p89 = scmp.eq.s32.totalorder %s15, 1
    %p90 = por %p88, %p89
    %p92 = scmp.ne.s32.totalorder %s75, %s91
    %p93 = scmp.eq.s32.totalorder %s15, 0
    %p94 = por %p92, %p93
    %s95 = ssub.s32 %s9, %s16
    %p96 = scmp.eq.s32.totalorder %s95, 0
    %s98 = sadd.s32 %s97, 1
    %s99 = scalar_select %p96, %s97, %s98
    %p102 = pneg %p96
    %p103 = scmp.eq.s32.totalorder %s9, 1
    %p104 = por %p102, %p103
    %p105 = scmp.ne.s32.totalorder %s97, %s100
    %p106 = scmp.eq.s32.totalorder %s9, 0
    %p107 = por %p105, %p106
    %p108 = scmp.ne.s32.totalorder %s97, %s100
    %p109 = scmp.eq.s32.totalorder %s14, 1
    %p110 = por %p108, %p109
    %p111 = scmp.ne.s32.totalorder %s100, %s101
    %p112 = scmp.eq.s32.totalorder %s14, 0
    %p113 = por %p111, %p112
    %p114 = scmp.ne.s32.totalorder %s100, %s101
    %p115 = scmp.eq.s32.totalorder %s15, 1
    %p116 = por %p114, %p115
    %p118 = scmp.ne.s32.totalorder %s101, %s117
    %p119 = scmp.eq.s32.totalorder %s15, 0
    %p120 = por %p118, %p119
    %p121 = scmp.le.s32.totalorder 1, %s9
    %p122 = scmp.lt.s32.totalorder %s9, 3
    %p123 = pnand %p121, %p122
    %p124 = pneg %p123
    // Predicated region
    $region9: #{transformer_forward.56} parent=5 // pred_check
      _
    $region10: #{transformer_forward.56} parent=5 // pred_check_branch
      %126 = sbr.rel (%p123) target = $region12
    $region11: #{transformer_forward.56} parent=5 // pred_region
      %s127 = ssub.s32 %s9, 1
    $region12: #{transformer_forward.56} parent=5 // pred_fallthru
      _
    %p128 = scmp.lt.s32.totalorder %s9, 2
    // Predicated region
    $region13: #{transformer_forward.56} parent=5 // pred_check
      %p129 = pneg %p128
    $region14: #{transformer_forward.56} parent=5 // pred_check_branch
      %131 = sbr.rel (%p129) target = $region16
    $region15: #{transformer_forward.56} parent=5 // pred_region
      // Predicated region
      $region17: #{transformer_forward.56} parent=15 // pred_check
        %p132 = pneg %p29
      $region18: #{transformer_forward.56} parent=15 // pred_check_branch
        %134 = sbr.rel (%p132) target = $region20
      $region19: #{transformer_forward.56} parent=15 // pred_region
        %p135 = scmp.lt.s32.totalorder %s9, 1
        %s136 = scalar_select %p135, %s9, 1
        %s137 = smul.addr %s136, 4
        %s138 = smul.addr %s137, 8
        %s139 = scalar_lea.vmem %s0, %s138
      $region20: #{transformer_forward.56} parent=15 // pred_fallthru
        _
      // Predicated region
      $region21: #{transformer_forward.56} parent=15 // pred_check
        %p140 = pneg %p55
      $region22: #{transformer_forward.56} parent=15 // pred_check_branch
        %142 = sbr.rel (%p140) target = $region24
      $region23: #{transformer_forward.56} parent=15 // pred_region
        %p143 = scmp.lt.s32.totalorder %s9, 1
        %s144 = scalar_select %p143, %s9, 1
        %s145 = smul.addr %s144, 4
        %s146 = smul.addr %s145, 8
        %s147 = scalar_lea.vmem %s1, %s146
      $region24: #{transformer_forward.56} parent=15 // pred_fallthru
        _
      // Predicated region
      $region25: #{transformer_forward.56} parent=15 // pred_check
        %p148 = pneg %p81
      $region26: #{transformer_forward.56} parent=15 // pred_check_branch
        %150 = sbr.rel (%p148) target = $region28
      $region27: #{transformer_forward.56} parent=15 // pred_region
        %p151 = scmp.lt.s32.totalorder %s9, 1
        %s152 = scalar_select %p151, %s9, 1
        %s153 = smul.addr %s152, 4
        %s154 = smul.addr %s153, 8
        %s155 = scalar_lea.vmem %s2, %s154
      $region28: #{transformer_forward.56} parent=15 // pred_fallthru
        _
    $region16: #{transformer_forward.56} parent=5 // pred_fallthru
      _
    %p156 = scmp.le.s32.totalorder 1, %s9
    %p157 = scmp.lt.s32.totalorder %s9, 3
    %p158 = pnand %p156, %p157
    %p159 = pneg %p158
    // Predicated region
    $region29: #{transformer_forward.56} parent=5 // pred_check
      _
    $region30: #{transformer_forward.56} parent=5 // pred_check_branch
      %161 = sbr.rel (%p158) target = $region32
    $region31: #{transformer_forward.56} parent=5 // pred_region
      %s162 = ssub.s32 %s9, 1
      %p163 = scmp.lt.s32.totalorder %s14, 1
      %s164 = scalar_select %p163, %s14, 1
      %s165 = smul.addr %s164, 4
      %s166 = smul.addr %s165, 8
      %s167 = scalar_lea.vmem %s0, %s166
      %p168 = pneg %p35
      %p169 = pneg %p32
      %p170 = scmp.lt.s32.totalorder %s14, 1
      %s171 = scalar_select %p170, %s14, 1
      %s172 = smul.addr %s171, 4
      %s173 = smul.addr %s172, 8
      %s174 = scalar_lea.vmem %s1, %s173
      %p175 = pneg %p61
      %p176 = pneg %p58
      %p177 = scmp.lt.s32.totalorder %s14, 1
      %s178 = scalar_select %p177, %s14, 1
      %s179 = smul.addr %s178, 4
      %s180 = smul.addr %s179, 8
      %s181 = scalar_lea.vmem %s2, %s180
      %p182 = pneg %p87
      %p183 = pneg %p84
      %p184 = pneg %p113
      %p185 = pneg %p110
      %p186 = scmp.lt.s32.totalorder %s14, 1
      %s187 = scalar_select %p186, %s14, 1
      %s188 = smul.addr %s187, 4
      %s189 = smul.addr %s188, 8
      %s190 = scalar_lea.vmem %s3, %s189
      %p191 = scmp.lt.s32.totalorder %s14, 1
      %s192 = scalar_select %p191, %s14, 1
      %s193 = smul.addr %s192, 4
      %s194 = smul.addr %s193, 8
      %s195 = scalar_lea.vmem %s0, %s194
      %p196 = scmp.lt.s32.totalorder %s14, 1
      %s197 = scalar_select %p196, %s14, 1
      %s198 = smul.addr %s197, 4
      %s199 = smul.addr %s198, 8
      %s200 = scalar_lea.vmem %s1, %s199
      %p201 = scmp.lt.s32.totalorder %s14, 1
      %s202 = scalar_select %p201, %s14, 1
      %s203 = smul.addr %s202, 4
      %s204 = smul.addr %s203, 8
      %s205 = scalar_lea.vmem %s2, %s204
      %p206 = scmp.lt.s32.totalorder %s14, 1
      %s207 = scalar_select %p206, %s14, 1
      %s208 = smul.addr %s207, 4
      %s209 = smul.addr %s208, 8
      %s210 = scalar_lea.vmem %s3, %s209
      %v212 = vld [vmem:[%s195] sm:$0xff]
      %v213 = vld [vmem:[%s195 + $0x8] sm:$0xff]
      %v214 = vld [vmem:[%s195 + $0x10] sm:$0xff]
      %v215 = vld [vmem:[%s195 + $0x18] sm:$0xff]
      %v216 = vmul.f32 %v212, 0.35355338
      %v217 = vmul.f32 %v213, 0.35355338
      %v218 = vmul.f32 %v214, 0.35355338
      %v219 = vmul.f32 %v215, 0.35355338
      %v220 = vpack.c.bf16 %v216, %v216
      %v221 = vpack.c.bf16 %v217, %v217
      %v222 = vpack.c.bf16 %v218, %v218
      %v223 = vpack.c.bf16 %v219, %v219
      %v224 = vld [vmem:[%s200] sm:$0xff]
      %v225 = vld [vmem:[%s200 + $0x8] sm:$0xff]
      %v226 = vld [vmem:[%s200 + $0x10] sm:$0xff]
      %v227 = vld [vmem:[%s200 + $0x18] sm:$0xff]
      %v228 = vpack.c.bf16 %v224, %v224
      %v229 = vpack.c.bf16 %v225, %v225
      %v230 = vpack.c.bf16 %v226, %v226
      %v231 = vpack.c.bf16 %v227, %v227
      %v232 = vld [vmem:[%s205] sm:$0xff]
      %v233 = vld [vmem:[%s205 + $0x8] sm:$0xff]
      %v234 = vld [vmem:[%s205 + $0x10] sm:$0xff]
      %v235 = vld [vmem:[%s205 + $0x18] sm:$0xff]
      %v236 = vpack.c.bf16 %v232, %v232
      %v237 = vpack.c.bf16 %v233, %v233
      %v238 = vpack.c.bf16 %v234, %v234
      %v239 = vpack.c.bf16 %v235, %v235
      %vm240 = vcmask 64512
      %v242 = vsel %vm240, %v220, 0
      %v245 = vsel %vm240, %v228, 0
      %247 = vmatprep.subr.bf16.mxu0 0
      %248 = vmatpush1.bf16.xpose.msra.mxu0 %v245
      %249 = vmatprep.subr.bf16.mxu0 0
      %250 = vmatpush1.bf16.xpose.msra.mxu0 0
      %251 = vmatprep.subr.bf16.mxu0 0
      %252 = vmatpush1.bf16.xpose.msra.mxu0 0
      %253 = vmatprep.subr.bf16.mxu0 0
      %254 = vmatpush1.bf16.xpose.msra.mxu0 0
      %255 = vmatprep.subr.bf16.mxu0 0
      %256 = vmatpush1.bf16.xpose.msra.mxu0 0
      %257 = vmatprep.subr.bf16.mxu0 0
      %258 = vmatpush1.bf16.xpose.msra.mxu0 0
      %259 = vmatprep.subr.bf16.mxu0 0
      %260 = vmatpush1.bf16.xpose.msra.mxu0 0
      %261 = vmatprep.subr.bf16.mxu0 0
      %262 = vmatpush1.bf16.xpose.msra.mxu0 0
      %263 = vmatprep.subr.bf16.mxu0 0
      %264 = vmatpush1.bf16.xpose.msra.mxu0 0
      %265 = vmatprep.subr.bf16.mxu0 0
      %266 = vmatpush1.bf16.xpose.msra.mxu0 0
      %267 = vmatprep.subr.bf16.mxu0 0
      %268 = vmatpush1.bf16.xpose.msra.mxu0 0
      %269 = vmatprep.subr.bf16.mxu0 0
      %270 = vmatpush1.bf16.xpose.msra.mxu0 0
      %271 = vmatprep.subr.bf16.mxu0 0
      %272 = vmatpush1.bf16.xpose.msra.mxu0 0
      %273 = vmatprep.subr.bf16.mxu0 0
      %274 = vmatpush1.bf16.xpose.msra.mxu0 0
      %275 = vmatprep.subr.bf16.mxu0 0
      %276 = vmatpush1.bf16.xpose.msra.mxu0 0
      %277 = vmatprep.subr.bf16.mxu0 0
      %278 = vmatpush1.bf16.xpose.msra.mxu0 0
      %279 = vmatprep.mubr.bf16.mxu0 0
      %280 = vmatmul.mubr.bf16.gmra.mrb[0].mxu0 %v242
      %v281 = vpop.f32.mrb[0].mxu0
      %v282 = vadd.f32 0.0, %v281
      %v283 = vpop.f32.mrb[0].mxu0
      %v284 = vpop.f32.mrb[0].mxu0
      %v285 = vpop.f32.mrb[0].mxu0
      %286 = vdwg.mxu0
      %v288 = vsel %vm240, %v221, 0
      %v291 = vsel %vm240, %v229, 0
      %293 = vmatprep.subr.bf16.mxu0 0
      %294 = vmatpush1.bf16.xpose.msra.mxu0 %v291
      %295 = vmatprep.subr.bf16.mxu0 0
      %296 = vmatpush1.bf16.xpose.msra.mxu0 0
      %297 = vmatprep.subr.bf16.mxu0 0
      %298 = vmatpush1.bf16.xpose.msra.mxu0 0
      %299 = vmatprep.subr.bf16.mxu0 0
      %300 = vmatpush1.bf16.xpose.msra.mxu0 0
      %301 = vmatprep.subr.bf16.mxu0 0
      %302 = vmatpush1.bf16.xpose.msra.mxu0 0
      %303 = vmatprep.subr.bf16.mxu0 0
      %304 = vmatpush1.bf16.xpose.msra.mxu0 0
      %305 = vmatprep.subr.bf16.mxu0 0
      %306 = vmatpush1.bf16.xpose.msra.mxu0 0
      %307 = vmatprep.subr.bf16.mxu0 0
      %308 = vmatpush1.bf16.xpose.msra.mxu0 0
      %309 = vmatprep.subr.bf16.mxu0 0
      %310 = vmatpush1.bf16.xpose.msra.mxu0 0
      %311 = vmatprep.subr.bf16.mxu0 0
      %312 = vmatpush1.bf16.xpose.msra.mxu0 0
      %313 = vmatprep.subr.bf16.mxu0 0
      %314 = vmatpush1.bf16.xpose.msra.mxu0 0
      %315 = vmatprep.subr.bf16.mxu0 0
      %316 = vmatpush1.bf16.xpose.msra.mxu0 0
      %317 = vmatprep.subr.bf16.mxu0 0
      %318 = vmatpush1.bf16.xpose.msra.mxu0 0
      %319 = vmatprep.subr.bf16.mxu0 0
      %320 = vmatpush1.bf16.xpose.msra.mxu0 0
      %321 = vmatprep.subr.bf16.mxu0 0
      %322 = vmatpush1.bf16.xpose.msra.mxu0 0
      %323 = vmatprep.subr.bf16.mxu0 0
      %324 = vmatpush1.bf16.xpose.msra.mxu0 0
      %325 = vmatprep.mubr.bf16.mxu0 0
      %326 = vmatmul.mubr.bf16.gmra.mrb[0].mxu0 %v288
      %v327 = vpop.f32.mrb[0].mxu0
      %v328 = vadd.f32 0.0, %v327
      %v329 = vpop.f32.mrb[0].mxu0
      %v330 = vpop.f32.mrb[0].mxu0
      %v331 = vpop.f32.mrb[0].mxu0
      %332 = vdwg.mxu0
      %v334 = vsel %vm240, %v222, 0
      %v337 = vsel %vm240, %v230, 0
      %339 = vmatprep.subr.bf16.mxu0 0
      %340 = vmatpush1.bf16.xpose.msra.mxu0 %v337
      %341 = vmatprep.subr.bf16.mxu0 0
      %342 = vmatpush1.bf16.xpose.msra.mxu0 0
      %343 = vmatprep.subr.bf16.mxu0 0
      %344 = vmatpush1.bf16.xpose.msra.mxu0 0
      %345 = vmatprep.subr.bf16.mxu0 0
      %346 = vmatpush1.bf16.xpose.msra.mxu0 0
      %347 = vmatprep.subr.bf16.mxu0 0
      %348 = vmatpush1.bf16.xpose.msra.mxu0 0
      %349 = vmatprep.subr.bf16.mxu0 0
      %350 = vmatpush1.bf16.xpose.msra.mxu0 0
      %351 = vmatprep.subr.bf16.mxu0 0
      %352 = vmatpush1.bf16.xpose.msra.mxu0 0
      %353 = vmatprep.subr.bf16.mxu0 0
      %354 = vmatpush1.bf16.xpose.msra.mxu0 0
      %355 = vmatprep.subr.bf16.mxu0 0
      %356 = vmatpush1.bf16.xpose.msra.mxu0 0
      %357 = vmatprep.subr.bf16.mxu0 0
      %358 = vmatpush1.bf16.xpose.msra.mxu0 0
      %359 = vmatprep.subr.bf16.mxu0 0
      %360 = vmatpush1.bf16.xpose.msra.mxu0 0
      %361 = vmatprep.subr.bf16.mxu0 0
      %362 = vmatpush1.bf16.xpose.msra.mxu0 0
      %363 = vmatprep.subr.bf16.mxu0 0
      %364 = vmatpush1.bf16.xpose.msra.mxu0 0
      %365 = vmatprep.subr.bf16.mxu0 0
      %366 = vmatpush1.bf16.xpose.msra.mxu0 0
      %367 = vmatprep.subr.bf16.mxu0 0
      %368 = vmatpush1.bf16.xpose.msra.mxu0 0
      %369 = vmatprep.subr.bf16.mxu0 0
      %370 = vmatpush1.bf16.xpose.msra.mxu0 0
      %371 = vmatprep.mubr.bf16.mxu0 0
      %372 = vmatmul.mubr.bf16.gmra.mrb[0].mxu0 %v334
      %v373 = vpop.f32.mrb[0].mxu0
      %v374 = vadd.f32 0.0, %v373
      %v375 = vpop.f32.mrb[0].mxu0
      %v376 = vpop.f32.mrb[0].mxu0
      %v377 = vpop.f32.mrb[0].mxu0
      %378 = vdwg.mxu0
      %v380 = vsel %vm240, %v223, 0
      %v383 = vsel %vm240, %v231, 0
      %385 = vmatprep.subr.bf16.mxu0 0
      %386 = vmatpush1.bf16.xpose.msra.mxu0 %v383
      %387 = vmatprep.subr.bf16.mxu0 0
      %388 = vmatpush1.bf16.xpose.msra.mxu0 0
      %389 = vmatprep.subr.bf16.mxu0 0
      %390 = vmatpush1.bf16.xpose.msra.mxu0 0
      %391 = vmatprep.subr.bf16.mxu0 0
      %392 = vmatpush1.bf16.xpose.msra.mxu0 0
      %393 = vmatprep.subr.bf16.mxu0 0
      %394 = vmatpush1.bf16.xpose.msra.mxu0 0
      %395 = vmatprep.subr.bf16.mxu0 0
      %396 = vmatpush1.bf16.xpose.msra.mxu0 0
      %397 = vmatprep.subr.bf16.mxu0 0
      %398 = vmatpush1.bf16.xpose.msra.mxu0 0
      %399 = vmatprep.subr.bf16.mxu0 0
      %400 = vmatpush1.bf16.xpose.msra.mxu0 0
      %401 = vmatprep.subr.bf16.mxu0 0
      %402 = vmatpush1.bf16.xpose.msra.mxu0 0
      %403 = vmatprep.subr.bf16.mxu0 0
      %404 = vmatpush1.bf16.xpose.msra.mxu0 0
      %405 = vmatprep.subr.bf16.mxu0 0
      %406 = vmatpush1.bf16.xpose.msra.mxu0 0
      %407 = vmatprep.subr.bf16.mxu0 0
      %408 = vmatpush1.bf16.xpose.msra.mxu0 0
      %409 = vmatprep.subr.bf16.mxu0 0
      %410 = vmatpush1.bf16.xpose.msra.mxu0 0
      %411 = vmatprep.subr.bf16.mxu0 0
      %412 = vmatpush1.bf16.xpose.msra.mxu0 0
      %413 = vmatprep.subr.bf16.mxu0 0
      %414 = vmatpush1.bf16.xpose.msra.mxu0 0
      %415 = vmatprep.subr.bf16.mxu0 0
      %416 = vmatpush1.bf16.xpose.msra.mxu0 0
      %417 = vmatprep.mubr.bf16.mxu0 0
      %418 = vmatmul.mubr.bf16.gmra.mrb[0].mxu0 %v380
      %v419 = vpop.f32.mrb[0].mxu0
      %v420 = vadd.f32 0.0, %v419
      %v421 = vpop.f32.mrb[0].mxu0
      %v422 = vpop.f32.mrb[0].mxu0
      %v423 = vpop.f32.mrb[0].mxu0
      %424 = vdwg.mxu0
      %v425 = vsel %vm240, %v282, -inf
      %426 = vmax.xlane.f32.xlu0 %v425
      %v427 = vpop.xlane.xlu0 %426
      %v428 = vsel %vm240, %v328, -inf
      %429 = vmax.xlane.f32.xlu0 %v428
      %v430 = vpop.xlane.xlu0 %429
      %v431 = vsel %vm240, %v374, -inf
      %432 = vmax.xlane.f32.xlu0 %v431
      %v433 = vpop.xlane.xlu0 %432
      %v434 = vsel %vm240, %v420, -inf
      %435 = vmax.xlane.f32.xlu0 %v434
      %v436 = vpop.xlane.xlu0 %435
      %v437 = vsub.f32 %v282, %v427
      %v438 = vsub.f32 %v328, %v430
      %v439 = vsub.f32 %v374, %v433
      %v440 = vsub.f32 %v420, %v436
      %v441 = vmul.f32 %v437, 1.442695
      %v442 = vpow.pop %v441
      %v443 = vmul.f32 %v438, 1.442695
      %v444 = vpow.pop %v443
      %v445 = vmul.f32 %v439, 1.442695
      %v446 = vpow.pop %v445
      %v447 = vmul.f32 %v440, 1.442695
      %v448 = vpow.pop %v447
      %v449 = vsel %vm240, %v442, 0.0
      %450 = vadd.xlane.f32.xlu0 %v449
      %v451 = vpop.xlane.xlu0 %450
      %v452 = vsel %vm240, %v444, 0.0
      %453 = vadd.xlane.f32.xlu0 %v452
      %v454 = vpop.xlane.xlu0 %453
      %v455 = vsel %vm240, %v446, 0.0
      %456 = vadd.xlane.f32.xlu0 %v455
      %v457 = vpop.xlane.xlu0 %456
      %v458 = vsel %vm240, %v448, 0.0
      %459 = vadd.xlane.f32.xlu0 %v458
      %v460 = vpop.xlane.xlu0 %459
      %v461 = vrcp.pop %v451
      %v462 = vrcp.pop %v454
      %v463 = vrcp.pop %v457
      %v464 = vrcp.pop %v460
      %v465 = vmul.f32 %v442, %v461
      %v466 = vmul.f32 %v444, %v462
      %v467 = vmul.f32 %v446, %v463
      %v468 = vmul.f32 %v448, %v464
      %v469 = vpack.c.bf16 %v465, %v465
      %v470 = vpack.c.bf16 %v466, %v466
      %v471 = vpack.c.bf16 %v467, %v467
      %v472 = vpack.c.bf16 %v468, %v468
      %v474 = vsel %vm240, %v469, 0
      %vm476 = vcmask 1043456
      %v478 = vsel %vm476, %v236, 0
      %480 = vmatprep.subr.bf16.mxu0 0
      %481 = vmatpush1.bf16.msra.mxu0 %v478
      %482 = vmatprep.subr.bf16.mxu0 0
      %483 = vmatpush1.bf16.msra.mxu0 0
      %484 = vmatprep.subr.bf16.mxu0 0
      %485 = vmatpush1.bf16.msra.mxu0 0
      %486 = vmatprep.subr.bf16.mxu0 0
      %487 = vmatpush1.bf16.msra.mxu0 0
      %488 = vmatprep.subr.bf16.mxu0 0
      %489 = vmatpush1.bf16.msra.mxu0 0
      %490 = vmatprep.subr.bf16.mxu0 0
      %491 = vmatpush1.bf16.msra.mxu0 0
      %492 = vmatprep.subr.bf16.mxu0 0
      %493 = vmatpush1.bf16.msra.mxu0 0
      %494 = vmatprep.subr.bf16.mxu0 0
      %495 = vmatpush1.bf16.msra.mxu0 0
      %496 = vmatprep.subr.bf16.mxu0 0
      %497 = vmatpush1.bf16.msra.mxu0 0
      %498 = vmatprep.subr.bf16.mxu0 0
      %499 = vmatpush1.bf16.msra.mxu0 0
      %500 = vmatprep.subr.bf16.mxu0 0
      %501 = vmatpush1.bf16.msra.mxu0 0
      %502 = vmatprep.subr.bf16.mxu0 0
      %503 = vmatpush1.bf16.msra.mxu0 0
      %504 = vmatprep.subr.bf16.mxu0 0
      %505 = vmatpush1.bf16.msra.mxu0 0
      %506 = vmatprep.subr.bf16.mxu0 0
      %507 = vmatpush1.bf16.msra.mxu0 0
      %508 = vmatprep.subr.bf16.mxu0 0
      %509 = vmatpush1.bf16.msra.mxu0 0
      %510 = vmatprep.subr.bf16.mxu0 0
      %511 = vmatpush1.bf16.msra.mxu0 0
      %512 = vmatprep.mubr.bf16.mxu0 0
      %513 = vmatmul.mubr.bf16.gmra.mrb[0].mxu0 %v474
      %v514 = vpop.f32.mrb[0].mxu0
      %v515 = vadd.f32 0.0, %v514
      %v516 = vpop.f32.mrb[0].mxu0
      %v517 = vpop.f32.mrb[0].mxu0
      %v518 = vpop.f32.mrb[0].mxu0
      %519 = vdwg.mxu0
      %v521 = vsel %vm240, %v470, 0
      %v524 = vsel %vm476, %v237, 0
      %526 = vmatprep.subr.bf16.mxu0 0
      %527 = vmatpush1.bf16.msra.mxu0 %v524
      %528 = vmatprep.subr.bf16.mxu0 0
      %529 = vmatpush1.bf16.msra.mxu0 0
      %530 = vmatprep.subr.bf16.mxu0 0
      %531 = vmatpush1.bf16.msra.mxu0 0
      %532 = vmatprep.subr.bf16.mxu0 0
      %533 = vmatpush1.bf16.msra.mxu0 0
      %534 = vmatprep.subr.bf16.mxu0 0
      %535 = vmatpush1.bf16.msra.mxu0 0
      %536 = vmatprep.subr.bf16.mxu0 0
      %537 = vmatpush1.bf16.msra.mxu0 0
      %538 = vmatprep.subr.bf16.mxu0 0
      %539 = vmatpush1.bf16.msra.mxu0 0
      %540 = vmatprep.subr.bf16.mxu0 0
      %541 = vmatpush1.bf16.msra.mxu0 0
      %542 = vmatprep.subr.bf16.mxu0 0
      %543 = vmatpush1.bf16.msra.mxu0 0
      %544 = vmatprep.subr.bf16.mxu0 0
      %545 = vmatpush1.bf16.msra.mxu0 0
      %546 = vmatprep.subr.bf16.mxu0 0
      %547 = vmatpush1.bf16.msra.mxu0 0
      %548 = vmatprep.subr.bf16.mxu0 0
      %549 = vmatpush1.bf16.msra.mxu0 0
      %550 = vmatprep.subr.bf16.mxu0 0
      %551 = vmatpush1.bf16.msra.mxu0 0
      %552 = vmatprep.subr.bf16.mxu0 0
      %553 = vmatpush1.bf16.msra.mxu0 0
      %554 = vmatprep.subr.bf16.mxu0 0
      %555 = vmatpush1.bf16.msra.mxu0 0
      %556 = vmatprep.subr.bf16.mxu0 0
      %557 = vmatpush1.bf16.msra.mxu0 0
      %558 = vmatprep.mubr.bf16.mxu0 0
      %559 = vmatmul.mubr.bf16.gmra.mrb[0].mxu0 %v521
      %v560 = vpop.f32.mrb[0].mxu0
      %v561 = vadd.f32 0.0, %v560
      %v562 = vpop.f32.mrb[0].mxu0
      %v563 = vpop.f32.mrb[0].mxu0
      %v564 = vpop.f32.mrb[0].mxu0
      %565 = vdwg.mxu0
      %v567 = vsel %vm240, %v471, 0
      %v570 = vsel %vm476, %v238, 0
      %572 = vmatprep.subr.bf16.mxu0 0
      %573 = vmatpush1.bf16.msra.mxu0 %v570
      %574 = vmatprep.subr.bf16.mxu0 0
      %575 = vmatpush1.bf16.msra.mxu0 0
      %576 = vmatprep.subr.bf16.mxu0 0
      %577 = vmatpush1.bf16.msra.mxu0 0
      %578 = vmatprep.subr.bf16.mxu0 0
      %579 = vmatpush1.bf16.msra.mxu0 0
      %580 = vmatprep.subr.bf16.mxu0 0
      %581 = vmatpush1.bf16.msra.mxu0 0
      %582 = vmatprep.subr.bf16.mxu0 0
      %583 = vmatpush1.bf16.msra.mxu0 0
      %584 = vmatprep.subr.bf16.mxu0 0
      %585 = vmatpush1.bf16.msra.mxu0 0
      %586 = vmatprep.subr.bf16.mxu0 0
      %587 = vmatpush1.bf16.msra.mxu0 0
      %588 = vmatprep.subr.bf16.mxu0 0
      %589 = vmatpush1.bf16.msra.mxu0 0
      %590 = vmatprep.subr.bf16.mxu0 0
      %591 = vmatpush1.bf16.msra.mxu0 0
      %592 = vmatprep.subr.bf16.mxu0 0
      %593 = vmatpush1.bf16.msra.mxu0 0
      %594 = vmatprep.subr.bf16.mxu0 0
      %595 = vmatpush1.bf16.msra.mxu0 0
      %596 = vmatprep.subr.bf16.mxu0 0
      %597 = vmatpush1.bf16.msra.mxu0 0
      %598 = vmatprep.subr.bf16.mxu0 0
      %599 = vmatpush1.bf16.msra.mxu0 0
      %600 = vmatprep.subr.bf16.mxu0 0
      %601 = vmatpush1.bf16.msra.mxu0 0
      %602 = vmatprep.subr.bf16.mxu0 0
      %603 = vmatpush1.bf16.msra.mxu0 0
      %604 = vmatprep.mubr.bf16.mxu0 0
      %605 = vmatmul.mubr.bf16.gmra.mrb[0].mxu0 %v567
      %v606 = vpop.f32.mrb[0].mxu0
      %v607 = vadd.f32 0.0, %v606
      %v608 = vpop.f32.mrb[0].mxu0
      %v609 = vpop.f32.mrb[0].mxu0
      %v610 = vpop.f32.mrb[0].mxu0
      %611 = vdwg.mxu0
      %v613 = vsel %vm240, %v472, 0
      %v616 = vsel %vm476, %v239, 0
      %618 = vmatprep.subr.bf16.mxu0 0
      %619 = vmatpush1.bf16.msra.mxu0 %v616
      %620 = vmatprep.subr.bf16.mxu0 0
      %621 = vmatpush1.bf16.msra.mxu0 0
      %622 = vmatprep.subr.bf16.mxu0 0
      %623 = vmatpush1.bf16.msra.mxu0 0
      %624 = vmatprep.subr.bf16.mxu0 0
      %625 = vmatpush1.bf16.msra.mxu0 0
      %626 = vmatprep.subr.bf16.mxu0 0
      %627 = vmatpush1.bf16.msra.mxu0 0
      %628 = vmatprep.subr.bf16.mxu0 0
      %629 = vmatpush1.bf16.msra.mxu0 0
      %630 = vmatprep.subr.bf16.mxu0 0
      %631 = vmatpush1.bf16.msra.mxu0 0
      %632 = vmatprep.subr.bf16.mxu0 0
      %633 = vmatpush1.bf16.msra.mxu0 0
      %634 = vmatprep.subr.bf16.mxu0 0
      %635 = vmatpush1.bf16.msra.mxu0 0
      %636 = vmatprep.subr.bf16.mxu0 0
      %637 = vmatpush1.bf16.msra.mxu0 0
      %638 = vmatprep.subr.bf16.mxu0 0
      %639 = vmatpush1.bf16.msra.mxu0 0
      %640 = vmatprep.subr.bf16.mxu0 0
      %641 = vmatpush1.bf16.msra.mxu0 0
      %642 = vmatprep.subr.bf16.mxu0 0
      %643 = vmatpush1.bf16.msra.mxu0 0
      %644 = vmatprep.subr.bf16.mxu0 0
      %645 = vmatpush1.bf16.msra.mxu0 0
      %646 = vmatprep.subr.bf16.mxu0 0
      %647 = vmatpush1.bf16.msra.mxu0 0
      %648 = vmatprep.subr.bf16.mxu0 0
      %649 = vmatpush1.bf16.msra.mxu0 0
      %650 = vmatprep.mubr.bf16.mxu0 0
      %651 = vmatmul.mubr.bf16.gmra.mrb[0].mxu0 %v613
      %v652 = vpop.f32.mrb[0].mxu0
      %v653 = vadd.f32 0.0, %v652
      %v654 = vpop.f32.mrb[0].mxu0
      %v655 = vpop.f32.mrb[0].mxu0
      %v656 = vpop.f32.mrb[0].mxu0
      %657 = vdwg.mxu0
      %658 = vst.msk [vmem:[%s210] sm:$0xff] %vm240, %v515
      %659 = vst.msk [vmem:[%s210 + $0x8] sm:$0xff] %vm240, %v561
      %660 = vst.msk [vmem:[%s210 + $0x10] sm:$0xff] %vm240, %v607
      %661 = vst.msk [vmem:[%s210 + $0x18] sm:$0xff] %vm240, %v653
      %p662 = scmp.lt.s32.totalorder %s14, 1
      %s663 = scalar_select %p662, %s14, 1
      %s664 = smul.addr %s663, 4
      %s665 = smul.addr %s664, 8
      %s666 = scalar_lea.vmem %s3, %s665
      // Predicated region
      $region33: #{transformer_forward.56} parent=31 // pred_check
        %p667 = pneg %p110
      $region34: #{transformer_forward.56} parent=31 // pred_check_branch
        %669 = sbr.rel (%p667) target = $region36
      $region35: #{transformer_forward.56} parent=31 // pred_region
        _
      $region36: #{transformer_forward.56} parent=31 // pred_fallthru
        _
    $region32: #{transformer_forward.56} parent=5 // pred_fallthru
      _
    %p670 = scmp.le.s32.totalorder 2, %s9
    // Predicated region
    $region37: #{transformer_forward.56} parent=5 // pred_check
      %p671 = pneg %p670
    $region38: #{transformer_forward.56} parent=5 // pred_check_branch
      %673 = sbr.rel (%p671) target = $region40
    $region39: #{transformer_forward.56} parent=5 // pred_region
      %s674 = ssub.s32 %s9, 2
      // Predicated region
      $region41: #{transformer_forward.56} parent=39 // pred_check
        %p675 = pneg %p116
      $region42: #{transformer_forward.56} parent=39 // pred_check_branch
        %677 = sbr.rel (%p675) target = $region44
      $region43: #{transformer_forward.56} parent=39 // pred_region
        %p678 = scmp.lt.s32.totalorder %s15, 1
        %s679 = scalar_select %p678, %s15, 1
        %s680 = smul.addr %s679, 4
        %s681 = smul.addr %s680, 8
        %s682 = scalar_lea.vmem %s3, %s681
      $region44: #{transformer_forward.56} parent=39 // pred_fallthru
        _
    $region40: #{transformer_forward.56} parent=5 // pred_fallthru
      _
  $region6: #{transformer_forward.56} parent=0 // loop_footer
    %s13 = sadd.s32 1, %s9
  $region7: #{transformer_forward.56} parent=0 // loop_footer_branch
    %8 = sbr.rel target = $region3
  $region8: #{transformer_forward.56} parent=0 // loop_exit
    _

</llo_original>
